<compile_context>
chip_gen: v7x
topology: tpu7x:2x2x1
jax: 0.10.0
libtpu: 0.0.40
codegen_flags: <defaults>
</compile_context>

<pallas_src>
import functools

import numpy as np

import jax
import jax.numpy as jnp
from jax.experimental import pallas as pl
from jax.experimental.pallas import tpu as pltpu

SELU_ALPHA = 1.6732632423543772
SELU_SCALE = 1.0507009873554805


def _selu(x):
    # torch.nn.SELU. exp(x)-1 kept (instead of expm1) for guaranteed Mosaic lowering;
    # difference is below the verification tolerance.
    return SELU_SCALE * jnp.where(x > 0, x, SELU_ALPHA * (jnp.exp(x) - 1.0))


# ----------------------------------------------------------------------------------------
# Kernel 1: NeuralPhiX (tiny MLP), batch-on-lanes, packed params, VPU-only
# ----------------------------------------------------------------------------------------
def _neural_phi_kernel(x_ref, p_ref, o_ref, *, width, depth, ncp):
    """x_ref: (1, TB).  p_ref: (ncp + depth*width, width).  o_ref: (ncp, TB)."""
    x = x_ref[...]                                            # (1, TB)

    vec0 = ncp + (depth - 1) * width
    vec = p_ref[vec0:vec0 + width, :]                         # (width, width) column table
    # col 0 = Linear(1,width).weight[:,0], col 1+l = bias of layer l

    # Layer 0: Linear(1, width) + SELU  -- K=1 contraction is a VPU outer product (no MXU).
    h = _selu(vec[:, 0:1] * x + vec[:, 1:2])                  # (width, TB)

    # Hidden layers: Linear(width, width) + SELU, unrolled as `width` VPU FMAs.
    for l in range(1, depth):
        w = p_ref[ncp + (l - 1) * width: ncp + l * width, :]  # (width, width), (out, in)
        acc = w[:, 0:1] * h[0:1, :]
        for k in range(1, width):
            acc = acc + w[:, k:k + 1] * h[k:k + 1, :]
        h = _selu(acc + vec[:, l + 1:l + 2])

    # Output layer: Linear(width, ncp, bias=False), row-chunked to keep the live vreg set small,
    # each chunk stored lane-dense to o_ref.
    ch = ncp
    for c in range(64, 7, -8):
        if ncp % c == 0:
            ch = c
            break
    for r0 in range(0, ncp, ch):
        wc = p_ref[r0:r0 + ch, :]                             # (ch, width)
        acc = wc[:, 0:1] * h[0:1, :]
        for k in range(1, width):
            acc = acc + wc[:, k:k + 1] * h[k:k + 1, :]
        o_ref[r0:r0 + ch, :] = acc


def neural_phi_x_forward(times_1d, packed_params, *, ncp, width, depth, tile_b=128):
    """Batched NeuralPhiX forward.  times_1d: (B,) -> (B, ncp) float32."""
    b = int(times_1d.shape[0])
    assert tile_b % 128 == 0
    b_pad = max(tile_b, ((b + tile_b - 1) // tile_b) * tile_b)
    # batch on the lane axis (lane-dense compute / stores); pad with zeros.
    x = jnp.zeros((1, b_pad), jnp.float32).at[0, :b].set(times_1d.astype(jnp.float32))

    kernel = functools.partial(_neural_phi_kernel, width=width, depth=depth, ncp=ncp)
    cost = pl.CostEstimate(
        flops=int(2 * b_pad * (width + width * width * (depth - 1) + width * ncp)),
        transcendentals=int(b_pad * width * depth),
        bytes_accessed=int(4 * (b_pad + int(packed_params.size) + ncp * b_pad)),
    )
    out_cols = pl.pallas_call(
        kernel,
        out_shape=jax.ShapeDtypeStruct((ncp, b_pad), jnp.float32),
        grid=(b_pad // tile_b,),
        in_specs=[
            pl.BlockSpec((1, tile_b), lambda i: (0, i)),
            pl.BlockSpec(packed_params.shape, lambda i: (0, 0)),   # one packed param DMA
        ],
        out_specs=pl.BlockSpec((ncp, tile_b), lambda i: (0, i)),
        compiler_params=pltpu.CompilerParams(dimension_semantics=("parallel",)),
        cost_estimate=cost,
    )(x, packed_params)
    return out_cols[:, :b].T                                   # (B, ncp): wrapper-side plumbing


# ----------------------------------------------------------------------------------------
# Kernel 2: cubic B-spline warp (positions + displacement)
# ----------------------------------------------------------------------------------------
def _bspline_warp_kernel(phi_ref, pos_ref, out_ref, *, nx, ny, nz,
                         origin, spacing, support_outside):
    """phi_ref: SMEM (3*nx*ny*nz,) f32, ordered as (3, nx, ny, nz) row-major.
    pos_ref/out_ref: VMEM (3, TR, 128) -- x/y/z planes of a tile of points (lane-dense)."""
    ngrid = nx * ny * nz

    def axis_basis(p, o, d, n):
        u = (p - o - d) / d
        fu = jnp.floor(u)
        iu = fu.astype(jnp.int32)
        t = u - fu
        t2 = t * t
        t3 = t2 * t
        bw = (
            (1.0 - t) * (1.0 - t) * (1.0 - t) / 6.0,
            (3.0 * t3 - 6.0 * t2 + 4.0) / 6.0,
            (-3.0 * t3 + 3.0 * t2 + 3.0 * t + 1.0) / 6.0,
            t3 / 6.0,
        )
        bad = (iu < 0) | (iu > n - 4)
        idx = [jnp.clip(iu + l, 0, n - 1) for l in range(4)]
        basis = []
        for g in range(n):
            acc = jnp.where(idx[0] == g, bw[0], 0.0)
            for l in range(1, 4):
                acc = acc + jnp.where(idx[l] == g, bw[l], 0.0)
            basis.append(acc)
        return basis, bad

    px = pos_ref[0]
    py = pos_ref[1]
    pz = pos_ref[2]

    bx, badx = axis_basis(px, origin[0], spacing[0], nx)
    by, bady = axis_basis(py, origin[1], spacing[1], ny)
    bz, badz = axis_basis(pz, origin[2], spacing[2], nz)

    accx = jnp.zeros_like(px)
    accy = jnp.zeros_like(py)
    accz = jnp.zeros_like(pz)
    # Dense, fully unrolled sum over the (small) control grid: no gathers, pure VPU FMAs
    # with phi scalars broadcast from SMEM.  (For big control grids a gather/DMA scheme
    # would be needed instead; grids here are tiny because the MLP emits 3*nx*ny*nz values.)
    for gx in range(nx):
        for gy in range(ny):
            wxy = bx[gx] * by[gy]
            base = (gx * ny + gy) * nz
            for gz in range(nz):
                wxyz = wxy * bz[gz]
                c = base + gz
                accx = accx + wxyz * phi_ref[c]
                accy = accy + wxyz * phi_ref[ngrid + c]
                accz = accz + wxyz * phi_ref[2 * ngrid + c]

    ox = px + accx
    oy = py + accy
    oz = pz + accz
    if not support_outside:
        bad = badx | bady | badz
        ox = jnp.where(bad, jnp.nan, ox)
        oy = jnp.where(bad, jnp.nan, oy)
        oz = jnp.where(bad, jnp.nan, oz)
    out_ref[0] = ox
    out_ref[1] = oy
    out_ref[2] = oz


def _grid_geometry(grid_size, support_range):
    gs = np.asarray(grid_size, dtype=np.float64)
    if support_range is None:
        spacing = 2.0 / (gs - 3.0)
        origin = -1.0 - spacing
    else:
        assert len(support_range) == 3 and all(len(r) == 2 for r in support_range)
        lo = np.asarray([r[0] for r in support_range], dtype=np.float64)
        hi = np.asarray([r[1] for r in support_range], dtype=np.float64)
        spacing = (hi - lo) / (gs - 3.0)
        origin = lo - spacing
    return tuple(float(o) for o in origin), tuple(float(s) for s in spacing)


def bspline_warp(phi_flat, positions, *, grid_size, support_outside=False,
                 support_range=None, tile_points=1024):
    """positions: (..., 3).  phi_flat: (3*nx*ny*nz,) ordered as (3, nx, ny, nz) row-major."""
    nx, ny, nz = (int(g) for g in grid_size)
    origin, spacing = _grid_geometry((nx, ny, nz), support_range)

    # tile_points: v5e/v6e -> make it large (few grid steps); v7x -> keep >=2 parallel steps.
    assert tile_points % 128 == 0 and (tile_points // 128) % 8 == 0
    pos_flat = jnp.reshape(positions, (-1, 3)).astype(jnp.float32)
    n = pos_flat.shape[0]
    n_pad = ((n + tile_points - 1) // tile_points) * tile_points
    pos_flat = jnp.pad(pos_flat, ((0, n_pad - n), (0, 0)))
    rows = n_pad // 128
    tile_r = tile_points // 128
    pos3 = pos_flat.T.reshape(3, rows, 128)                    # points on the lane axis

    kernel = functools.partial(
        _bspline_warp_kernel, nx=nx, ny=ny, nz=nz,
        origin=origin, spacing=spacing, support_outside=support_outside)

    ngrid = nx * ny * nz
    cost = pl.CostEstimate(
        flops=int(n_pad * (2 * nx * ny + 8 * ngrid + 40 * (nx + ny + nz))),
        transcendentals=0,
        bytes_accessed=int(4 * (6 * n_pad + 3 * ngrid)),
    )
    out3 = pl.pallas_call(
        kernel,
        out_shape=jax.ShapeDtypeStruct((3, rows, 128), jnp.float32),
        grid=(rows // tile_r,),
        in_specs=[
            pl.BlockSpec(memory_space=pltpu.MemorySpace.SMEM),   # phi: small scalar table
            pl.BlockSpec((3, tile_r, 128), lambda i: (0, i, 0)),
        ],
        out_specs=pl.BlockSpec((3, tile_r, 128), lambda i: (0, i, 0)),
        compiler_params=pltpu.CompilerParams(dimension_semantics=("parallel",)),
        cost_estimate=cost,
    )(phi_flat.astype(jnp.float32), pos3)

    out = out3.reshape(3, n_pad).T[:n]                          # back to (N, 3)
    return out.reshape(positions.shape)


# ----------------------------------------------------------------------------------------
# Module-level wrapper (phi_x=None branch of BsplineTemporalDeformationField3d)
# ----------------------------------------------------------------------------------------
def bspline_temporal_deformation_forward(positions, times, packed_params, *, grid_size,
                                         width=16, depth=3, support_outside=False,
                                         support_range=None, tile_points=1024):
    """`times` must hold a single unique value (module contract: len(torch.unique(times)) == 1)."""
    # TODO(synk): the `phi_x is not None` branch (phi = phi_x[:t+1].sum(0)) and the dynamic
    # torch.unique(times) assertion are data-dependent host-side logic, not kernelized here.
    nx, ny, nz = (int(g) for g in grid_size)
    ncp = 3 * nx * ny * nz
    t0 = jnp.reshape(times, (-1,))[:1].astype(jnp.float32)      # (1,)
    phi_flat = neural_phi_x_forward(t0, packed_params, ncp=ncp, width=width, depth=depth)[0]
    return bspline_warp(phi_flat, positions, grid_size=(nx, ny, nz),
                        support_outside=support_outside, support_range=support_range,
                        tile_points=tile_points)


# ----------------------------------------------------------------------------------------
# Parameter construction / packing (torch layouts), pure-JAX reference, demo
# ----------------------------------------------------------------------------------------
def init_neural_phi_params(key, ncp, depth=3, width=16):
    keys = jax.random.split(key, 2 * depth + 1)
    ws, bs = [], []
    fan_in = 1
    for l in range(depth):
        bound = 1.0 / float(np.sqrt(fan_in))
        ws.append(jax.random.uniform(keys[2 * l], (width, fan_in), jnp.float32, -bound, bound))
        bs.append(jax.random.uniform(keys[2 * l + 1], (width,), jnp.float32, -bound, bound))
        fan_in = width
    limit = 0.1 * float(np.sqrt(6.0 / (width + ncp)))            # xavier_uniform, gain=0.1
    w_out = jax.random.uniform(keys[-1], (ncp, width), jnp.float32, -limit, limit)
    return ws, bs, w_out


def pack_neural_phi_params(ws, bs, w_out):
    depth = len(ws)
    width = int(ws[0].shape[0])
    ncp = int(w_out.shape[0])
    assert depth + 1 <= width
    packed = jnp.zeros((ncp + depth * width, width), jnp.float32)
    packed = packed.at[0:ncp, :].set(w_out)
    for l in range(1, depth):
        packed = packed.at[ncp + (l - 1) * width: ncp + l * width, :].set(ws[l])
    vec = jnp.zeros((width, width), jnp.float32)
    vec = vec.at[:, 0].set(ws[0][:, 0])
    for l in range(depth):
        vec = vec.at[:, l + 1].set(bs[l])
    packed = packed.at[ncp + (depth - 1) * width:, :].set(vec)
    return packed


def _bspline_w_ref(u, i):
    if i == 0:
        return (1 - u) ** 3 / 6
    if i == 1:
        return (3 * u ** 3 - 6 * u ** 2 + 4) / 6
    if i == 2:
        return (-3 * u ** 3 + 3 * u ** 2 + 3 * u + 1) / 6
    return u ** 3 / 6


def reference_forward(positions, times, ws, bs, w_out, grid_size, support_outside=False,
                      support_range=None):
    nx, ny, nz = (int(g) for g in grid_size)
    origin, spacing = _grid_geometry((nx, ny, nz), support_range)

    t = jnp.reshape(times, (-1,))[0]
    h = jnp.reshape(t, (1, 1)).astype(jnp.float32)
    for w, b in zip(ws, bs):
        h = _selu(jnp.matmul(h, w.T, precision=jax.lax.Precision.HIGHEST) + b)
    phi = jnp.matmul(h, w_out.T, precision=jax.lax.Precision.HIGHEST).reshape(3, nx, ny, nz)
    phi_perm = jnp.transpose(phi, (1, 2, 3, 0))                  # (nx, ny, nz, 3)

    pts = jnp.reshape(positions, (-1, 3)).astype(jnp.float32)
    x, y, z = pts[:, 0], pts[:, 1], pts[:, 2]
    u = (x - origin[0] - spacing[0]) / spacing[0]
    v = (y - origin[1] - spacing[1]) / spacing[1]
    w_ = (z - origin[2] - spacing[2]) / spacing[2]
    ix = jnp.floor(u).astype(jnp.int32)
    iy = jnp.floor(v).astype(jnp.int32)
    iz = jnp.floor(w_).astype(jnp.int32)
    bad = ((ix < 0) | (ix > nx - 4) | (iy < 0) | (iy > ny - 4) | (iz < 0) | (iz > nz - 4))
    u = u - jnp.floor(u)
    v = v - jnp.floor(v)
    w_ = w_ - jnp.floor(w_)

    disp = jnp.zeros_like(pts)
    for l in range(4):
        ixl = jnp.clip(ix + l, 0, nx - 1)
        bu = _bspline_w_ref(u, l)
        for m in range(4):
            iyl = jnp.clip(iy + m, 0, ny - 1)
            bv = _bspline_w_ref(v, m)
            for q in range(4):
                izl = jnp.clip(iz + q, 0, nz - 1)
                bw = _bspline_w_ref(w_, q)
                disp = disp + (bu * bv * bw)[:, None] * phi_perm[ixl, iyl, izl, :]
    if not support_outside:
        disp = jnp.where(bad[:, None], jnp.nan, disp)
    return (pts + disp).reshape(positions.shape)


if __name__ == "__main__":
    key = jax.random.PRNGKey(0)
    k_pos, k_t, k_p = jax.random.split(key, 3)

    grid_size = (4, 5, 6)                  # (nx, ny, nz) control points, each > 3
    depth, width = 3, 16                   # NeuralPhiX(3 * prod(grid), depth=3, width=16)
    ncp = 3 * int(np.prod(grid_size))      # 360

    positions = jax.random.uniform(k_pos, (2, 1024, 3), jnp.float32, -1.2, 1.2)
    t0 = jax.random.uniform(k_t, (), jnp.float32, 0.0, 1.0)
    times = jnp.full((2, 1024, 1), t0, jnp.float32)    # single unique time (module contract)

    ws, bs, w_out = init_neural_phi_params(k_p, ncp, depth=depth, width=width)
    packed = pack_neural_phi_params(ws, bs, w_out)

    out = bspline_temporal_deformation_forward(
        positions, times, packed, grid_size=grid_size, width=width, depth=depth,
        support_outside=False, tile_points=1024)
    out = jax.block_until_ready(out)

    ref = reference_forward(positions, times, ws, bs, w_out, grid_size, support_outside=False)

    assert out.shape == positions.shape
    both_nan = jnp.isnan(out) & jnp.isnan(ref)
    ok = jnp.isclose(out, ref, atol=3e-5, rtol=1e-5) | both_nan
    assert bool(jnp.all(ok)), "mismatch vs pure-JAX reference"
    # points outside the spline support must be NaN, points inside must be finite
    assert bool(jnp.any(jnp.isnan(out))) and not bool(jnp.all(jnp.isnan(out)))
    print("KERNEL_OK")
</pallas_src>

<mosaic_0001>
module attributes {stable_mosaic.version = 11 : i64} {
  func.func @_neural_phi_kernel(%arg0: i32, %arg1: memref<1x128xf32, #tpu.memory_space<vmem>>, %arg2: memref<408x16xf32, #tpu.memory_space<vmem>>, %arg3: memref<360x128xf32, #tpu.memory_space<vmem>>) attributes {dimension_semantics = [#tpu.dimension_semantics<parallel>], iteration_bounds = array<i64: 1>, scalar_prefetch = 0 : i64, scratch_operands = 0 : i64, tpu.core_type = #tpu.core_type<tc>, window_params = [{transform_indices = @transform_0, window_bounds = array<i64: 1, 128>}, {pipeline_mode = #tpu.pipeline_mode<synchronous>, transform_indices = @transform_1, window_bounds = array<i64: 408, 16>}, {transform_indices = @transform_2, window_bounds = array<i64: 360, 128>}]} {
    %c0 = arith.constant 0 : index
    %c0_0 = arith.constant 0 : index
    %0 = vector.load %arg1[%c0, %c0_0] : memref<1x128xf32, #tpu.memory_space<vmem>>, vector<1x128xf32>
    %c392 = arith.constant 392 : index
    %c0_1 = arith.constant 0 : index
    %1 = vector.load %arg2[%c392, %c0_1] : memref<408x16xf32, #tpu.memory_space<vmem>>, vector<16x16xf32>
    %2 = vector.extract_strided_slice %1 {offsets = [0, 0], sizes = [16, 1], strides = [1, 1]} : vector<16x16xf32> to vector<16x1xf32>
    %3 = vector.broadcast %2 : vector<16x1xf32> to vector<16x128xf32>
    %4 = vector.broadcast %0 : vector<1x128xf32> to vector<16x128xf32>
    %5 = arith.mulf %3, %4 : vector<16x128xf32>
    %6 = vector.extract_strided_slice %1 {offsets = [0, 1], sizes = [16, 1], strides = [1, 1]} : vector<16x16xf32> to vector<16x1xf32>
    %7 = vector.broadcast %6 : vector<16x1xf32> to vector<16x128xf32>
    %8 = arith.addf %5, %7 : vector<16x128xf32>
    %cst = arith.constant 0.000000e+00 : f32
    %9 = vector.broadcast %cst : f32 to vector<16x128xf32>
    %10 = arith.cmpf ogt, %8, %9 : vector<16x128xf32>
    %11 = math.exp %8 : vector<16x128xf32>
    %cst_2 = arith.constant 1.000000e+00 : f32
    %12 = vector.broadcast %cst_2 : f32 to vector<16x128xf32>
    %13 = arith.subf %11, %12 : vector<16x128xf32>
    %cst_3 = arith.constant 1.67326319 : f32
    %14 = vector.broadcast %cst_3 : f32 to vector<16x128xf32>
    %15 = arith.mulf %14, %13 : vector<16x128xf32>
    %16 = arith.select %10, %8, %15 : vector<16x128xi1>, vector<16x128xf32>
    %cst_4 = arith.constant 1.05070102 : f32
    %17 = vector.broadcast %cst_4 : f32 to vector<16x128xf32>
    %18 = arith.mulf %17, %16 : vector<16x128xf32>
    %c360 = arith.constant 360 : index
    %c0_5 = arith.constant 0 : index
    %19 = vector.load %arg2[%c360, %c0_5] : memref<408x16xf32, #tpu.memory_space<vmem>>, vector<16x16xf32>
    %20 = vector.extract_strided_slice %19 {offsets = [0, 0], sizes = [16, 1], strides = [1, 1]} : vector<16x16xf32> to vector<16x1xf32>
    %21 = vector.extract_strided_slice %18 {offsets = [0, 0], sizes = [1, 128], strides = [1, 1]} : vector<16x128xf32> to vector<1x128xf32>
    %22 = vector.broadcast %20 : vector<16x1xf32> to vector<16x128xf32>
    %23 = vector.broadcast %21 : vector<1x128xf32> to vector<16x128xf32>
    %24 = arith.mulf %22, %23 : vector<16x128xf32>
    %25 = vector.extract_strided_slice %19 {offsets = [0, 1], sizes = [16, 1], strides = [1, 1]} : vector<16x16xf32> to vector<16x1xf32>
    %26 = vector.extract_strided_slice %18 {offsets = [1, 0], sizes = [1, 128], strides = [1, 1]} : vector<16x128xf32> to vector<1x128xf32>
    %27 = vector.broadcast %25 : vector<16x1xf32> to vector<16x128xf32>
    %28 = vector.broadcast %26 : vector<1x128xf32> to vector<16x128xf32>
    %29 = arith.mulf %27, %28 : vector<16x128xf32>
    %30 = arith.addf %24, %29 : vector<16x128xf32>
    %31 = vector.extract_strided_slice %19 {offsets = [0, 2], sizes = [16, 1], strides = [1, 1]} : vector<16x16xf32> to vector<16x1xf32>
    %32 = vector.extract_strided_slice %18 {offsets = [2, 0], sizes = [1, 128], strides = [1, 1]} : vector<16x128xf32> to vector<1x128xf32>
    %33 = vector.broadcast %31 : vector<16x1xf32> to vector<16x128xf32>
    %34 = vector.broadcast %32 : vector<1x128xf32> to vector<16x128xf32>
    %35 = arith.mulf %33, %34 : vector<16x128xf32>
    %36 = arith.addf %30, %35 : vector<16x128xf32>
    %37 = vector.extract_strided_slice %19 {offsets = [0, 3], sizes = [16, 1], strides = [1, 1]} : vector<16x16xf32> to vector<16x1xf32>
    %38 = vector.extract_strided_slice %18 {offsets = [3, 0], sizes = [1, 128], strides = [1, 1]} : vector<16x128xf32> to vector<1x128xf32>
    %39 = vector.broadcast %37 : vector<16x1xf32> to vector<16x128xf32>
    %40 = vector.broadcast %38 : vector<1x128xf32> to vector<16x128xf32>
    %41 = arith.mulf %39, %40 : vector<16x128xf32>
    %42 = arith.addf %36, %41 : vector<16x128xf32>
    %43 = vector.extract_strided_slice %19 {offsets = [0, 4], sizes = [16, 1], strides = [1, 1]} : vector<16x16xf32> to vector<16x1xf32>
    %44 = vector.extract_strided_slice %18 {offsets = [4, 0], sizes = [1, 128], strides = [1, 1]} : vector<16x128xf32> to vector<1x128xf32>
    %45 = vector.broadcast %43 : vector<16x1xf32> to vector<16x128xf32>
    %46 = vector.broadcast %44 : vector<1x128xf32> to vector<16x128xf32>
    %47 = arith.mulf %45, %46 : vector<16x128xf32>
    %48 = arith.addf %42, %47 : vector<16x128xf32>
    %49 = vector.extract_strided_slice %19 {offsets = [0, 5], sizes = [16, 1], strides = [1, 1]} : vector<16x16xf32> to vector<16x1xf32>
    %50 = vector.extract_strided_slice %18 {offsets = [5, 0], sizes = [1, 128], strides = [1, 1]} : vector<16x128xf32> to vector<1x128xf32>
    %51 = vector.broadcast %49 : vector<16x1xf32> to vector<16x128xf32>
    %52 = vector.broadcast %50 : vector<1x128xf32> to vector<16x128xf32>
    %53 = arith.mulf %51, %52 : vector<16x128xf32>
    %54 = arith.addf %48, %53 : vector<16x128xf32>
    %55 = vector.extract_strided_slice %19 {offsets = [0, 6], sizes = [16, 1], strides = [1, 1]} : vector<16x16xf32> to vector<16x1xf32>
    %56 = vector.extract_strided_slice %18 {offsets = [6, 0], sizes = [1, 128], strides = [1, 1]} : vector<16x128xf32> to vector<1x128xf32>
    %57 = vector.broadcast %55 : vector<16x1xf32> to vector<16x128xf32>
    %58 = vector.broadcast %56 : vector<1x128xf32> to vector<16x128xf32>
    %59 = arith.mulf %57, %58 : vector<16x128xf32>
    %60 = arith.addf %54, %59 : vector<16x128xf32>
    %61 = vector.extract_strided_slice %19 {offsets = [0, 7], sizes = [16, 1], strides = [1, 1]} : vector<16x16xf32> to vector<16x1xf32>
    %62 = vector.extract_strided_slice %18 {offsets = [7, 0], sizes = [1, 128], strides = [1, 1]} : vector<16x128xf32> to vector<1x128xf32>
    %63 = vector.broadcast %61 : vector<16x1xf32> to vector<16x128xf32>
    %64 = vector.broadcast %62 : vector<1x128xf32> to vector<16x128xf32>
    %65 = arith.mulf %63, %64 : vector<16x128xf32>
    %66 = arith.addf %60, %65 : vector<16x128xf32>
    %67 = vector.extract_strided_slice %19 {offsets = [0, 8], sizes = [16, 1], strides = [1, 1]} : vector<16x16xf32> to vector<16x1xf32>
    %68 = vector.extract_strided_slice %18 {offsets = [8, 0], sizes = [1, 128], strides = [1, 1]} : vector<16x128xf32> to vector<1x128xf32>
    %69 = vector.broadcast %67 : vector<16x1xf32> to vector<16x128xf32>
    %70 = vector.broadcast %68 : vector<1x128xf32> to vector<16x128xf32>
    %71 = arith.mulf %69, %70 : vector<16x128xf32>
    %72 = arith.addf %66, %71 : vector<16x128xf32>
    %73 = vector.extract_strided_slice %19 {offsets = [0, 9], sizes = [16, 1], strides = [1, 1]} : vector<16x16xf32> to vector<16x1xf32>
    %74 = vector.extract_strided_slice %18 {offsets = [9, 0], sizes = [1, 128], strides = [1, 1]} : vector<16x128xf32> to vector<1x128xf32>
    %75 = vector.broadcast %73 : vector<16x1xf32> to vector<16x128xf32>
    %76 = vector.broadcast %74 : vector<1x128xf32> to vector<16x128xf32>
    %77 = arith.mulf %75, %76 : vector<16x128xf32>
    %78 = arith.addf %72, %77 : vector<16x128xf32>
    %79 = vector.extract_strided_slice %19 {offsets = [0, 10], sizes = [16, 1], strides = [1, 1]} : vector<16x16xf32> to vector<16x1xf32>
    %80 = vector.extract_strided_slice %18 {offsets = [10, 0], sizes = [1, 128], strides = [1, 1]} : vector<16x128xf32> to vector<1x128xf32>
    %81 = vector.broadcast %79 : vector<16x1xf32> to vector<16x128xf32>
    %82 = vector.broadcast %80 : vector<1x128xf32> to vector<16x128xf32>
    %83 = arith.mulf %81, %82 : vector<16x128xf32>
    %84 = arith.addf %78, %83 : vector<16x128xf32>
    %85 = vector.extract_strided_slice %19 {offsets = [0, 11], sizes = [16, 1], strides = [1, 1]} : vector<16x16xf32> to vector<16x1xf32>
    %86 = vector.extract_strided_slice %18 {offsets = [11, 0], sizes = [1, 128], strides = [1, 1]} : vector<16x128xf32> to vector<1x128xf32>
    %87 = vector.broadcast %85 : vector<16x1xf32> to vector<16x128xf32>
    %88 = vector.broadcast %86 : vector<1x128xf32> to vector<16x128xf32>
    %89 = arith.mulf %87, %88 : vector<16x128xf32>
    %90 = arith.addf %84, %89 : vector<16x128xf32>
    %91 = vector.extract_strided_slice %19 {offsets = [0, 12], sizes = [16, 1], strides = [1, 1]} : vector<16x16xf32> to vector<16x1xf32>
    %92 = vector.extract_strided_slice %18 {offsets = [12, 0], sizes = [1, 128], strides = [1, 1]} : vector<16x128xf32> to vector<1x128xf32>
    %93 = vector.broadcast %91 : vector<16x1xf32> to vector<16x128xf32>
    %94 = vector.broadcast %92 : vector<1x128xf32> to vector<16x128xf32>
    %95 = arith.mulf %93, %94 : vector<16x128xf32>
    %96 = arith.addf %90, %95 : vector<16x128xf32>
    %97 = vector.extract_strided_slice %19 {offsets = [0, 13], sizes = [16, 1], strides = [1, 1]} : vector<16x16xf32> to vector<16x1xf32>
    %98 = vector.extract_strided_slice %18 {offsets = [13, 0], sizes = [1, 128], strides = [1, 1]} : vector<16x128xf32> to vector<1x128xf32>
    %99 = vector.broadcast %97 : vector<16x1xf32> to vector<16x128xf32>
    %100 = vector.broadcast %98 : vector<1x128xf32> to vector<16x128xf32>
    %101 = arith.mulf %99, %100 : vector<16x128xf32>
    %102 = arith.addf %96, %101 : vector<16x128xf32>
    %103 = vector.extract_strided_slice %19 {offsets = [0, 14], sizes = [16, 1], strides = [1, 1]} : vector<16x16xf32> to vector<16x1xf32>
    %104 = vector.extract_strided_slice %18 {offsets = [14, 0], sizes = [1, 128], strides = [1, 1]} : vector<16x128xf32> to vector<1x128xf32>
    %105 = vector.broadcast %103 : vector<16x1xf32> to vector<16x128xf32>
    %106 = vector.broadcast %104 : vector<1x128xf32> to vector<16x128xf32>
    %107 = arith.mulf %105, %106 : vector<16x128xf32>
    %108 = arith.addf %102, %107 : vector<16x128xf32>
    %109 = vector.extract_strided_slice %19 {offsets = [0, 15], sizes = [16, 1], strides = [1, 1]} : vector<16x16xf32> to vector<16x1xf32>
    %110 = vector.extract_strided_slice %18 {offsets = [15, 0], sizes = [1, 128], strides = [1, 1]} : vector<16x128xf32> to vector<1x128xf32>
    %111 = vector.broadcast %109 : vector<16x1xf32> to vector<16x128xf32>
    %112 = vector.broadcast %110 : vector<1x128xf32> to vector<16x128xf32>
    %113 = arith.mulf %111, %112 : vector<16x128xf32>
    %114 = arith.addf %108, %113 : vector<16x128xf32>
    %115 = vector.extract_strided_slice %1 {offsets = [0, 2], sizes = [16, 1], strides = [1, 1]} : vector<16x16xf32> to vector<16x1xf32>
    %116 = vector.broadcast %115 : vector<16x1xf32> to vector<16x128xf32>
    %117 = arith.addf %114, %116 : vector<16x128xf32>
    %cst_6 = arith.constant 0.000000e+00 : f32
    %118 = vector.broadcast %cst_6 : f32 to vector<16x128xf32>
    %119 = arith.cmpf ogt, %117, %118 : vector<16x128xf32>
    %120 = math.exp %117 : vector<16x128xf32>
    %cst_7 = arith.constant 1.000000e+00 : f32
    %121 = vector.broadcast %cst_7 : f32 to vector<16x128xf32>
    %122 = arith.subf %120, %121 : vector<16x128xf32>
    %cst_8 = arith.constant 1.67326319 : f32
    %123 = vector.broadcast %cst_8 : f32 to vector<16x128xf32>
    %124 = arith.mulf %123, %122 : vector<16x128xf32>
    %125 = arith.select %119, %117, %124 : vector<16x128xi1>, vector<16x128xf32>
    %cst_9 = arith.constant 1.05070102 : f32
    %126 = vector.broadcast %cst_9 : f32 to vector<16x128xf32>
    %127 = arith.mulf %126, %125 : vector<16x128xf32>
    %c376 = arith.constant 376 : index
    %c0_10 = arith.constant 0 : index
    %128 = vector.load %arg2[%c376, %c0_10] : memref<408x16xf32, #tpu.memory_space<vmem>>, vector<16x16xf32>
    %129 = vector.extract_strided_slice %128 {offsets = [0, 0], sizes = [16, 1], strides = [1, 1]} : vector<16x16xf32> to vector<16x1xf32>
    %130 = vector.extract_strided_slice %127 {offsets = [0, 0], sizes = [1, 128], strides = [1, 1]} : vector<16x128xf32> to vector<1x128xf32>
    %131 = vector.broadcast %129 : vector<16x1xf32> to vector<16x128xf32>
    %132 = vector.broadcast %130 : vector<1x128xf32> to vector<16x128xf32>
    %133 = arith.mulf %131, %132 : vector<16x128xf32>
    %134 = vector.extract_strided_slice %128 {offsets = [0, 1], sizes = [16, 1], strides = [1, 1]} : vector<16x16xf32> to vector<16x1xf32>
    %135 = vector.extract_strided_slice %127 {offsets = [1, 0], sizes = [1, 128], strides = [1, 1]} : vector<16x128xf32> to vector<1x128xf32>
    %136 = vector.broadcast %134 : vector<16x1xf32> to vector<16x128xf32>
    %137 = vector.broadcast %135 : vector<1x128xf32> to vector<16x128xf32>
    %138 = arith.mulf %136, %137 : vector<16x128xf32>
    %139 = arith.addf %133, %138 : vector<16x128xf32>
    %140 = vector.extract_strided_slice %128 {offsets = [0, 2], sizes = [16, 1], strides = [1, 1]} : vector<16x16xf32> to vector<16x1xf32>
    %141 = vector.extract_strided_slice %127 {offsets = [2, 0], sizes = [1, 128], strides = [1, 1]} : vector<16x128xf32> to vector<1x128xf32>
    %142 = vector.broadcast %140 : vector<16x1xf32> to vector<16x128xf32>
    %143 = vector.broadcast %141 : vector<1x128xf32> to vector<16x128xf32>
    %144 = arith.mulf %142, %143 : vector<16x128xf32>
    %145 = arith.addf %139, %144 : vector<16x128xf32>
    %146 = vector.extract_strided_slice %128 {offsets = [0, 3], sizes = [16, 1], strides = [1, 1]} : vector<16x16xf32> to vector<16x1xf32>
    %147 = vector.extract_strided_slice %127 {offsets = [3, 0], sizes = [1, 128], strides = [1, 1]} : vector<16x128xf32> to vector<1x128xf32>
    %148 = vector.broadcast %146 : vector<16x1xf32> to vector<16x128xf32>
    %149 = vector.broadcast %147 : vector<1x128xf32> to vector<16x128xf32>
    %150 = arith.mulf %148, %149 : vector<16x128xf32>
    %151 = arith.addf %145, %150 : vector<16x128xf32>
    %152 = vector.extract_strided_slice %128 {offsets = [0, 4], sizes = [16, 1], strides = [1, 1]} : vector<16x16xf32> to vector<16x1xf32>
    %153 = vector.extract_strided_slice %127 {offsets = [4, 0], sizes = [1, 128], strides = [1, 1]} : vector<16x128xf32> to vector<1x128xf32>
    %154 = vector.broadcast %152 : vector<16x1xf32> to vector<16x128xf32>
    %155 = vector.broadcast %153 : vector<1x128xf32> to vector<16x128xf32>
    %156 = arith.mulf %154, %155 : vector<16x128xf32>
    %157 = arith.addf %151, %156 : vector<16x128xf32>
    %158 = vector.extract_strided_slice %128 {offsets = [0, 5], sizes = [16, 1], strides = [1, 1]} : vector<16x16xf32> to vector<16x1xf32>
    %159 = vector.extract_strided_slice %127 {offsets = [5, 0], sizes = [1, 128], strides = [1, 1]} : vector<16x128xf32> to vector<1x128xf32>
    %160 = vector.broadcast %158 : vector<16x1xf32> to vector<16x128xf32>
    %161 = vector.broadcast %159 : vector<1x128xf32> to vector<16x128xf32>
    %162 = arith.mulf %160, %161 : vector<16x128xf32>
    %163 = arith.addf %157, %162 : vector<16x128xf32>
    %164 = vector.extract_strided_slice %128 {offsets = [0, 6], sizes = [16, 1], strides = [1, 1]} : vector<16x16xf32> to vector<16x1xf32>
    %165 = vector.extract_strided_slice %127 {offsets = [6, 0], sizes = [1, 128], strides = [1, 1]} : vector<16x128xf32> to vector<1x128xf32>
    %166 = vector.broadcast %164 : vector<16x1xf32> to vector<16x128xf32>
    %167 = vector.broadcast %165 : vector<1x128xf32> to vector<16x128xf32>
    %168 = arith.mulf %166, %167 : vector<16x128xf32>
    %169 = arith.addf %163, %168 : vector<16x128xf32>
    %170 = vector.extract_strided_slice %128 {offsets = [0, 7], sizes = [16, 1], strides = [1, 1]} : vector<16x16xf32> to vector<16x1xf32>
    %171 = vector.extract_strided_slice %127 {offsets = [7, 0], sizes = [1, 128], strides = [1, 1]} : vector<16x128xf32> to vector<1x128xf32>
    %172 = vector.broadcast %170 : vector<16x1xf32> to vector<16x128xf32>
    %173 = vector.broadcast %171 : vector<1x128xf32> to vector<16x128xf32>
    %174 = arith.mulf %172, %173 : vector<16x128xf32>
    %175 = arith.addf %169, %174 : vector<16x128xf32>
    %176 = vector.extract_strided_slice %128 {offsets = [0, 8], sizes = [16, 1], strides = [1, 1]} : vector<16x16xf32> to vector<16x1xf32>
    %177 = vector.extract_strided_slice %127 {offsets = [8, 0], sizes = [1, 128], strides = [1, 1]} : vector<16x128xf32> to vector<1x128xf32>
    %178 = vector.broadcast %176 : vector<16x1xf32> to vector<16x128xf32>
    %179 = vector.broadcast %177 : vector<1x128xf32> to vector<16x128xf32>
    %180 = arith.mulf %178, %179 : vector<16x128xf32>
    %181 = arith.addf %175, %180 : vector<16x128xf32>
    %182 = vector.extract_strided_slice %128 {offsets = [0, 9], sizes = [16, 1], strides = [1, 1]} : vector<16x16xf32> to vector<16x1xf32>
    %183 = vector.extract_strided_slice %127 {offsets = [9, 0], sizes = [1, 128], strides = [1, 1]} : vector<16x128xf32> to vector<1x128xf32>
    %184 = vector.broadcast %182 : vector<16x1xf32> to vector<16x128xf32>
    %185 = vector.broadcast %183 : vector<1x128xf32> to vector<16x128xf32>
    %186 = arith.mulf %184, %185 : vector<16x128xf32>
    %187 = arith.addf %181, %186 : vector<16x128xf32>
    %188 = vector.extract_strided_slice %128 {offsets = [0, 10], sizes = [16, 1], strides = [1, 1]} : vector<16x16xf32> to vector<16x1xf32>
    %189 = vector.extract_strided_slice %127 {offsets = [10, 0], sizes = [1, 128], strides = [1, 1]} : vector<16x128xf32> to vector<1x128xf32>
    %190 = vector.broadcast %188 : vector<16x1xf32> to vector<16x128xf32>
    %191 = vector.broadcast %189 : vector<1x128xf32> to vector<16x128xf32>
    %192 = arith.mulf %190, %191 : vector<16x128xf32>
    %193 = arith.addf %187, %192 : vector<16x128xf32>
    %194 = vector.extract_strided_slice %128 {offsets = [0, 11], sizes = [16, 1], strides = [1, 1]} : vector<16x16xf32> to vector<16x1xf32>
    %195 = vector.extract_strided_slice %127 {offsets = [11, 0], sizes = [1, 128], strides = [1, 1]} : vector<16x128xf32> to vector<1x128xf32>
    %196 = vector.broadcast %194 : vector<16x1xf32> to vector<16x128xf32>
    %197 = vector.broadcast %195 : vector<1x128xf32> to vector<16x128xf32>
    %198 = arith.mulf %196, %197 : vector<16x128xf32>
    %199 = arith.addf %193, %198 : vector<16x128xf32>
    %200 = vector.extract_strided_slice %128 {offsets = [0, 12], sizes = [16, 1], strides = [1, 1]} : vector<16x16xf32> to vector<16x1xf32>
    %201 = vector.extract_strided_slice %127 {offsets = [12, 0], sizes = [1, 128], strides = [1, 1]} : vector<16x128xf32> to vector<1x128xf32>
    %202 = vector.broadcast %200 : vector<16x1xf32> to vector<16x128xf32>
    %203 = vector.broadcast %201 : vector<1x128xf32> to vector<16x128xf32>
    %204 = arith.mulf %202, %203 : vector<16x128xf32>
    %205 = arith.addf %199, %204 : vector<16x128xf32>
    %206 = vector.extract_strided_slice %128 {offsets = [0, 13], sizes = [16, 1], strides = [1, 1]} : vector<16x16xf32> to vector<16x1xf32>
    %207 = vector.extract_strided_slice %127 {offsets = [13, 0], sizes = [1, 128], strides = [1, 1]} : vector<16x128xf32> to vector<1x128xf32>
    %208 = vector.broadcast %206 : vector<16x1xf32> to vector<16x128xf32>
    %209 = vector.broadcast %207 : vector<1x128xf32> to vector<16x128xf32>
    %210 = arith.mulf %208, %209 : vector<16x128xf32>
    %211 = arith.addf %205, %210 : vector<16x128xf32>
    %212 = vector.extract_strided_slice %128 {offsets = [0, 14], sizes = [16, 1], strides = [1, 1]} : vector<16x16xf32> to vector<16x1xf32>
    %213 = vector.extract_strided_slice %127 {offsets = [14, 0], sizes = [1, 128], strides = [1, 1]} : vector<16x128xf32> to vector<1x128xf32>
    %214 = vector.broadcast %212 : vector<16x1xf32> to vector<16x128xf32>
    %215 = vector.broadcast %213 : vector<1x128xf32> to vector<16x128xf32>
    %216 = arith.mulf %214, %215 : vector<16x128xf32>
    %217 = arith.addf %211, %216 : vector<16x128xf32>
    %218 = vector.extract_strided_slice %128 {offsets = [0, 15], sizes = [16, 1], strides = [1, 1]} : vector<16x16xf32> to vector<16x1xf32>
    %219 = vector.extract_strided_slice %127 {offsets = [15, 0], sizes = [1, 128], strides = [1, 1]} : vector<16x128xf32> to vector<1x128xf32>
    %220 = vector.broadcast %218 : vector<16x1xf32> to vector<16x128xf32>
    %221 = vector.broadcast %219 : vector<1x128xf32> to vector<16x128xf32>
    %222 = arith.mulf %220, %221 : vector<16x128xf32>
    %223 = arith.addf %217, %222 : vector<16x128xf32>
    %224 = vector.extract_strided_slice %1 {offsets = [0, 3], sizes = [16, 1], strides = [1, 1]} : vector<16x16xf32> to vector<16x1xf32>
    %225 = vector.broadcast %224 : vector<16x1xf32> to vector<16x128xf32>
    %226 = arith.addf %223, %225 : vector<16x128xf32>
    %cst_11 = arith.constant 0.000000e+00 : f32
    %227 = vector.broadcast %cst_11 : f32 to vector<16x128xf32>
    %228 = arith.cmpf ogt, %226, %227 : vector<16x128xf32>
    %229 = math.exp %226 : vector<16x128xf32>
    %cst_12 = arith.constant 1.000000e+00 : f32
    %230 = vector.broadcast %cst_12 : f32 to vector<16x128xf32>
    %231 = arith.subf %229, %230 : vector<16x128xf32>
    %cst_13 = arith.constant 1.67326319 : f32
    %232 = vector.broadcast %cst_13 : f32 to vector<16x128xf32>
    %233 = arith.mulf %232, %231 : vector<16x128xf32>
    %234 = arith.select %228, %226, %233 : vector<16x128xi1>, vector<16x128xf32>
    %cst_14 = arith.constant 1.05070102 : f32
    %235 = vector.broadcast %cst_14 : f32 to vector<16x128xf32>
    %236 = arith.mulf %235, %234 : vector<16x128xf32>
    %c0_15 = arith.constant 0 : index
    %c0_16 = arith.constant 0 : index
    %237 = vector.load %arg2[%c0_15, %c0_16] : memref<408x16xf32, #tpu.memory_space<vmem>>, vector<40x16xf32>
    %238 = vector.extract_strided_slice %237 {offsets = [0, 0], sizes = [40, 1], strides = [1, 1]} : vector<40x16xf32> to vector<40x1xf32>
    %239 = vector.extract_strided_slice %236 {offsets = [0, 0], sizes = [1, 128], strides = [1, 1]} : vector<16x128xf32> to vector<1x128xf32>
    %240 = vector.broadcast %238 : vector<40x1xf32> to vector<40x128xf32>
    %241 = vector.broadcast %239 : vector<1x128xf32> to vector<40x128xf32>
    %242 = arith.mulf %240, %241 : vector<40x128xf32>
    %243 = vector.extract_strided_slice %237 {offsets = [0, 1], sizes = [40, 1], strides = [1, 1]} : vector<40x16xf32> to vector<40x1xf32>
    %244 = vector.extract_strided_slice %236 {offsets = [1, 0], sizes = [1, 128], strides = [1, 1]} : vector<16x128xf32> to vector<1x128xf32>
    %245 = vector.broadcast %243 : vector<40x1xf32> to vector<40x128xf32>
    %246 = vector.broadcast %244 : vector<1x128xf32> to vector<40x128xf32>
    %247 = arith.mulf %245, %246 : vector<40x128xf32>
    %248 = arith.addf %242, %247 : vector<40x128xf32>
    %249 = vector.extract_strided_slice %237 {offsets = [0, 2], sizes = [40, 1], strides = [1, 1]} : vector<40x16xf32> to vector<40x1xf32>
    %250 = vector.extract_strided_slice %236 {offsets = [2, 0], sizes = [1, 128], strides = [1, 1]} : vector<16x128xf32> to vector<1x128xf32>
    %251 = vector.broadcast %249 : vector<40x1xf32> to vector<40x128xf32>
    %252 = vector.broadcast %250 : vector<1x128xf32> to vector<40x128xf32>
    %253 = arith.mulf %251, %252 : vector<40x128xf32>
    %254 = arith.addf %248, %253 : vector<40x128xf32>
    %255 = vector.extract_strided_slice %237 {offsets = [0, 3], sizes = [40, 1], strides = [1, 1]} : vector<40x16xf32> to vector<40x1xf32>
    %256 = vector.extract_strided_slice %236 {offsets = [3, 0], sizes = [1, 128], strides = [1, 1]} : vector<16x128xf32> to vector<1x128xf32>
    %257 = vector.broadcast %255 : vector<40x1xf32> to vector<40x128xf32>
    %258 = vector.broadcast %256 : vector<1x128xf32> to vector<40x128xf32>
    %259 = arith.mulf %257, %258 : vector<40x128xf32>
    %260 = arith.addf %254, %259 : vector<40x128xf32>
    %261 = vector.extract_strided_slice %237 {offsets = [0, 4], sizes = [40, 1], strides = [1, 1]} : vector<40x16xf32> to vector<40x1xf32>
    %262 = vector.extract_strided_slice %236 {offsets = [4, 0], sizes = [1, 128], strides = [1, 1]} : vector<16x128xf32> to vector<1x128xf32>
    %263 = vector.broadcast %261 : vector<40x1xf32> to vector<40x128xf32>
    %264 = vector.broadcast %262 : vector<1x128xf32> to vector<40x128xf32>
    %265 = arith.mulf %263, %264 : vector<40x128xf32>
    %266 = arith.addf %260, %265 : vector<40x128xf32>
    %267 = vector.extract_strided_slice %237 {offsets = [0, 5], sizes = [40, 1], strides = [1, 1]} : vector<40x16xf32> to vector<40x1xf32>
    %268 = vector.extract_strided_slice %236 {offsets = [5, 0], sizes = [1, 128], strides = [1, 1]} : vector<16x128xf32> to vector<1x128xf32>
    %269 = vector.broadcast %267 : vector<40x1xf32> to vector<40x128xf32>
    %270 = vector.broadcast %268 : vector<1x128xf32> to vector<40x128xf32>
    %271 = arith.mulf %269, %270 : vector<40x128xf32>
    %272 = arith.addf %266, %271 : vector<40x128xf32>
    %273 = vector.extract_strided_slice %237 {offsets = [0, 6], sizes = [40, 1], strides = [1, 1]} : vector<40x16xf32> to vector<40x1xf32>
    %274 = vector.extract_strided_slice %236 {offsets = [6, 0], sizes = [1, 128], strides = [1, 1]} : vector<16x128xf32> to vector<1x128xf32>
    %275 = vector.broadcast %273 : vector<40x1xf32> to vector<40x128xf32>
    %276 = vector.broadcast %274 : vector<1x128xf32> to vector<40x128xf32>
    %277 = arith.mulf %275, %276 : vector<40x128xf32>
    %278 = arith.addf %272, %277 : vector<40x128xf32>
    %279 = vector.extract_strided_slice %237 {offsets = [0, 7], sizes = [40, 1], strides = [1, 1]} : vector<40x16xf32> to vector<40x1xf32>
    %280 = vector.extract_strided_slice %236 {offsets = [7, 0], sizes = [1, 128], strides = [1, 1]} : vector<16x128xf32> to vector<1x128xf32>
    %281 = vector.broadcast %279 : vector<40x1xf32> to vector<40x128xf32>
    %282 = vector.broadcast %280 : vector<1x128xf32> to vector<40x128xf32>
    %283 = arith.mulf %281, %282 : vector<40x128xf32>
    %284 = arith.addf %278, %283 : vector<40x128xf32>
    %285 = vector.extract_strided_slice %237 {offsets = [0, 8], sizes = [40, 1], strides = [1, 1]} : vector<40x16xf32> to vector<40x1xf32>
    %286 = vector.extract_strided_slice %236 {offsets = [8, 0], sizes = [1, 128], strides = [1, 1]} : vector<16x128xf32> to vector<1x128xf32>
    %287 = vector.broadcast %285 : vector<40x1xf32> to vector<40x128xf32>
    %288 = vector.broadcast %286 : vector<1x128xf32> to vector<40x128xf32>
    %289 = arith.mulf %287, %288 : vector<40x128xf32>
    %290 = arith.addf %284, %289 : vector<40x128xf32>
    %291 = vector.extract_strided_slice %237 {offsets = [0, 9], sizes = [40, 1], strides = [1, 1]} : vector<40x16xf32> to vector<40x1xf32>
    %292 = vector.extract_strided_slice %236 {offsets = [9, 0], sizes = [1, 128], strides = [1, 1]} : vector<16x128xf32> to vector<1x128xf32>
    %293 = vector.broadcast %291 : vector<40x1xf32> to vector<40x128xf32>
    %294 = vector.broadcast %292 : vector<1x128xf32> to vector<40x128xf32>
    %295 = arith.mulf %293, %294 : vector<40x128xf32>
    %296 = arith.addf %290, %295 : vector<40x128xf32>
    %297 = vector.extract_strided_slice %237 {offsets = [0, 10], sizes = [40, 1], strides = [1, 1]} : vector<40x16xf32> to vector<40x1xf32>
    %298 = vector.extract_strided_slice %236 {offsets = [10, 0], sizes = [1, 128], strides = [1, 1]} : vector<16x128xf32> to vector<1x128xf32>
    %299 = vector.broadcast %297 : vector<40x1xf32> to vector<40x128xf32>
    %300 = vector.broadcast %298 : vector<1x128xf32> to vector<40x128xf32>
    %301 = arith.mulf %299, %300 : vector<40x128xf32>
    %302 = arith.addf %296, %301 : vector<40x128xf32>
    %303 = vector.extract_strided_slice %237 {offsets = [0, 11], sizes = [40, 1], strides = [1, 1]} : vector<40x16xf32> to vector<40x1xf32>
    %304 = vector.extract_strided_slice %236 {offsets = [11, 0], sizes = [1, 128], strides = [1, 1]} : vector<16x128xf32> to vector<1x128xf32>
    %305 = vector.broadcast %303 : vector<40x1xf32> to vector<40x128xf32>
    %306 = vector.broadcast %304 : vector<1x128xf32> to vector<40x128xf32>
    %307 = arith.mulf %305, %306 : vector<40x128xf32>
    %308 = arith.addf %302, %307 : vector<40x128xf32>
    %309 = vector.extract_strided_slice %237 {offsets = [0, 12], sizes = [40, 1], strides = [1, 1]} : vector<40x16xf32> to vector<40x1xf32>
    %310 = vector.extract_strided_slice %236 {offsets = [12, 0], sizes = [1, 128], strides = [1, 1]} : vector<16x128xf32> to vector<1x128xf32>
    %311 = vector.broadcast %309 : vector<40x1xf32> to vector<40x128xf32>
    %312 = vector.broadcast %310 : vector<1x128xf32> to vector<40x128xf32>
    %313 = arith.mulf %311, %312 : vector<40x128xf32>
    %314 = arith.addf %308, %313 : vector<40x128xf32>
    %315 = vector.extract_strided_slice %237 {offsets = [0, 13], sizes = [40, 1], strides = [1, 1]} : vector<40x16xf32> to vector<40x1xf32>
    %316 = vector.extract_strided_slice %236 {offsets = [13, 0], sizes = [1, 128], strides = [1, 1]} : vector<16x128xf32> to vector<1x128xf32>
    %317 = vector.broadcast %315 : vector<40x1xf32> to vector<40x128xf32>
    %318 = vector.broadcast %316 : vector<1x128xf32> to vector<40x128xf32>
    %319 = arith.mulf %317, %318 : vector<40x128xf32>
    %320 = arith.addf %314, %319 : vector<40x128xf32>
    %321 = vector.extract_strided_slice %237 {offsets = [0, 14], sizes = [40, 1], strides = [1, 1]} : vector<40x16xf32> to vector<40x1xf32>
    %322 = vector.extract_strided_slice %236 {offsets = [14, 0], sizes = [1, 128], strides = [1, 1]} : vector<16x128xf32> to vector<1x128xf32>
    %323 = vector.broadcast %321 : vector<40x1xf32> to vector<40x128xf32>
    %324 = vector.broadcast %322 : vector<1x128xf32> to vector<40x128xf32>
    %325 = arith.mulf %323, %324 : vector<40x128xf32>
    %326 = arith.addf %320, %325 : vector<40x128xf32>
    %327 = vector.extract_strided_slice %237 {offsets = [0, 15], sizes = [40, 1], strides = [1, 1]} : vector<40x16xf32> to vector<40x1xf32>
    %328 = vector.extract_strided_slice %236 {offsets = [15, 0], sizes = [1, 128], strides = [1, 1]} : vector<16x128xf32> to vector<1x128xf32>
    %329 = vector.broadcast %327 : vector<40x1xf32> to vector<40x128xf32>
    %330 = vector.broadcast %328 : vector<1x128xf32> to vector<40x128xf32>
    %331 = arith.mulf %329, %330 : vector<40x128xf32>
    %332 = arith.addf %326, %331 : vector<40x128xf32>
    %c0_17 = arith.constant 0 : index
    %c0_18 = arith.constant 0 : index
    %333 = vector.load %arg3[%c0_17, %c0_18] : memref<360x128xf32, #tpu.memory_space<vmem>>, vector<40x128xf32>
    tpu.vector_store %arg3[%c0_17, %c0_18], %332 {strides = array<i32>} : memref<360x128xf32, #tpu.memory_space<vmem>>, vector<40x128xf32>,
    %c40 = arith.constant 40 : index
    %c0_19 = arith.constant 0 : index
    %334 = vector.load %arg2[%c40, %c0_19] : memref<408x16xf32, #tpu.memory_space<vmem>>, vector<40x16xf32>
    %335 = vector.extract_strided_slice %334 {offsets = [0, 0], sizes = [40, 1], strides = [1, 1]} : vector<40x16xf32> to vector<40x1xf32>
    %336 = vector.extract_strided_slice %236 {offsets = [0, 0], sizes = [1, 128], strides = [1, 1]} : vector<16x128xf32> to vector<1x128xf32>
    %337 = vector.broadcast %335 : vector<40x1xf32> to vector<40x128xf32>
    %338 = vector.broadcast %336 : vector<1x128xf32> to vector<40x128xf32>
    %339 = arith.mulf %337, %338 : vector<40x128xf32>
    %340 = vector.extract_strided_slice %334 {offsets = [0, 1], sizes = [40, 1], strides = [1, 1]} : vector<40x16xf32> to vector<40x1xf32>
    %341 = vector.extract_strided_slice %236 {offsets = [1, 0], sizes = [1, 128], strides = [1, 1]} : vector<16x128xf32> to vector<1x128xf32>
    %342 = vector.broadcast %340 : vector<40x1xf32> to vector<40x128xf32>
    %343 = vector.broadcast %341 : vector<1x128xf32> to vector<40x128xf32>
    %344 = arith.mulf %342, %343 : vector<40x128xf32>
    %345 = arith.addf %339, %344 : vector<40x128xf32>
    %346 = vector.extract_strided_slice %334 {offsets = [0, 2], sizes = [40, 1], strides = [1, 1]} : vector<40x16xf32> to vector<40x1xf32>
    %347 = vector.extract_strided_slice %236 {offsets = [2, 0], sizes = [1, 128], strides = [1, 1]} : vector<16x128xf32> to vector<1x128xf32>
    %348 = vector.broadcast %346 : vector<40x1xf32> to vector<40x128xf32>
    %349 = vector.broadcast %347 : vector<1x128xf32> to vector<40x128xf32>
    %350 = arith.mulf %348, %349 : vector<40x128xf32>
    %351 = arith.addf %345, %350 : vector<40x128xf32>
    %352 = vector.extract_strided_slice %334 {offsets = [0, 3], sizes = [40, 1], strides = [1, 1]} : vector<40x16xf32> to vector<40x1xf32>
    %353 = vector.extract_strided_slice %236 {offsets = [3, 0], sizes = [1, 128], strides = [1, 1]} : vector<16x128xf32> to vector<1x128xf32>
    %354 = vector.broadcast %352 : vector<40x1xf32> to vector<40x128xf32>
    %355 = vector.broadcast %353 : vector<1x128xf32> to vector<40x128xf32>
    %356 = arith.mulf %354, %355 : vector<40x128xf32>
    %357 = arith.addf %351, %356 : vector<40x128xf32>
    %358 = vector.extract_strided_slice %334 {offsets = [0, 4], sizes = [40, 1], strides = [1, 1]} : vector<40x16xf32> to vector<40x1xf32>
    %359 = vector.extract_strided_slice %236 {offsets = [4, 0], sizes = [1, 128], strides = [1, 1]} : vector<16x128xf32> to vector<1x128xf32>
    %360 = vector.broadcast %358 : vector<40x1xf32> to vector<40x128xf32>
    %361 = vector.broadcast %359 : vector<1x128xf32> to vector<40x128xf32>
    %362 = arith.mulf %360, %361 : vector<40x128xf32>
    %363 = arith.addf %357, %362 : vector<40x128xf32>
    %364 = vector.extract_strided_slice %334 {offsets = [0, 5], sizes = [40, 1], strides = [1, 1]} : vector<40x16xf32> to vector<40x1xf32>
    %365 = vector.extract_strided_slice %236 {offsets = [5, 0], sizes = [1, 128], strides = [1, 1]} : vector<16x128xf32> to vector<1x128xf32>
    %366 = vector.broadcast %364 : vector<40x1xf32> to vector<40x128xf32>
    %367 = vector.broadcast %365 : vector<1x128xf32> to vector<40x128xf32>
    %368 = arith.mulf %366, %367 : vector<40x128xf32>
    %369 = arith.addf %363, %368 : vector<40x128xf32>
    %370 = vector.extract_strided_slice %334 {offsets = [0, 6], sizes = [40, 1], strides = [1, 1]} : vector<40x16xf32> to vector<40x1xf32>
    %371 = vector.extract_strided_slice %236 {offsets = [6, 0], sizes = [1, 128], strides = [1, 1]} : vector<16x128xf32> to vector<1x128xf32>
    %372 = vector.broadcast %370 : vector<40x1xf32> to vector<40x128xf32>
    %373 = vector.broadcast %371 : vector<1x128xf32> to vector<40x128xf32>
    %374 = arith.mulf %372, %373 : vector<40x128xf32>
    %375 = arith.addf %369, %374 : vector<40x128xf32>
    %376 = vector.extract_strided_slice %334 {offsets = [0, 7], sizes = [40, 1], strides = [1, 1]} : vector<40x16xf32> to vector<40x1xf32>
    %377 = vector.extract_strided_slice %236 {offsets = [7, 0], sizes = [1, 128], strides = [1, 1]} : vector<16x128xf32> to vector<1x128xf32>
    %378 = vector.broadcast %376 : vector<40x1xf32> to vector<40x128xf32>
    %379 = vector.broadcast %377 : vector<1x128xf32> to vector<40x128xf32>
    %380 = arith.mulf %378, %379 : vector<40x128xf32>
    %381 = arith.addf %375, %380 : vector<40x128xf32>
    %382 = vector.extract_strided_slice %334 {offsets = [0, 8], sizes = [40, 1], strides = [1, 1]} : vector<40x16xf32> to vector<40x1xf32>
    %383 = vector.extract_strided_slice %236 {offsets = [8, 0], sizes = [1, 128], strides = [1, 1]} : vector<16x128xf32> to vector<1x128xf32>
    %384 = vector.broadcast %382 : vector<40x1xf32> to vector<40x128xf32>
    %385 = vector.broadcast %383 : vector<1x128xf32> to vector<40x128xf32>
    %386 = arith.mulf %384, %385 : vector<40x128xf32>
    %387 = arith.addf %381, %386 : vector<40x128xf32>
    %388 = vector.extract_strided_slice %334 {offsets = [0, 9], sizes = [40, 1], strides = [1, 1]} : vector<40x16xf32> to vector<40x1xf32>
    %389 = vector.extract_strided_slice %236 {offsets = [9, 0], sizes = [1, 128], strides = [1, 1]} : vector<16x128xf32> to vector<1x128xf32>
    %390 = vector.broadcast %388 : vector<40x1xf32> to vector<40x128xf32>
    %391 = vector.broadcast %389 : vector<1x128xf32> to vector<40x128xf32>
    %392 = arith.mulf %390, %391 : vector<40x128xf32>
    %393 = arith.addf %387, %392 : vector<40x128xf32>
    %394 = vector.extract_strided_slice %334 {offsets = [0, 10], sizes = [40, 1], strides = [1, 1]} : vector<40x16xf32> to vector<40x1xf32>
    %395 = vector.extract_strided_slice %236 {offsets = [10, 0], sizes = [1, 128], strides = [1, 1]} : vector<16x128xf32> to vector<1x128xf32>
    %396 = vector.broadcast %394 : vector<40x1xf32> to vector<40x128xf32>
    %397 = vector.broadcast %395 : vector<1x128xf32> to vector<40x128xf32>
    %398 = arith.mulf %396, %397 : vector<40x128xf32>
    %399 = arith.addf %393, %398 : vector<40x128xf32>
    %400 = vector.extract_strided_slice %334 {offsets = [0, 11], sizes = [40, 1], strides = [1, 1]} : vector<40x16xf32> to vector<40x1xf32>
    %401 = vector.extract_strided_slice %236 {offsets = [11, 0], sizes = [1, 128], strides = [1, 1]} : vector<16x128xf32> to vector<1x128xf32>
    %402 = vector.broadcast %400 : vector<40x1xf32> to vector<40x128xf32>
    %403 = vector.broadcast %401 : vector<1x128xf32> to vector<40x128xf32>
    %404 = arith.mulf %402, %403 : vector<40x128xf32>
    %405 = arith.addf %399, %404 : vector<40x128xf32>
    %406 = vector.extract_strided_slice %334 {offsets = [0, 12], sizes = [40, 1], strides = [1, 1]} : vector<40x16xf32> to vector<40x1xf32>
    %407 = vector.extract_strided_slice %236 {offsets = [12, 0], sizes = [1, 128], strides = [1, 1]} : vector<16x128xf32> to vector<1x128xf32>
    %408 = vector.broadcast %406 : vector<40x1xf32> to vector<40x128xf32>
    %409 = vector.broadcast %407 : vector<1x128xf32> to vector<40x128xf32>
    %410 = arith.mulf %408, %409 : vector<40x128xf32>
    %411 = arith.addf %405, %410 : vector<40x128xf32>
    %412 = vector.extract_strided_slice %334 {offsets = [0, 13], sizes = [40, 1], strides = [1, 1]} : vector<40x16xf32> to vector<40x1xf32>
    %413 = vector.extract_strided_slice %236 {offsets = [13, 0], sizes = [1, 128], strides = [1, 1]} : vector<16x128xf32> to vector<1x128xf32>
    %414 = vector.broadcast %412 : vector<40x1xf32> to vector<40x128xf32>
    %415 = vector.broadcast %413 : vector<1x128xf32> to vector<40x128xf32>
    %416 = arith.mulf %414, %415 : vector<40x128xf32>
    %417 = arith.addf %411, %416 : vector<40x128xf32>
    %418 = vector.extract_strided_slice %334 {offsets = [0, 14], sizes = [40, 1], strides = [1, 1]} : vector<40x16xf32> to vector<40x1xf32>
    %419 = vector.extract_strided_slice %236 {offsets = [14, 0], sizes = [1, 128], strides = [1, 1]} : vector<16x128xf32> to vector<1x128xf32>
    %420 = vector.broadcast %418 : vector<40x1xf32> to vector<40x128xf32>
    %421 = vector.broadcast %419 : vector<1x128xf32> to vector<40x128xf32>
    %422 = arith.mulf %420, %421 : vector<40x128xf32>
    %423 = arith.addf %417, %422 : vector<40x128xf32>
    %424 = vector.extract_strided_slice %334 {offsets = [0, 15], sizes = [40, 1], strides = [1, 1]} : vector<40x16xf32> to vector<40x1xf32>
    %425 = vector.extract_strided_slice %236 {offsets = [15, 0], sizes = [1, 128], strides = [1, 1]} : vector<16x128xf32> to vector<1x128xf32>
    %426 = vector.broadcast %424 : vector<40x1xf32> to vector<40x128xf32>
    %427 = vector.broadcast %425 : vector<1x128xf32> to vector<40x128xf32>
    %428 = arith.mulf %426, %427 : vector<40x128xf32>
    %429 = arith.addf %423, %428 : vector<40x128xf32>
    %c40_20 = arith.constant 40 : index
    %c0_21 = arith.constant 0 : index
    %430 = vector.load %arg3[%c40_20, %c0_21] : memref<360x128xf32, #tpu.memory_space<vmem>>, vector<40x128xf32>
    tpu.vector_store %arg3[%c40_20, %c0_21], %429 {strides = array<i32>} : memref<360x128xf32, #tpu.memory_space<vmem>>, vector<40x128xf32>,
    %c80 = arith.constant 80 : index
    %c0_22 = arith.constant 0 : index
    %431 = vector.load %arg2[%c80, %c0_22] : memref<408x16xf32, #tpu.memory_space<vmem>>, vector<40x16xf32>
    %432 = vector.extract_strided_slice %431 {offsets = [0, 0], sizes = [40, 1], strides = [1, 1]} : vector<40x16xf32> to vector<40x1xf32>
    %433 = vector.extract_strided_slice %236 {offsets = [0, 0], sizes = [1, 128], strides = [1, 1]} : vector<16x128xf32> to vector<1x128xf32>
    %434 = vector.broadcast %432 : vector<40x1xf32> to vector<40x128xf32>
    %435 = vector.broadcast %433 : vector<1x128xf32> to vector<40x128xf32>
    %436 = arith.mulf %434, %435 : vector<40x128xf32>
    %437 = vector.extract_strided_slice %431 {offsets = [0, 1], sizes = [40, 1], strides = [1, 1]} : vector<40x16xf32> to vector<40x1xf32>
    %438 = vector.extract_strided_slice %236 {offsets = [1, 0], sizes = [1, 128], strides = [1, 1]} : vector<16x128xf32> to vector<1x128xf32>
    %439 = vector.broadcast %437 : vector<40x1xf32> to vector<40x128xf32>
    %440 = vector.broadcast %438 : vector<1x128xf32> to vector<40x128xf32>
    %441 = arith.mulf %439, %440 : vector<40x128xf32>
    %442 = arith.addf %436, %441 : vector<40x128xf32>
    %443 = vector.extract_strided_slice %431 {offsets = [0, 2], sizes = [40, 1], strides = [1, 1]} : vector<40x16xf32> to vector<40x1xf32>
    %444 = vector.extract_strided_slice %236 {offsets = [2, 0], sizes = [1, 128], strides = [1, 1]} : vector<16x128xf32> to vector<1x128xf32>
    %445 = vector.broadcast %443 : vector<40x1xf32> to vector<40x128xf32>
    %446 = vector.broadcast %444 : vector<1x128xf32> to vector<40x128xf32>
    %447 = arith.mulf %445, %446 : vector<40x128xf32>
    %448 = arith.addf %442, %447 : vector<40x128xf32>
    %449 = vector.extract_strided_slice %431 {offsets = [0, 3], sizes = [40, 1], strides = [1, 1]} : vector<40x16xf32> to vector<40x1xf32>
    %450 = vector.extract_strided_slice %236 {offsets = [3, 0], sizes = [1, 128], strides = [1, 1]} : vector<16x128xf32> to vector<1x128xf32>
    %451 = vector.broadcast %449 : vector<40x1xf32> to vector<40x128xf32>
    %452 = vector.broadcast %450 : vector<1x128xf32> to vector<40x128xf32>
    %453 = arith.mulf %451, %452 : vector<40x128xf32>
    %454 = arith.addf %448, %453 : vector<40x128xf32>
    %455 = vector.extract_strided_slice %431 {offsets = [0, 4], sizes = [40, 1], strides = [1, 1]} : vector<40x16xf32> to vector<40x1xf32>
    %456 = vector.extract_strided_slice %236 {offsets = [4, 0], sizes = [1, 128], strides = [1, 1]} : vector<16x128xf32> to vector<1x128xf32>
    %457 = vector.broadcast %455 : vector<40x1xf32> to vector<40x128xf32>
    %458 = vector.broadcast %456 : vector<1x128xf32> to vector<40x128xf32>
    %459 = arith.mulf %457, %458 : vector<40x128xf32>
    %460 = arith.addf %454, %459 : vector<40x128xf32>
    %461 = vector.extract_strided_slice %431 {offsets = [0, 5], sizes = [40, 1], strides = [1, 1]} : vector<40x16xf32> to vector<40x1xf32>
    %462 = vector.extract_strided_slice %236 {offsets = [5, 0], sizes = [1, 128], strides = [1, 1]} : vector<16x128xf32> to vector<1x128xf32>
    %463 = vector.broadcast %461 : vector<40x1xf32> to vector<40x128xf32>
    %464 = vector.broadcast %462 : vector<1x128xf32> to vector<40x128xf32>
    %465 = arith.mulf %463, %464 : vector<40x128xf32>
    %466 = arith.addf %460, %465 : vector<40x128xf32>
    %467 = vector.extract_strided_slice %431 {offsets = [0, 6], sizes = [40, 1], strides = [1, 1]} : vector<40x16xf32> to vector<40x1xf32>
    %468 = vector.extract_strided_slice %236 {offsets = [6, 0], sizes = [1, 128], strides = [1, 1]} : vector<16x128xf32> to vector<1x128xf32>
    %469 = vector.broadcast %467 : vector<40x1xf32> to vector<40x128xf32>
    %470 = vector.broadcast %468 : vector<1x128xf32> to vector<40x128xf32>
    %471 = arith.mulf %469, %470 : vector<40x128xf32>
    %472 = arith.addf %466, %471 : vector<40x128xf32>
    %473 = vector.extract_strided_slice %431 {offsets = [0, 7], sizes = [40, 1], strides = [1, 1]} : vector<40x16xf32> to vector<40x1xf32>
    %474 = vector.extract_strided_slice %236 {offsets = [7, 0], sizes = [1, 128], strides = [1, 1]} : vector<16x128xf32> to vector<1x128xf32>
    %475 = vector.broadcast %473 : vector<40x1xf32> to vector<40x128xf32>
    %476 = vector.broadcast %474 : vector<1x128xf32> to vector<40x128xf32>
    %477 = arith.mulf %475, %476 : vector<40x128xf32>
    %478 = arith.addf %472, %477 : vector<40x128xf32>
    %479 = vector.extract_strided_slice %431 {offsets = [0, 8], sizes = [40, 1], strides = [1, 1]} : vector<40x16xf32> to vector<40x1xf32>
    %480 = vector.extract_strided_slice %236 {offsets = [8, 0], sizes = [1, 128], strides = [1, 1]} : vector<16x128xf32> to vector<1x128xf32>
    %481 = vector.broadcast %479 : vector<40x1xf32> to vector<40x128xf32>
    %482 = vector.broadcast %480 : vector<1x128xf32> to vector<40x128xf32>
    %483 = arith.mulf %481, %482 : vector<40x128xf32>
    %484 = arith.addf %478, %483 : vector<40x128xf32>
    %485 = vector.extract_strided_slice %431 {offsets = [0, 9], sizes = [40, 1], strides = [1, 1]} : vector<40x16xf32> to vector<40x1xf32>
    %486 = vector.extract_strided_slice %236 {offsets = [9, 0], sizes = [1, 128], strides = [1, 1]} : vector<16x128xf32> to vector<1x128xf32>
    %487 = vector.broadcast %485 : vector<40x1xf32> to vector<40x128xf32>
    %488 = vector.broadcast %486 : vector<1x128xf32> to vector<40x128xf32>
    %489 = arith.mulf %487, %488 : vector<40x128xf32>
    %490 = arith.addf %484, %489 : vector<40x128xf32>
    %491 = vector.extract_strided_slice %431 {offsets = [0, 10], sizes = [40, 1], strides = [1, 1]} : vector<40x16xf32> to vector<40x1xf32>
    %492 = vector.extract_strided_slice %236 {offsets = [10, 0], sizes = [1, 128], strides = [1, 1]} : vector<16x128xf32> to vector<1x128xf32>
    %493 = vector.broadcast %491 : vector<40x1xf32> to vector<40x128xf32>
    %494 = vector.broadcast %492 : vector<1x128xf32> to vector<40x128xf32>
    %495 = arith.mulf %493, %494 : vector<40x128xf32>
    %496 = arith.addf %490, %495 : vector<40x128xf32>
    %497 = vector.extract_strided_slice %431 {offsets = [0, 11], sizes = [40, 1], strides = [1, 1]} : vector<40x16xf32> to vector<40x1xf32>
    %498 = vector.extract_strided_slice %236 {offsets = [11, 0], sizes = [1, 128], strides = [1, 1]} : vector<16x128xf32> to vector<1x128xf32>
    %499 = vector.broadcast %497 : vector<40x1xf32> to vector<40x128xf32>
    %500 = vector.broadcast %498 : vector<1x128xf32> to vector<40x128xf32>
    %501 = arith.mulf %499, %500 : vector<40x128xf32>
    %502 = arith.addf %496, %501 : vector<40x128xf32>
    %503 = vector.extract_strided_slice %431 {offsets = [0, 12], sizes = [40, 1], strides = [1, 1]} : vector<40x16xf32> to vector<40x1xf32>
    %504 = vector.extract_strided_slice %236 {offsets = [12, 0], sizes = [1, 128], strides = [1, 1]} : vector<16x128xf32> to vector<1x128xf32>
    %505 = vector.broadcast %503 : vector<40x1xf32> to vector<40x128xf32>
    %506 = vector.broadcast %504 : vector<1x128xf32> to vector<40x128xf32>
    %507 = arith.mulf %505, %506 : vector<40x128xf32>
    %508 = arith.addf %502, %507 : vector<40x128xf32>
    %509 = vector.extract_strided_slice %431 {offsets = [0, 13], sizes = [40, 1], strides = [1, 1]} : vector<40x16xf32> to vector<40x1xf32>
    %510 = vector.extract_strided_slice %236 {offsets = [13, 0], sizes = [1, 128], strides = [1, 1]} : vector<16x128xf32> to vector<1x128xf32>
    %511 = vector.broadcast %509 : vector<40x1xf32> to vector<40x128xf32>
    %512 = vector.broadcast %510 : vector<1x128xf32> to vector<40x128xf32>
    %513 = arith.mulf %511, %512 : vector<40x128xf32>
    %514 = arith.addf %508, %513 : vector<40x128xf32>
    %515 = vector.extract_strided_slice %431 {offsets = [0, 14], sizes = [40, 1], strides = [1, 1]} : vector<40x16xf32> to vector<40x1xf32>
    %516 = vector.extract_strided_slice %236 {offsets = [14, 0], sizes = [1, 128], strides = [1, 1]} : vector<16x128xf32> to vector<1x128xf32>
    %517 = vector.broadcast %515 : vector<40x1xf32> to vector<40x128xf32>
    %518 = vector.broadcast %516 : vector<1x128xf32> to vector<40x128xf32>
    %519 = arith.mulf %517, %518 : vector<40x128xf32>
    %520 = arith.addf %514, %519 : vector<40x128xf32>
    %521 = vector.extract_strided_slice %431 {offsets = [0, 15], sizes = [40, 1], strides = [1, 1]} : vector<40x16xf32> to vector<40x1xf32>
    %522 = vector.extract_strided_slice %236 {offsets = [15, 0], sizes = [1, 128], strides = [1, 1]} : vector<16x128xf32> to vector<1x128xf32>
    %523 = vector.broadcast %521 : vector<40x1xf32> to vector<40x128xf32>
    %524 = vector.broadcast %522 : vector<1x128xf32> to vector<40x128xf32>
    %525 = arith.mulf %523, %524 : vector<40x128xf32>
    %526 = arith.addf %520, %525 : vector<40x128xf32>
    %c80_23 = arith.constant 80 : index
    %c0_24 = arith.constant 0 : index
    %527 = vector.load %arg3[%c80_23, %c0_24] : memref<360x128xf32, #tpu.memory_space<vmem>>, vector<40x128xf32>
    tpu.vector_store %arg3[%c80_23, %c0_24], %526 {strides = array<i32>} : memref<360x128xf32, #tpu.memory_space<vmem>>, vector<40x128xf32>,
    %c120 = arith.constant 120 : index
    %c0_25 = arith.constant 0 : index
    %528 = vector.load %arg2[%c120, %c0_25] : memref<408x16xf32, #tpu.memory_space<vmem>>, vector<40x16xf32>
    %529 = vector.extract_strided_slice %528 {offsets = [0, 0], sizes = [40, 1], strides = [1, 1]} : vector<40x16xf32> to vector<40x1xf32>
    %530 = vector.extract_strided_slice %236 {offsets = [0, 0], sizes = [1, 128], strides = [1, 1]} : vector<16x128xf32> to vector<1x128xf32>
    %531 = vector.broadcast %529 : vector<40x1xf32> to vector<40x128xf32>
    %532 = vector.broadcast %530 : vector<1x128xf32> to vector<40x128xf32>
    %533 = arith.mulf %531, %532 : vector<40x128xf32>
    %534 = vector.extract_strided_slice %528 {offsets = [0, 1], sizes = [40, 1], strides = [1, 1]} : vector<40x16xf32> to vector<40x1xf32>
    %535 = vector.extract_strided_slice %236 {offsets = [1, 0], sizes = [1, 128], strides = [1, 1]} : vector<16x128xf32> to vector<1x128xf32>
    %536 = vector.broadcast %534 : vector<40x1xf32> to vector<40x128xf32>
    %537 = vector.broadcast %535 : vector<1x128xf32> to vector<40x128xf32>
    %538 = arith.mulf %536, %537 : vector<40x128xf32>
    %539 = arith.addf %533, %538 : vector<40x128xf32>
    %540 = vector.extract_strided_slice %528 {offsets = [0, 2], sizes = [40, 1], strides = [1, 1]} : vector<40x16xf32> to vector<40x1xf32>
    %541 = vector.extract_strided_slice %236 {offsets = [2, 0], sizes = [1, 128], strides = [1, 1]} : vector<16x128xf32> to vector<1x128xf32>
    %542 = vector.broadcast %540 : vector<40x1xf32> to vector<40x128xf32>
    %543 = vector.broadcast %541 : vector<1x128xf32> to vector<40x128xf32>
    %544 = arith.mulf %542, %543 : vector<40x128xf32>
    %545 = arith.addf %539, %544 : vector<40x128xf32>
    %546 = vector.extract_strided_slice %528 {offsets = [0, 3], sizes = [40, 1], strides = [1, 1]} : vector<40x16xf32> to vector<40x1xf32>
    %547 = vector.extract_strided_slice %236 {offsets = [3, 0], sizes = [1, 128], strides = [1, 1]} : vector<16x128xf32> to vector<1x128xf32>
    %548 = vector.broadcast %546 : vector<40x1xf32> to vector<40x128xf32>
    %549 = vector.broadcast %547 : vector<1x128xf32> to vector<40x128xf32>
    %550 = arith.mulf %548, %549 : vector<40x128xf32>
    %551 = arith.addf %545, %550 : vector<40x128xf32>
    %552 = vector.extract_strided_slice %528 {offsets = [0, 4], sizes = [40, 1], strides = [1, 1]} : vector<40x16xf32> to vector<40x1xf32>
    %553 = vector.extract_strided_slice %236 {offsets = [4, 0], sizes = [1, 128], strides = [1, 1]} : vector<16x128xf32> to vector<1x128xf32>
    %554 = vector.broadcast %552 : vector<40x1xf32> to vector<40x128xf32>
    %555 = vector.broadcast %553 : vector<1x128xf32> to vector<40x128xf32>
    %556 = arith.mulf %554, %555 : vector<40x128xf32>
    %557 = arith.addf %551, %556 : vector<40x128xf32>
    %558 = vector.extract_strided_slice %528 {offsets = [0, 5], sizes = [40, 1], strides = [1, 1]} : vector<40x16xf32> to vector<40x1xf32>
    %559 = vector.extract_strided_slice %236 {offsets = [5, 0], sizes = [1, 128], strides = [1, 1]} : vector<16x128xf32> to vector<1x128xf32>
    %560 = vector.broadcast %558 : vector<40x1xf32> to vector<40x128xf32>
    %561 = vector.broadcast %559 : vector<1x128xf32> to vector<40x128xf32>
    %562 = arith.mulf %560, %561 : vector<40x128xf32>
    %563 = arith.addf %557, %562 : vector<40x128xf32>
    %564 = vector.extract_strided_slice %528 {offsets = [0, 6], sizes = [40, 1], strides = [1, 1]} : vector<40x16xf32> to vector<40x1xf32>
    %565 = vector.extract_strided_slice %236 {offsets = [6, 0], sizes = [1, 128], strides = [1, 1]} : vector<16x128xf32> to vector<1x128xf32>
    %566 = vector.broadcast %564 : vector<40x1xf32> to vector<40x128xf32>
    %567 = vector.broadcast %565 : vector<1x128xf32> to vector<40x128xf32>
    %568 = arith.mulf %566, %567 : vector<40x128xf32>
    %569 = arith.addf %563, %568 : vector<40x128xf32>
    %570 = vector.extract_strided_slice %528 {offsets = [0, 7], sizes = [40, 1], strides = [1, 1]} : vector<40x16xf32> to vector<40x1xf32>
    %571 = vector.extract_strided_slice %236 {offsets = [7, 0], sizes = [1, 128], strides = [1, 1]} : vector<16x128xf32> to vector<1x128xf32>
    %572 = vector.broadcast %570 : vector<40x1xf32> to vector<40x128xf32>
    %573 = vector.broadcast %571 : vector<1x128xf32> to vector<40x128xf32>
    %574 = arith.mulf %572, %573 : vector<40x128xf32>
    %575 = arith.addf %569, %574 : vector<40x128xf32>
    %576 = vector.extract_strided_slice %528 {offsets = [0, 8], sizes = [40, 1], strides = [1, 1]} : vector<40x16xf32> to vector<40x1xf32>
    %577 = vector.extract_strided_slice %236 {offsets = [8, 0], sizes = [1, 128], strides = [1, 1]} : vector<16x128xf32> to vector<1x128xf32>
    %578 = vector.broadcast %576 : vector<40x1xf32> to vector<40x128xf32>
    %579 = vector.broadcast %577 : vector<1x128xf32> to vector<40x128xf32>
    %580 = arith.mulf %578, %579 : vector<40x128xf32>
    %581 = arith.addf %575, %580 : vector<40x128xf32>
    %582 = vector.extract_strided_slice %528 {offsets = [0, 9], sizes = [40, 1], strides = [1, 1]} : vector<40x16xf32> to vector<40x1xf32>
    %583 = vector.extract_strided_slice %236 {offsets = [9, 0], sizes = [1, 128], strides = [1, 1]} : vector<16x128xf32> to vector<1x128xf32>
    %584 = vector.broadcast %582 : vector<40x1xf32> to vector<40x128xf32>
    %585 = vector.broadcast %583 : vector<1x128xf32> to vector<40x128xf32>
    %586 = arith.mulf %584, %585 : vector<40x128xf32>
    %587 = arith.addf %581, %586 : vector<40x128xf32>
    %588 = vector.extract_strided_slice %528 {offsets = [0, 10], sizes = [40, 1], strides = [1, 1]} : vector<40x16xf32> to vector<40x1xf32>
    %589 = vector.extract_strided_slice %236 {offsets = [10, 0], sizes = [1, 128], strides = [1, 1]} : vector<16x128xf32> to vector<1x128xf32>
    %590 = vector.broadcast %588 : vector<40x1xf32> to vector<40x128xf32>
    %591 = vector.broadcast %589 : vector<1x128xf32> to vector<40x128xf32>
    %592 = arith.mulf %590, %591 : vector<40x128xf32>
    %593 = arith.addf %587, %592 : vector<40x128xf32>
    %594 = vector.extract_strided_slice %528 {offsets = [0, 11], sizes = [40, 1], strides = [1, 1]} : vector<40x16xf32> to vector<40x1xf32>
    %595 = vector.extract_strided_slice %236 {offsets = [11, 0], sizes = [1, 128], strides = [1, 1]} : vector<16x128xf32> to vector<1x128xf32>
    %596 = vector.broadcast %594 : vector<40x1xf32> to vector<40x128xf32>
    %597 = vector.broadcast %595 : vector<1x128xf32> to vector<40x128xf32>
    %598 = arith.mulf %596, %597 : vector<40x128xf32>
    %599 = arith.addf %593, %598 : vector<40x128xf32>
    %600 = vector.extract_strided_slice %528 {offsets = [0, 12], sizes = [40, 1], strides = [1, 1]} : vector<40x16xf32> to vector<40x1xf32>
    %601 = vector.extract_strided_slice %236 {offsets = [12, 0], sizes = [1, 128], strides = [1, 1]} : vector<16x128xf32> to vector<1x128xf32>
    %602 = vector.broadcast %600 : vector<40x1xf32> to vector<40x128xf32>
    %603 = vector.broadcast %601 : vector<1x128xf32> to vector<40x128xf32>
    %604 = arith.mulf %602, %603 : vector<40x128xf32>
    %605 = arith.addf %599, %604 : vector<40x128xf32>
    %606 = vector.extract_strided_slice %528 {offsets = [0, 13], sizes = [40, 1], strides = [1, 1]} : vector<40x16xf32> to vector<40x1xf32>
    %607 = vector.extract_strided_slice %236 {offsets = [13, 0], sizes = [1, 128], strides = [1, 1]} : vector<16x128xf32> to vector<1x128xf32>
    %608 = vector.broadcast %606 : vector<40x1xf32> to vector<40x128xf32>
    %609 = vector.broadcast %607 : vector<1x128xf32> to vector<40x128xf32>
    %610 = arith.mulf %608, %609 : vector<40x128xf32>
    %611 = arith.addf %605, %610 : vector<40x128xf32>
    %612 = vector.extract_strided_slice %528 {offsets = [0, 14], sizes = [40, 1], strides = [1, 1]} : vector<40x16xf32> to vector<40x1xf32>
    %613 = vector.extract_strided_slice %236 {offsets = [14, 0], sizes = [1, 128], strides = [1, 1]} : vector<16x128xf32> to vector<1x128xf32>
    %614 = vector.broadcast %612 : vector<40x1xf32> to vector<40x128xf32>
    %615 = vector.broadcast %613 : vector<1x128xf32> to vector<40x128xf32>
    %616 = arith.mulf %614, %615 : vector<40x128xf32>
    %617 = arith.addf %611, %616 : vector<40x128xf32>
    %618 = vector.extract_strided_slice %528 {offsets = [0, 15], sizes = [40, 1], strides = [1, 1]} : vector<40x16xf32> to vector<40x1xf32>
    %619 = vector.extract_strided_slice %236 {offsets = [15, 0], sizes = [1, 128], strides = [1, 1]} : vector<16x128xf32> to vector<1x128xf32>
    %620 = vector.broadcast %618 : vector<40x1xf32> to vector<40x128xf32>
    %621 = vector.broadcast %619 : vector<1x128xf32> to vector<40x128xf32>
    %622 = arith.mulf %620, %621 : vector<40x128xf32>
    %623 = arith.addf %617, %622 : vector<40x128xf32>
    %c120_26 = arith.constant 120 : index
    %c0_27 = arith.constant 0 : index
    %624 = vector.load %arg3[%c120_26, %c0_27] : memref<360x128xf32, #tpu.memory_space<vmem>>, vector<40x128xf32>
    tpu.vector_store %arg3[%c120_26, %c0_27], %623 {strides = array<i32>} : memref<360x128xf32, #tpu.memory_space<vmem>>, vector<40x128xf32>,
    %c160 = arith.constant 160 : index
    %c0_28 = arith.constant 0 : index
    %625 = vector.load %arg2[%c160, %c0_28] : memref<408x16xf32, #tpu.memory_space<vmem>>, vector<40x16xf32>
    %626 = vector.extract_strided_slice %625 {offsets = [0, 0], sizes = [40, 1], strides = [1, 1]} : vector<40x16xf32> to vector<40x1xf32>
    %627 = vector.extract_strided_slice %236 {offsets = [0, 0], sizes = [1, 128], strides = [1, 1]} : vector<16x128xf32> to vector<1x128xf32>
    %628 = vector.broadcast %626 : vector<40x1xf32> to vector<40x128xf32>
    %629 = vector.broadcast %627 : vector<1x128xf32> to vector<40x128xf32>
    %630 = arith.mulf %628, %629 : vector<40x128xf32>
    %631 = vector.extract_strided_slice %625 {offsets = [0, 1], sizes = [40, 1], strides = [1, 1]} : vector<40x16xf32> to vector<40x1xf32>
    %632 = vector.extract_strided_slice %236 {offsets = [1, 0], sizes = [1, 128], strides = [1, 1]} : vector<16x128xf32> to vector<1x128xf32>
    %633 = vector.broadcast %631 : vector<40x1xf32> to vector<40x128xf32>
    %634 = vector.broadcast %632 : vector<1x128xf32> to vector<40x128xf32>
    %635 = arith.mulf %633, %634 : vector<40x128xf32>
    %636 = arith.addf %630, %635 : vector<40x128xf32>
    %637 = vector.extract_strided_slice %625 {offsets = [0, 2], sizes = [40, 1], strides = [1, 1]} : vector<40x16xf32> to vector<40x1xf32>
    %638 = vector.extract_strided_slice %236 {offsets = [2, 0], sizes = [1, 128], strides = [1, 1]} : vector<16x128xf32> to vector<1x128xf32>
    %639 = vector.broadcast %637 : vector<40x1xf32> to vector<40x128xf32>
    %640 = vector.broadcast %638 : vector<1x128xf32> to vector<40x128xf32>
    %641 = arith.mulf %639, %640 : vector<40x128xf32>
    %642 = arith.addf %636, %641 : vector<40x128xf32>
    %643 = vector.extract_strided_slice %625 {offsets = [0, 3], sizes = [40, 1], strides = [1, 1]} : vector<40x16xf32> to vector<40x1xf32>
    %644 = vector.extract_strided_slice %236 {offsets = [3, 0], sizes = [1, 128], strides = [1, 1]} : vector<16x128xf32> to vector<1x128xf32>
    %645 = vector.broadcast %643 : vector<40x1xf32> to vector<40x128xf32>
    %646 = vector.broadcast %644 : vector<1x128xf32> to vector<40x128xf32>
    %647 = arith.mulf %645, %646 : vector<40x128xf32>
    %648 = arith.addf %642, %647 : vector<40x128xf32>
    %649 = vector.extract_strided_slice %625 {offsets = [0, 4], sizes = [40, 1], strides = [1, 1]} : vector<40x16xf32> to vector<40x1xf32>
    %650 = vector.extract_strided_slice %236 {offsets = [4, 0], sizes = [1, 128], strides = [1, 1]} : vector<16x128xf32> to vector<1x128xf32>
    %651 = vector.broadcast %649 : vector<40x1xf32> to vector<40x128xf32>
    %652 = vector.broadcast %650 : vector<1x128xf32> to vector<40x128xf32>
    %653 = arith.mulf %651, %652 : vector<40x128xf32>
    %654 = arith.addf %648, %653 : vector<40x128xf32>
    %655 = vector.extract_strided_slice %625 {offsets = [0, 5], sizes = [40, 1], strides = [1, 1]} : vector<40x16xf32> to vector<40x1xf32>
    %656 = vector.extract_strided_slice %236 {offsets = [5, 0], sizes = [1, 128], strides = [1, 1]} : vector<16x128xf32> to vector<1x128xf32>
    %657 = vector.broadcast %655 : vector<40x1xf32> to vector<40x128xf32>
    %658 = vector.broadcast %656 : vector<1x128xf32> to vector<40x128xf32>
    %659 = arith.mulf %657, %658 : vector<40x128xf32>
    %660 = arith.addf %654, %659 : vector<40x128xf32>
    %661 = vector.extract_strided_slice %625 {offsets = [0, 6], sizes = [40, 1], strides = [1, 1]} : vector<40x16xf32> to vector<40x1xf32>
    %662 = vector.extract_strided_slice %236 {offsets = [6, 0], sizes = [1, 128], strides = [1, 1]} : vector<16x128xf32> to vector<1x128xf32>
    %663 = vector.broadcast %661 : vector<40x1xf32> to vector<40x128xf32>
    %664 = vector.broadcast %662 : vector<1x128xf32> to vector<40x128xf32>
    %665 = arith.mulf %663, %664 : vector<40x128xf32>
    %666 = arith.addf %660, %665 : vector<40x128xf32>
    %667 = vector.extract_strided_slice %625 {offsets = [0, 7], sizes = [40, 1], strides = [1, 1]} : vector<40x16xf32> to vector<40x1xf32>
    %668 = vector.extract_strided_slice %236 {offsets = [7, 0], sizes = [1, 128], strides = [1, 1]} : vector<16x128xf32> to vector<1x128xf32>
    %669 = vector.broadcast %667 : vector<40x1xf32> to vector<40x128xf32>
    %670 = vector.broadcast %668 : vector<1x128xf32> to vector<40x128xf32>
    %671 = arith.mulf %669, %670 : vector<40x128xf32>
    %672 = arith.addf %666, %671 : vector<40x128xf32>
    %673 = vector.extract_strided_slice %625 {offsets = [0, 8], sizes = [40, 1], strides = [1, 1]} : vector<40x16xf32> to vector<40x1xf32>
    %674 = vector.extract_strided_slice %236 {offsets = [8, 0], sizes = [1, 128], strides = [1, 1]} : vector<16x128xf32> to vector<1x128xf32>
    %675 = vector.broadcast %673 : vector<40x1xf32> to vector<40x128xf32>
    %676 = vector.broadcast %674 : vector<1x128xf32> to vector<40x128xf32>
    %677 = arith.mulf %675, %676 : vector<40x128xf32>
    %678 = arith.addf %672, %677 : vector<40x128xf32>
    %679 = vector.extract_strided_slice %625 {offsets = [0, 9], sizes = [40, 1], strides = [1, 1]} : vector<40x16xf32> to vector<40x1xf32>
    %680 = vector.extract_strided_slice %236 {offsets = [9, 0], sizes = [1, 128], strides = [1, 1]} : vector<16x128xf32> to vector<1x128xf32>
    %681 = vector.broadcast %679 : vector<40x1xf32> to vector<40x128xf32>
    %682 = vector.broadcast %680 : vector<1x128xf32> to vector<40x128xf32>
    %683 = arith.mulf %681, %682 : vector<40x128xf32>
    %684 = arith.addf %678, %683 : vector<40x128xf32>
    %685 = vector.extract_strided_slice %625 {offsets = [0, 10], sizes = [40, 1], strides = [1, 1]} : vector<40x16xf32> to vector<40x1xf32>
    %686 = vector.extract_strided_slice %236 {offsets = [10, 0], sizes = [1, 128], strides = [1, 1]} : vector<16x128xf32> to vector<1x128xf32>
    %687 = vector.broadcast %685 : vector<40x1xf32> to vector<40x128xf32>
    %688 = vector.broadcast %686 : vector<1x128xf32> to vector<40x128xf32>
    %689 = arith.mulf %687, %688 : vector<40x128xf32>
    %690 = arith.addf %684, %689 : vector<40x128xf32>
    %691 = vector.extract_strided_slice %625 {offsets = [0, 11], sizes = [40, 1], strides = [1, 1]} : vector<40x16xf32> to vector<40x1xf32>
    %692 = vector.extract_strided_slice %236 {offsets = [11, 0], sizes = [1, 128], strides = [1, 1]} : vector<16x128xf32> to vector<1x128xf32>
    %693 = vector.broadcast %691 : vector<40x1xf32> to vector<40x128xf32>
    %694 = vector.broadcast %692 : vector<1x128xf32> to vector<40x128xf32>
    %695 = arith.mulf %693, %694 : vector<40x128xf32>
    %696 = arith.addf %690, %695 : vector<40x128xf32>
    %697 = vector.extract_strided_slice %625 {offsets = [0, 12], sizes = [40, 1], strides = [1, 1]} : vector<40x16xf32> to vector<40x1xf32>
    %698 = vector.extract_strided_slice %236 {offsets = [12, 0], sizes = [1, 128], strides = [1, 1]} : vector<16x128xf32> to vector<1x128xf32>
    %699 = vector.broadcast %697 : vector<40x1xf32> to vector<40x128xf32>
    %700 = vector.broadcast %698 : vector<1x128xf32> to vector<40x128xf32>
    %701 = arith.mulf %699, %700 : vector<40x128xf32>
    %702 = arith.addf %696, %701 : vector<40x128xf32>
    %703 = vector.extract_strided_slice %625 {offsets = [0, 13], sizes = [40, 1], strides = [1, 1]} : vector<40x16xf32> to vector<40x1xf32>
    %704 = vector.extract_strided_slice %236 {offsets = [13, 0], sizes = [1, 128], strides = [1, 1]} : vector<16x128xf32> to vector<1x128xf32>
    %705 = vector.broadcast %703 : vector<40x1xf32> to vector<40x128xf32>
    %706 = vector.broadcast %704 : vector<1x128xf32> to vector<40x128xf32>
    %707 = arith.mulf %705, %706 : vector<40x128xf32>
    %708 = arith.addf %702, %707 : vector<40x128xf32>
    %709 = vector.extract_strided_slice %625 {offsets = [0, 14], sizes = [40, 1], strides = [1, 1]} : vector<40x16xf32> to vector<40x1xf32>
    %710 = vector.extract_strided_slice %236 {offsets = [14, 0], sizes = [1, 128], strides = [1, 1]} : vector<16x128xf32> to vector<1x128xf32>
    %711 = vector.broadcast %709 : vector<40x1xf32> to vector<40x128xf32>
    %712 = vector.broadcast %710 : vector<1x128xf32> to vector<40x128xf32>
    %713 = arith.mulf %711, %712 : vector<40x128xf32>
    %714 = arith.addf %708, %713 : vector<40x128xf32>
    %715 = vector.extract_strided_slice %625 {offsets = [0, 15], sizes = [40, 1], strides = [1, 1]} : vector<40x16xf32> to vector<40x1xf32>
    %716 = vector.extract_strided_slice %236 {offsets = [15, 0], sizes = [1, 128], strides = [1, 1]} : vector<16x128xf32> to vector<1x128xf32>
    %717 = vector.broadcast %715 : vector<40x1xf32> to vector<40x128xf32>
    %718 = vector.broadcast %716 : vector<1x128xf32> to vector<40x128xf32>
    %719 = arith.mulf %717, %718 : vector<40x128xf32>
    %720 = arith.addf %714, %719 : vector<40x128xf32>
    %c160_29 = arith.constant 160 : index
    %c0_30 = arith.constant 0 : index
    %721 = vector.load %arg3[%c160_29, %c0_30] : memref<360x128xf32, #tpu.memory_space<vmem>>, vector<40x128xf32>
    tpu.vector_store %arg3[%c160_29, %c0_30], %720 {strides = array<i32>} : memref<360x128xf32, #tpu.memory_space<vmem>>, vector<40x128xf32>,
    %c200 = arith.constant 200 : index
    %c0_31 = arith.constant 0 : index
    %722 = vector.load %arg2[%c200, %c0_31] : memref<408x16xf32, #tpu.memory_space<vmem>>, vector<40x16xf32>
    %723 = vector.extract_strided_slice %722 {offsets = [0, 0], sizes = [40, 1], strides = [1, 1]} : vector<40x16xf32> to vector<40x1xf32>
    %724 = vector.extract_strided_slice %236 {offsets = [0, 0], sizes = [1, 128], strides = [1, 1]} : vector<16x128xf32> to vector<1x128xf32>
    %725 = vector.broadcast %723 : vector<40x1xf32> to vector<40x128xf32>
    %726 = vector.broadcast %724 : vector<1x128xf32> to vector<40x128xf32>
    %727 = arith.mulf %725, %726 : vector<40x128xf32>
    %728 = vector.extract_strided_slice %722 {offsets = [0, 1], sizes = [40, 1], strides = [1, 1]} : vector<40x16xf32> to vector<40x1xf32>
    %729 = vector.extract_strided_slice %236 {offsets = [1, 0], sizes = [1, 128], strides = [1, 1]} : vector<16x128xf32> to vector<1x128xf32>
    %730 = vector.broadcast %728 : vector<40x1xf32> to vector<40x128xf32>
    %731 = vector.broadcast %729 : vector<1x128xf32> to vector<40x128xf32>
    %732 = arith.mulf %730, %731 : vector<40x128xf32>
    %733 = arith.addf %727, %732 : vector<40x128xf32>
    %734 = vector.extract_strided_slice %722 {offsets = [0, 2], sizes = [40, 1], strides = [1, 1]} : vector<40x16xf32> to vector<40x1xf32>
    %735 = vector.extract_strided_slice %236 {offsets = [2, 0], sizes = [1, 128], strides = [1, 1]} : vector<16x128xf32> to vector<1x128xf32>
    %736 = vector.broadcast %734 : vector<40x1xf32> to vector<40x128xf32>
    %737 = vector.broadcast %735 : vector<1x128xf32> to vector<40x128xf32>
    %738 = arith.mulf %736, %737 : vector<40x128xf32>
    %739 = arith.addf %733, %738 : vector<40x128xf32>
    %740 = vector.extract_strided_slice %722 {offsets = [0, 3], sizes = [40, 1], strides = [1, 1]} : vector<40x16xf32> to vector<40x1xf32>
    %741 = vector.extract_strided_slice %236 {offsets = [3, 0], sizes = [1, 128], strides = [1, 1]} : vector<16x128xf32> to vector<1x128xf32>
    %742 = vector.broadcast %740 : vector<40x1xf32> to vector<40x128xf32>
    %743 = vector.broadcast %741 : vector<1x128xf32> to vector<40x128xf32>
    %744 = arith.mulf %742, %743 : vector<40x128xf32>
    %745 = arith.addf %739, %744 : vector<40x128xf32>
    %746 = vector.extract_strided_slice %722 {offsets = [0, 4], sizes = [40, 1], strides = [1, 1]} : vector<40x16xf32> to vector<40x1xf32>
    %747 = vector.extract_strided_slice %236 {offsets = [4, 0], sizes = [1, 128], strides = [1, 1]} : vector<16x128xf32> to vector<1x128xf32>
    %748 = vector.broadcast %746 : vector<40x1xf32> to vector<40x128xf32>
    %749 = vector.broadcast %747 : vector<1x128xf32> to vector<40x128xf32>
    %750 = arith.mulf %748, %749 : vector<40x128xf32>
    %751 = arith.addf %745, %750 : vector<40x128xf32>
    %752 = vector.extract_strided_slice %722 {offsets = [0, 5], sizes = [40, 1], strides = [1, 1]} : vector<40x16xf32> to vector<40x1xf32>
    %753 = vector.extract_strided_slice %236 {offsets = [5, 0], sizes = [1, 128], strides = [1, 1]} : vector<16x128xf32> to vector<1x128xf32>
    %754 = vector.broadcast %752 : vector<40x1xf32> to vector<40x128xf32>
    %755 = vector.broadcast %753 : vector<1x128xf32> to vector<40x128xf32>
    %756 = arith.mulf %754, %755 : vector<40x128xf32>
    %757 = arith.addf %751, %756 : vector<40x128xf32>
    %758 = vector.extract_strided_slice %722 {offsets = [0, 6], sizes = [40, 1], strides = [1, 1]} : vector<40x16xf32> to vector<40x1xf32>
    %759 = vector.extract_strided_slice %236 {offsets = [6, 0], sizes = [1, 128], strides = [1, 1]} : vector<16x128xf32> to vector<1x128xf32>
    %760 = vector.broadcast %758 : vector<40x1xf32> to vector<40x128xf32>
    %761 = vector.broadcast %759 : vector<1x128xf32> to vector<40x128xf32>
    %762 = arith.mulf %760, %761 : vector<40x128xf32>
    %763 = arith.addf %757, %762 : vector<40x128xf32>
    %764 = vector.extract_strided_slice %722 {offsets = [0, 7], sizes = [40, 1], strides = [1, 1]} : vector<40x16xf32> to vector<40x1xf32>
    %765 = vector.extract_strided_slice %236 {offsets = [7, 0], sizes = [1, 128], strides = [1, 1]} : vector<16x128xf32> to vector<1x128xf32>
    %766 = vector.broadcast %764 : vector<40x1xf32> to vector<40x128xf32>
    %767 = vector.broadcast %765 : vector<1x128xf32> to vector<40x128xf32>
    %768 = arith.mulf %766, %767 : vector<40x128xf32>
    %769 = arith.addf %763, %768 : vector<40x128xf32>
    %770 = vector.extract_strided_slice %722 {offsets = [0, 8], sizes = [40, 1], strides = [1, 1]} : vector<40x16xf32> to vector<40x1xf32>
    %771 = vector.extract_strided_slice %236 {offsets = [8, 0], sizes = [1, 128], strides = [1, 1]} : vector<16x128xf32> to vector<1x128xf32>
    %772 = vector.broadcast %770 : vector<40x1xf32> to vector<40x128xf32>
    %773 = vector.broadcast %771 : vector<1x128xf32> to vector<40x128xf32>
    %774 = arith.mulf %772, %773 : vector<40x128xf32>
    %775 = arith.addf %769, %774 : vector<40x128xf32>
    %776 = vector.extract_strided_slice %722 {offsets = [0, 9], sizes = [40, 1], strides = [1, 1]} : vector<40x16xf32> to vector<40x1xf32>
    %777 = vector.extract_strided_slice %236 {offsets = [9, 0], sizes = [1, 128], strides = [1, 1]} : vector<16x128xf32> to vector<1x128xf32>
    %778 = vector.broadcast %776 : vector<40x1xf32> to vector<40x128xf32>
    %779 = vector.broadcast %777 : vector<1x128xf32> to vector<40x128xf32>
    %780 = arith.mulf %778, %779 : vector<40x128xf32>
    %781 = arith.addf %775, %780 : vector<40x128xf32>
    %782 = vector.extract_strided_slice %722 {offsets = [0, 10], sizes = [40, 1], strides = [1, 1]} : vector<40x16xf32> to vector<40x1xf32>
    %783 = vector.extract_strided_slice %236 {offsets = [10, 0], sizes = [1, 128], strides = [1, 1]} : vector<16x128xf32> to vector<1x128xf32>
    %784 = vector.broadcast %782 : vector<40x1xf32> to vector<40x128xf32>
    %785 = vector.broadcast %783 : vector<1x128xf32> to vector<40x128xf32>
    %786 = arith.mulf %784, %785 : vector<40x128xf32>
    %787 = arith.addf %781, %786 : vector<40x128xf32>
    %788 = vector.extract_strided_slice %722 {offsets = [0, 11], sizes = [40, 1], strides = [1, 1]} : vector<40x16xf32> to vector<40x1xf32>
    %789 = vector.extract_strided_slice %236 {offsets = [11, 0], sizes = [1, 128], strides = [1, 1]} : vector<16x128xf32> to vector<1x128xf32>
    %790 = vector.broadcast %788 : vector<40x1xf32> to vector<40x128xf32>
    %791 = vector.broadcast %789 : vector<1x128xf32> to vector<40x128xf32>
    %792 = arith.mulf %790, %791 : vector<40x128xf32>
    %793 = arith.addf %787, %792 : vector<40x128xf32>
    %794 = vector.extract_strided_slice %722 {offsets = [0, 12], sizes = [40, 1], strides = [1, 1]} : vector<40x16xf32> to vector<40x1xf32>
    %795 = vector.extract_strided_slice %236 {offsets = [12, 0], sizes = [1, 128], strides = [1, 1]} : vector<16x128xf32> to vector<1x128xf32>
    %796 = vector.broadcast %794 : vector<40x1xf32> to vector<40x128xf32>
    %797 = vector.broadcast %795 : vector<1x128xf32> to vector<40x128xf32>
    %798 = arith.mulf %796, %797 : vector<40x128xf32>
    %799 = arith.addf %793, %798 : vector<40x128xf32>
    %800 = vector.extract_strided_slice %722 {offsets = [0, 13], sizes = [40, 1], strides = [1, 1]} : vector<40x16xf32> to vector<40x1xf32>
    %801 = vector.extract_strided_slice %236 {offsets = [13, 0], sizes = [1, 128], strides = [1, 1]} : vector<16x128xf32> to vector<1x128xf32>
    %802 = vector.broadcast %800 : vector<40x1xf32> to vector<40x128xf32>
    %803 = vector.broadcast %801 : vector<1x128xf32> to vector<40x128xf32>
    %804 = arith.mulf %802, %803 : vector<40x128xf32>
    %805 = arith.addf %799, %804 : vector<40x128xf32>
    %806 = vector.extract_strided_slice %722 {offsets = [0, 14], sizes = [40, 1], strides = [1, 1]} : vector<40x16xf32> to vector<40x1xf32>
    %807 = vector.extract_strided_slice %236 {offsets = [14, 0], sizes = [1, 128], strides = [1, 1]} : vector<16x128xf32> to vector<1x128xf32>
    %808 = vector.broadcast %806 : vector<40x1xf32> to vector<40x128xf32>
    %809 = vector.broadcast %807 : vector<1x128xf32> to vector<40x128xf32>
    %810 = arith.mulf %808, %809 : vector<40x128xf32>
    %811 = arith.addf %805, %810 : vector<40x128xf32>
    %812 = vector.extract_strided_slice %722 {offsets = [0, 15], sizes = [40, 1], strides = [1, 1]} : vector<40x16xf32> to vector<40x1xf32>
    %813 = vector.extract_strided_slice %236 {offsets = [15, 0], sizes = [1, 128], strides = [1, 1]} : vector<16x128xf32> to vector<1x128xf32>
    %814 = vector.broadcast %812 : vector<40x1xf32> to vector<40x128xf32>
    %815 = vector.broadcast %813 : vector<1x128xf32> to vector<40x128xf32>
    %816 = arith.mulf %814, %815 : vector<40x128xf32>
    %817 = arith.addf %811, %816 : vector<40x128xf32>
    %c200_32 = arith.constant 200 : index
    %c0_33 = arith.constant 0 : index
    %818 = vector.load %arg3[%c200_32, %c0_33] : memref<360x128xf32, #tpu.memory_space<vmem>>, vector<40x128xf32>
    tpu.vector_store %arg3[%c200_32, %c0_33], %817 {strides = array<i32>} : memref<360x128xf32, #tpu.memory_space<vmem>>, vector<40x128xf32>,
    %c240 = arith.constant 240 : index
    %c0_34 = arith.constant 0 : index
    %819 = vector.load %arg2[%c240, %c0_34] : memref<408x16xf32, #tpu.memory_space<vmem>>, vector<40x16xf32>
    %820 = vector.extract_strided_slice %819 {offsets = [0, 0], sizes = [40, 1], strides = [1, 1]} : vector<40x16xf32> to vector<40x1xf32>
    %821 = vector.extract_strided_slice %236 {offsets = [0, 0], sizes = [1, 128], strides = [1, 1]} : vector<16x128xf32> to vector<1x128xf32>
    %822 = vector.broadcast %820 : vector<40x1xf32> to vector<40x128xf32>
    %823 = vector.broadcast %821 : vector<1x128xf32> to vector<40x128xf32>
    %824 = arith.mulf %822, %823 : vector<40x128xf32>
    %825 = vector.extract_strided_slice %819 {offsets = [0, 1], sizes = [40, 1], strides = [1, 1]} : vector<40x16xf32> to vector<40x1xf32>
    %826 = vector.extract_strided_slice %236 {offsets = [1, 0], sizes = [1, 128], strides = [1, 1]} : vector<16x128xf32> to vector<1x128xf32>
    %827 = vector.broadcast %825 : vector<40x1xf32> to vector<40x128xf32>
    %828 = vector.broadcast %826 : vector<1x128xf32> to vector<40x128xf32>
    %829 = arith.mulf %827, %828 : vector<40x128xf32>
    %830 = arith.addf %824, %829 : vector<40x128xf32>
    %831 = vector.extract_strided_slice %819 {offsets = [0, 2], sizes = [40, 1], strides = [1, 1]} : vector<40x16xf32> to vector<40x1xf32>
    %832 = vector.extract_strided_slice %236 {offsets = [2, 0], sizes = [1, 128], strides = [1, 1]} : vector<16x128xf32> to vector<1x128xf32>
    %833 = vector.broadcast %831 : vector<40x1xf32> to vector<40x128xf32>
    %834 = vector.broadcast %832 : vector<1x128xf32> to vector<40x128xf32>
    %835 = arith.mulf %833, %834 : vector<40x128xf32>
    %836 = arith.addf %830, %835 : vector<40x128xf32>
    %837 = vector.extract_strided_slice %819 {offsets = [0, 3], sizes = [40, 1], strides = [1, 1]} : vector<40x16xf32> to vector<40x1xf32>
    %838 = vector.extract_strided_slice %236 {offsets = [3, 0], sizes = [1, 128], strides = [1, 1]} : vector<16x128xf32> to vector<1x128xf32>
    %839 = vector.broadcast %837 : vector<40x1xf32> to vector<40x128xf32>
    %840 = vector.broadcast %838 : vector<1x128xf32> to vector<40x128xf32>
    %841 = arith.mulf %839, %840 : vector<40x128xf32>
    %842 = arith.addf %836, %841 : vector<40x128xf32>
    %843 = vector.extract_strided_slice %819 {offsets = [0, 4], sizes = [40, 1], strides = [1, 1]} : vector<40x16xf32> to vector<40x1xf32>
    %844 = vector.extract_strided_slice %236 {offsets = [4, 0], sizes = [1, 128], strides = [1, 1]} : vector<16x128xf32> to vector<1x128xf32>
    %845 = vector.broadcast %843 : vector<40x1xf32> to vector<40x128xf32>
    %846 = vector.broadcast %844 : vector<1x128xf32> to vector<40x128xf32>
    %847 = arith.mulf %845, %846 : vector<40x128xf32>
    %848 = arith.addf %842, %847 : vector<40x128xf32>
    %849 = vector.extract_strided_slice %819 {offsets = [0, 5], sizes = [40, 1], strides = [1, 1]} : vector<40x16xf32> to vector<40x1xf32>
    %850 = vector.extract_strided_slice %236 {offsets = [5, 0], sizes = [1, 128], strides = [1, 1]} : vector<16x128xf32> to vector<1x128xf32>
    %851 = vector.broadcast %849 : vector<40x1xf32> to vector<40x128xf32>
    %852 = vector.broadcast %850 : vector<1x128xf32> to vector<40x128xf32>
    %853 = arith.mulf %851, %852 : vector<40x128xf32>
    %854 = arith.addf %848, %853 : vector<40x128xf32>
    %855 = vector.extract_strided_slice %819 {offsets = [0, 6], sizes = [40, 1], strides = [1, 1]} : vector<40x16xf32> to vector<40x1xf32>
    %856 = vector.extract_strided_slice %236 {offsets = [6, 0], sizes = [1, 128], strides = [1, 1]} : vector<16x128xf32> to vector<1x128xf32>
    %857 = vector.broadcast %855 : vector<40x1xf32> to vector<40x128xf32>
    %858 = vector.broadcast %856 : vector<1x128xf32> to vector<40x128xf32>
    %859 = arith.mulf %857, %858 : vector<40x128xf32>
    %860 = arith.addf %854, %859 : vector<40x128xf32>
    %861 = vector.extract_strided_slice %819 {offsets = [0, 7], sizes = [40, 1], strides = [1, 1]} : vector<40x16xf32> to vector<40x1xf32>
    %862 = vector.extract_strided_slice %236 {offsets = [7, 0], sizes = [1, 128], strides = [1, 1]} : vector<16x128xf32> to vector<1x128xf32>
    %863 = vector.broadcast %861 : vector<40x1xf32> to vector<40x128xf32>
    %864 = vector.broadcast %862 : vector<1x128xf32> to vector<40x128xf32>
    %865 = arith.mulf %863, %864 : vector<40x128xf32>
    %866 = arith.addf %860, %865 : vector<40x128xf32>
    %867 = vector.extract_strided_slice %819 {offsets = [0, 8], sizes = [40, 1], strides = [1, 1]} : vector<40x16xf32> to vector<40x1xf32>
    %868 = vector.extract_strided_slice %236 {offsets = [8, 0], sizes = [1, 128], strides = [1, 1]} : vector<16x128xf32> to vector<1x128xf32>
    %869 = vector.broadcast %867 : vector<40x1xf32> to vector<40x128xf32>
    %870 = vector.broadcast %868 : vector<1x128xf32> to vector<40x128xf32>
    %871 = arith.mulf %869, %870 : vector<40x128xf32>
    %872 = arith.addf %866, %871 : vector<40x128xf32>
    %873 = vector.extract_strided_slice %819 {offsets = [0, 9], sizes = [40, 1], strides = [1, 1]} : vector<40x16xf32> to vector<40x1xf32>
    %874 = vector.extract_strided_slice %236 {offsets = [9, 0], sizes = [1, 128], strides = [1, 1]} : vector<16x128xf32> to vector<1x128xf32>
    %875 = vector.broadcast %873 : vector<40x1xf32> to vector<40x128xf32>
    %876 = vector.broadcast %874 : vector<1x128xf32> to vector<40x128xf32>
    %877 = arith.mulf %875, %876 : vector<40x128xf32>
    %878 = arith.addf %872, %877 : vector<40x128xf32>
    %879 = vector.extract_strided_slice %819 {offsets = [0, 10], sizes = [40, 1], strides = [1, 1]} : vector<40x16xf32> to vector<40x1xf32>
    %880 = vector.extract_strided_slice %236 {offsets = [10, 0], sizes = [1, 128], strides = [1, 1]} : vector<16x128xf32> to vector<1x128xf32>
    %881 = vector.broadcast %879 : vector<40x1xf32> to vector<40x128xf32>
    %882 = vector.broadcast %880 : vector<1x128xf32> to vector<40x128xf32>
    %883 = arith.mulf %881, %882 : vector<40x128xf32>
    %884 = arith.addf %878, %883 : vector<40x128xf32>
    %885 = vector.extract_strided_slice %819 {offsets = [0, 11], sizes = [40, 1], strides = [1, 1]} : vector<40x16xf32> to vector<40x1xf32>
    %886 = vector.extract_strided_slice %236 {offsets = [11, 0], sizes = [1, 128], strides = [1, 1]} : vector<16x128xf32> to vector<1x128xf32>
    %887 = vector.broadcast %885 : vector<40x1xf32> to vector<40x128xf32>
    %888 = vector.broadcast %886 : vector<1x128xf32> to vector<40x128xf32>
    %889 = arith.mulf %887, %888 : vector<40x128xf32>
    %890 = arith.addf %884, %889 : vector<40x128xf32>
    %891 = vector.extract_strided_slice %819 {offsets = [0, 12], sizes = [40, 1], strides = [1, 1]} : vector<40x16xf32> to vector<40x1xf32>
    %892 = vector.extract_strided_slice %236 {offsets = [12, 0], sizes = [1, 128], strides = [1, 1]} : vector<16x128xf32> to vector<1x128xf32>
    %893 = vector.broadcast %891 : vector<40x1xf32> to vector<40x128xf32>
    %894 = vector.broadcast %892 : vector<1x128xf32> to vector<40x128xf32>
    %895 = arith.mulf %893, %894 : vector<40x128xf32>
    %896 = arith.addf %890, %895 : vector<40x128xf32>
    %897 = vector.extract_strided_slice %819 {offsets = [0, 13], sizes = [40, 1], strides = [1, 1]} : vector<40x16xf32> to vector<40x1xf32>
    %898 = vector.extract_strided_slice %236 {offsets = [13, 0], sizes = [1, 128], strides = [1, 1]} : vector<16x128xf32> to vector<1x128xf32>
    %899 = vector.broadcast %897 : vector<40x1xf32> to vector<40x128xf32>
    %900 = vector.broadcast %898 : vector<1x128xf32> to vector<40x128xf32>
    %901 = arith.mulf %899, %900 : vector<40x128xf32>
    %902 = arith.addf %896, %901 : vector<40x128xf32>
    %903 = vector.extract_strided_slice %819 {offsets = [0, 14], sizes = [40, 1], strides = [1, 1]} : vector<40x16xf32> to vector<40x1xf32>
    %904 = vector.extract_strided_slice %236 {offsets = [14, 0], sizes = [1, 128], strides = [1, 1]} : vector<16x128xf32> to vector<1x128xf32>
    %905 = vector.broadcast %903 : vector<40x1xf32> to vector<40x128xf32>
    %906 = vector.broadcast %904 : vector<1x128xf32> to vector<40x128xf32>
    %907 = arith.mulf %905, %906 : vector<40x128xf32>
    %908 = arith.addf %902, %907 : vector<40x128xf32>
    %909 = vector.extract_strided_slice %819 {offsets = [0, 15], sizes = [40, 1], strides = [1, 1]} : vector<40x16xf32> to vector<40x1xf32>
    %910 = vector.extract_strided_slice %236 {offsets = [15, 0], sizes = [1, 128], strides = [1, 1]} : vector<16x128xf32> to vector<1x128xf32>
    %911 = vector.broadcast %909 : vector<40x1xf32> to vector<40x128xf32>
    %912 = vector.broadcast %910 : vector<1x128xf32> to vector<40x128xf32>
    %913 = arith.mulf %911, %912 : vector<40x128xf32>
    %914 = arith.addf %908, %913 : vector<40x128xf32>
    %c240_35 = arith.constant 240 : index
    %c0_36 = arith.constant 0 : index
    %915 = vector.load %arg3[%c240_35, %c0_36] : memref<360x128xf32, #tpu.memory_space<vmem>>, vector<40x128xf32>
    tpu.vector_store %arg3[%c240_35, %c0_36], %914 {strides = array<i32>} : memref<360x128xf32, #tpu.memory_space<vmem>>, vector<40x128xf32>,
    %c280 = arith.constant 280 : index
    %c0_37 = arith.constant 0 : index
    %916 = vector.load %arg2[%c280, %c0_37] : memref<408x16xf32, #tpu.memory_space<vmem>>, vector<40x16xf32>
    %917 = vector.extract_strided_slice %916 {offsets = [0, 0], sizes = [40, 1], strides = [1, 1]} : vector<40x16xf32> to vector<40x1xf32>
    %918 = vector.extract_strided_slice %236 {offsets = [0, 0], sizes = [1, 128], strides = [1, 1]} : vector<16x128xf32> to vector<1x128xf32>
    %919 = vector.broadcast %917 : vector<40x1xf32> to vector<40x128xf32>
    %920 = vector.broadcast %918 : vector<1x128xf32> to vector<40x128xf32>
    %921 = arith.mulf %919, %920 : vector<40x128xf32>
    %922 = vector.extract_strided_slice %916 {offsets = [0, 1], sizes = [40, 1], strides = [1, 1]} : vector<40x16xf32> to vector<40x1xf32>
    %923 = vector.extract_strided_slice %236 {offsets = [1, 0], sizes = [1, 128], strides = [1, 1]} : vector<16x128xf32> to vector<1x128xf32>
    %924 = vector.broadcast %922 : vector<40x1xf32> to vector<40x128xf32>
    %925 = vector.broadcast %923 : vector<1x128xf32> to vector<40x128xf32>
    %926 = arith.mulf %924, %925 : vector<40x128xf32>
    %927 = arith.addf %921, %926 : vector<40x128xf32>
    %928 = vector.extract_strided_slice %916 {offsets = [0, 2], sizes = [40, 1], strides = [1, 1]} : vector<40x16xf32> to vector<40x1xf32>
    %929 = vector.extract_strided_slice %236 {offsets = [2, 0], sizes = [1, 128], strides = [1, 1]} : vector<16x128xf32> to vector<1x128xf32>
    %930 = vector.broadcast %928 : vector<40x1xf32> to vector<40x128xf32>
    %931 = vector.broadcast %929 : vector<1x128xf32> to vector<40x128xf32>
    %932 = arith.mulf %930, %931 : vector<40x128xf32>
    %933 = arith.addf %927, %932 : vector<40x128xf32>
    %934 = vector.extract_strided_slice %916 {offsets = [0, 3], sizes = [40, 1], strides = [1, 1]} : vector<40x16xf32> to vector<40x1xf32>
    %935 = vector.extract_strided_slice %236 {offsets = [3, 0], sizes = [1, 128], strides = [1, 1]} : vector<16x128xf32> to vector<1x128xf32>
    %936 = vector.broadcast %934 : vector<40x1xf32> to vector<40x128xf32>
    %937 = vector.broadcast %935 : vector<1x128xf32> to vector<40x128xf32>
    %938 = arith.mulf %936, %937 : vector<40x128xf32>
    %939 = arith.addf %933, %938 : vector<40x128xf32>
    %940 = vector.extract_strided_slice %916 {offsets = [0, 4], sizes = [40, 1], strides = [1, 1]} : vector<40x16xf32> to vector<40x1xf32>
    %941 = vector.extract_strided_slice %236 {offsets = [4, 0], sizes = [1, 128], strides = [1, 1]} : vector<16x128xf32> to vector<1x128xf32>
    %942 = vector.broadcast %940 : vector<40x1xf32> to vector<40x128xf32>
    %943 = vector.broadcast %941 : vector<1x128xf32> to vector<40x128xf32>
    %944 = arith.mulf %942, %943 : vector<40x128xf32>
    %945 = arith.addf %939, %944 : vector<40x128xf32>
    %946 = vector.extract_strided_slice %916 {offsets = [0, 5], sizes = [40, 1], strides = [1, 1]} : vector<40x16xf32> to vector<40x1xf32>
    %947 = vector.extract_strided_slice %236 {offsets = [5, 0], sizes = [1, 128], strides = [1, 1]} : vector<16x128xf32> to vector<1x128xf32>
    %948 = vector.broadcast %946 : vector<40x1xf32> to vector<40x128xf32>
    %949 = vector.broadcast %947 : vector<1x128xf32> to vector<40x128xf32>
    %950 = arith.mulf %948, %949 : vector<40x128xf32>
    %951 = arith.addf %945, %950 : vector<40x128xf32>
    %952 = vector.extract_strided_slice %916 {offsets = [0, 6], sizes = [40, 1], strides = [1, 1]} : vector<40x16xf32> to vector<40x1xf32>
    %953 = vector.extract_strided_slice %236 {offsets = [6, 0], sizes = [1, 128], strides = [1, 1]} : vector<16x128xf32> to vector<1x128xf32>
    %954 = vector.broadcast %952 : vector<40x1xf32> to vector<40x128xf32>
    %955 = vector.broadcast %953 : vector<1x128xf32> to vector<40x128xf32>
    %956 = arith.mulf %954, %955 : vector<40x128xf32>
    %957 = arith.addf %951, %956 : vector<40x128xf32>
    %958 = vector.extract_strided_slice %916 {offsets = [0, 7], sizes = [40, 1], strides = [1, 1]} : vector<40x16xf32> to vector<40x1xf32>
    %959 = vector.extract_strided_slice %236 {offsets = [7, 0], sizes = [1, 128], strides = [1, 1]} : vector<16x128xf32> to vector<1x128xf32>
    %960 = vector.broadcast %958 : vector<40x1xf32> to vector<40x128xf32>
    %961 = vector.broadcast %959 : vector<1x128xf32> to vector<40x128xf32>
    %962 = arith.mulf %960, %961 : vector<40x128xf32>
    %963 = arith.addf %957, %962 : vector<40x128xf32>
    %964 = vector.extract_strided_slice %916 {offsets = [0, 8], sizes = [40, 1], strides = [1, 1]} : vector<40x16xf32> to vector<40x1xf32>
    %965 = vector.extract_strided_slice %236 {offsets = [8, 0], sizes = [1, 128], strides = [1, 1]} : vector<16x128xf32> to vector<1x128xf32>
    %966 = vector.broadcast %964 : vector<40x1xf32> to vector<40x128xf32>
    %967 = vector.broadcast %965 : vector<1x128xf32> to vector<40x128xf32>
    %968 = arith.mulf %966, %967 : vector<40x128xf32>
    %969 = arith.addf %963, %968 : vector<40x128xf32>
    %970 = vector.extract_strided_slice %916 {offsets = [0, 9], sizes = [40, 1], strides = [1, 1]} : vector<40x16xf32> to vector<40x1xf32>
    %971 = vector.extract_strided_slice %236 {offsets = [9, 0], sizes = [1, 128], strides = [1, 1]} : vector<16x128xf32> to vector<1x128xf32>
    %972 = vector.broadcast %970 : vector<40x1xf32> to vector<40x128xf32>
    %973 = vector.broadcast %971 : vector<1x128xf32> to vector<40x128xf32>
    %974 = arith.mulf %972, %973 : vector<40x128xf32>
    %975 = arith.addf %969, %974 : vector<40x128xf32>
    %976 = vector.extract_strided_slice %916 {offsets = [0, 10], sizes = [40, 1], strides = [1, 1]} : vector<40x16xf32> to vector<40x1xf32>
    %977 = vector.extract_strided_slice %236 {offsets = [10, 0], sizes = [1, 128], strides = [1, 1]} : vector<16x128xf32> to vector<1x128xf32>
    %978 = vector.broadcast %976 : vector<40x1xf32> to vector<40x128xf32>
    %979 = vector.broadcast %977 : vector<1x128xf32> to vector<40x128xf32>
    %980 = arith.mulf %978, %979 : vector<40x128xf32>
    %981 = arith.addf %975, %980 : vector<40x128xf32>
    %982 = vector.extract_strided_slice %916 {offsets = [0, 11], sizes = [40, 1], strides = [1, 1]} : vector<40x16xf32> to vector<40x1xf32>
    %983 = vector.extract_strided_slice %236 {offsets = [11, 0], sizes = [1, 128], strides = [1, 1]} : vector<16x128xf32> to vector<1x128xf32>
    %984 = vector.broadcast %982 : vector<40x1xf32> to vector<40x128xf32>
    %985 = vector.broadcast %983 : vector<1x128xf32> to vector<40x128xf32>
    %986 = arith.mulf %984, %985 : vector<40x128xf32>
    %987 = arith.addf %981, %986 : vector<40x128xf32>
    %988 = vector.extract_strided_slice %916 {offsets = [0, 12], sizes = [40, 1], strides = [1, 1]} : vector<40x16xf32> to vector<40x1xf32>
    %989 = vector.extract_strided_slice %236 {offsets = [12, 0], sizes = [1, 128], strides = [1, 1]} : vector<16x128xf32> to vector<1x128xf32>
    %990 = vector.broadcast %988 : vector<40x1xf32> to vector<40x128xf32>
    %991 = vector.broadcast %989 : vector<1x128xf32> to vector<40x128xf32>
    %992 = arith.mulf %990, %991 : vector<40x128xf32>
    %993 = arith.addf %987, %992 : vector<40x128xf32>
    %994 = vector.extract_strided_slice %916 {offsets = [0, 13], sizes = [40, 1], strides = [1, 1]} : vector<40x16xf32> to vector<40x1xf32>
    %995 = vector.extract_strided_slice %236 {offsets = [13, 0], sizes = [1, 128], strides = [1, 1]} : vector<16x128xf32> to vector<1x128xf32>
    %996 = vector.broadcast %994 : vector<40x1xf32> to vector<40x128xf32>
    %997 = vector.broadcast %995 : vector<1x128xf32> to vector<40x128xf32>
    %998 = arith.mulf %996, %997 : vector<40x128xf32>
    %999 = arith.addf %993, %998 : vector<40x128xf32>
    %1000 = vector.extract_strided_slice %916 {offsets = [0, 14], sizes = [40, 1], strides = [1, 1]} : vector<40x16xf32> to vector<40x1xf32>
    %1001 = vector.extract_strided_slice %236 {offsets = [14, 0], sizes = [1, 128], strides = [1, 1]} : vector<16x128xf32> to vector<1x128xf32>
    %1002 = vector.broadcast %1000 : vector<40x1xf32> to vector<40x128xf32>
    %1003 = vector.broadcast %1001 : vector<1x128xf32> to vector<40x128xf32>
    %1004 = arith.mulf %1002, %1003 : vector<40x128xf32>
    %1005 = arith.addf %999, %1004 : vector<40x128xf32>
    %1006 = vector.extract_strided_slice %916 {offsets = [0, 15], sizes = [40, 1], strides = [1, 1]} : vector<40x16xf32> to vector<40x1xf32>
    %1007 = vector.extract_strided_slice %236 {offsets = [15, 0], sizes = [1, 128], strides = [1, 1]} : vector<16x128xf32> to vector<1x128xf32>
    %1008 = vector.broadcast %1006 : vector<40x1xf32> to vector<40x128xf32>
    %1009 = vector.broadcast %1007 : vector<1x128xf32> to vector<40x128xf32>
    %1010 = arith.mulf %1008, %1009 : vector<40x128xf32>
    %1011 = arith.addf %1005, %1010 : vector<40x128xf32>
    %c280_38 = arith.constant 280 : index
    %c0_39 = arith.constant 0 : index
    %1012 = vector.load %arg3[%c280_38, %c0_39] : memref<360x128xf32, #tpu.memory_space<vmem>>, vector<40x128xf32>
    tpu.vector_store %arg3[%c280_38, %c0_39], %1011 {strides = array<i32>} : memref<360x128xf32, #tpu.memory_space<vmem>>, vector<40x128xf32>,
    %c320 = arith.constant 320 : index
    %c0_40 = arith.constant 0 : index
    %1013 = vector.load %arg2[%c320, %c0_40] : memref<408x16xf32, #tpu.memory_space<vmem>>, vector<40x16xf32>
    %1014 = vector.extract_strided_slice %1013 {offsets = [0, 0], sizes = [40, 1], strides = [1, 1]} : vector<40x16xf32> to vector<40x1xf32>
    %1015 = vector.extract_strided_slice %236 {offsets = [0, 0], sizes = [1, 128], strides = [1, 1]} : vector<16x128xf32> to vector<1x128xf32>
    %1016 = vector.broadcast %1014 : vector<40x1xf32> to vector<40x128xf32>
    %1017 = vector.broadcast %1015 : vector<1x128xf32> to vector<40x128xf32>
    %1018 = arith.mulf %1016, %1017 : vector<40x128xf32>
    %1019 = vector.extract_strided_slice %1013 {offsets = [0, 1], sizes = [40, 1], strides = [1, 1]} : vector<40x16xf32> to vector<40x1xf32>
    %1020 = vector.extract_strided_slice %236 {offsets = [1, 0], sizes = [1, 128], strides = [1, 1]} : vector<16x128xf32> to vector<1x128xf32>
    %1021 = vector.broadcast %1019 : vector<40x1xf32> to vector<40x128xf32>
    %1022 = vector.broadcast %1020 : vector<1x128xf32> to vector<40x128xf32>
    %1023 = arith.mulf %1021, %1022 : vector<40x128xf32>
    %1024 = arith.addf %1018, %1023 : vector<40x128xf32>
    %1025 = vector.extract_strided_slice %1013 {offsets = [0, 2], sizes = [40, 1], strides = [1, 1]} : vector<40x16xf32> to vector<40x1xf32>
    %1026 = vector.extract_strided_slice %236 {offsets = [2, 0], sizes = [1, 128], strides = [1, 1]} : vector<16x128xf32> to vector<1x128xf32>
    %1027 = vector.broadcast %1025 : vector<40x1xf32> to vector<40x128xf32>
    %1028 = vector.broadcast %1026 : vector<1x128xf32> to vector<40x128xf32>
    %1029 = arith.mulf %1027, %1028 : vector<40x128xf32>
    %1030 = arith.addf %1024, %1029 : vector<40x128xf32>
    %1031 = vector.extract_strided_slice %1013 {offsets = [0, 3], sizes = [40, 1], strides = [1, 1]} : vector<40x16xf32> to vector<40x1xf32>
    %1032 = vector.extract_strided_slice %236 {offsets = [3, 0], sizes = [1, 128], strides = [1, 1]} : vector<16x128xf32> to vector<1x128xf32>
    %1033 = vector.broadcast %1031 : vector<40x1xf32> to vector<40x128xf32>
    %1034 = vector.broadcast %1032 : vector<1x128xf32> to vector<40x128xf32>
    %1035 = arith.mulf %1033, %1034 : vector<40x128xf32>
    %1036 = arith.addf %1030, %1035 : vector<40x128xf32>
    %1037 = vector.extract_strided_slice %1013 {offsets = [0, 4], sizes = [40, 1], strides = [1, 1]} : vector<40x16xf32> to vector<40x1xf32>
    %1038 = vector.extract_strided_slice %236 {offsets = [4, 0], sizes = [1, 128], strides = [1, 1]} : vector<16x128xf32> to vector<1x128xf32>
    %1039 = vector.broadcast %1037 : vector<40x1xf32> to vector<40x128xf32>
    %1040 = vector.broadcast %1038 : vector<1x128xf32> to vector<40x128xf32>
    %1041 = arith.mulf %1039, %1040 : vector<40x128xf32>
    %1042 = arith.addf %1036, %1041 : vector<40x128xf32>
    %1043 = vector.extract_strided_slice %1013 {offsets = [0, 5], sizes = [40, 1], strides = [1, 1]} : vector<40x16xf32> to vector<40x1xf32>
    %1044 = vector.extract_strided_slice %236 {offsets = [5, 0], sizes = [1, 128], strides = [1, 1]} : vector<16x128xf32> to vector<1x128xf32>
    %1045 = vector.broadcast %1043 : vector<40x1xf32> to vector<40x128xf32>
    %1046 = vector.broadcast %1044 : vector<1x128xf32> to vector<40x128xf32>
    %1047 = arith.mulf %1045, %1046 : vector<40x128xf32>
    %1048 = arith.addf %1042, %1047 : vector<40x128xf32>
    %1049 = vector.extract_strided_slice %1013 {offsets = [0, 6], sizes = [40, 1], strides = [1, 1]} : vector<40x16xf32> to vector<40x1xf32>
    %1050 = vector.extract_strided_slice %236 {offsets = [6, 0], sizes = [1, 128], strides = [1, 1]} : vector<16x128xf32> to vector<1x128xf32>
    %1051 = vector.broadcast %1049 : vector<40x1xf32> to vector<40x128xf32>
    %1052 = vector.broadcast %1050 : vector<1x128xf32> to vector<40x128xf32>
    %1053 = arith.mulf %1051, %1052 : vector<40x128xf32>
    %1054 = arith.addf %1048, %1053 : vector<40x128xf32>
    %1055 = vector.extract_strided_slice %1013 {offsets = [0, 7], sizes = [40, 1], strides = [1, 1]} : vector<40x16xf32> to vector<40x1xf32>
    %1056 = vector.extract_strided_slice %236 {offsets = [7, 0], sizes = [1, 128], strides = [1, 1]} : vector<16x128xf32> to vector<1x128xf32>
    %1057 = vector.broadcast %1055 : vector<40x1xf32> to vector<40x128xf32>
    %1058 = vector.broadcast %1056 : vector<1x128xf32> to vector<40x128xf32>
    %1059 = arith.mulf %1057, %1058 : vector<40x128xf32>
    %1060 = arith.addf %1054, %1059 : vector<40x128xf32>
    %1061 = vector.extract_strided_slice %1013 {offsets = [0, 8], sizes = [40, 1], strides = [1, 1]} : vector<40x16xf32> to vector<40x1xf32>
    %1062 = vector.extract_strided_slice %236 {offsets = [8, 0], sizes = [1, 128], strides = [1, 1]} : vector<16x128xf32> to vector<1x128xf32>
    %1063 = vector.broadcast %1061 : vector<40x1xf32> to vector<40x128xf32>
    %1064 = vector.broadcast %1062 : vector<1x128xf32> to vector<40x128xf32>
    %1065 = arith.mulf %1063, %1064 : vector<40x128xf32>
    %1066 = arith.addf %1060, %1065 : vector<40x128xf32>
    %1067 = vector.extract_strided_slice %1013 {offsets = [0, 9], sizes = [40, 1], strides = [1, 1]} : vector<40x16xf32> to vector<40x1xf32>
    %1068 = vector.extract_strided_slice %236 {offsets = [9, 0], sizes = [1, 128], strides = [1, 1]} : vector<16x128xf32> to vector<1x128xf32>
    %1069 = vector.broadcast %1067 : vector<40x1xf32> to vector<40x128xf32>
    %1070 = vector.broadcast %1068 : vector<1x128xf32> to vector<40x128xf32>
    %1071 = arith.mulf %1069, %1070 : vector<40x128xf32>
    %1072 = arith.addf %1066, %1071 : vector<40x128xf32>
    %1073 = vector.extract_strided_slice %1013 {offsets = [0, 10], sizes = [40, 1], strides = [1, 1]} : vector<40x16xf32> to vector<40x1xf32>
    %1074 = vector.extract_strided_slice %236 {offsets = [10, 0], sizes = [1, 128], strides = [1, 1]} : vector<16x128xf32> to vector<1x128xf32>
    %1075 = vector.broadcast %1073 : vector<40x1xf32> to vector<40x128xf32>
    %1076 = vector.broadcast %1074 : vector<1x128xf32> to vector<40x128xf32>
    %1077 = arith.mulf %1075, %1076 : vector<40x128xf32>
    %1078 = arith.addf %1072, %1077 : vector<40x128xf32>
    %1079 = vector.extract_strided_slice %1013 {offsets = [0, 11], sizes = [40, 1], strides = [1, 1]} : vector<40x16xf32> to vector<40x1xf32>
    %1080 = vector.extract_strided_slice %236 {offsets = [11, 0], sizes = [1, 128], strides = [1, 1]} : vector<16x128xf32> to vector<1x128xf32>
    %1081 = vector.broadcast %1079 : vector<40x1xf32> to vector<40x128xf32>
    %1082 = vector.broadcast %1080 : vector<1x128xf32> to vector<40x128xf32>
    %1083 = arith.mulf %1081, %1082 : vector<40x128xf32>
    %1084 = arith.addf %1078, %1083 : vector<40x128xf32>
    %1085 = vector.extract_strided_slice %1013 {offsets = [0, 12], sizes = [40, 1], strides = [1, 1]} : vector<40x16xf32> to vector<40x1xf32>
    %1086 = vector.extract_strided_slice %236 {offsets = [12, 0], sizes = [1, 128], strides = [1, 1]} : vector<16x128xf32> to vector<1x128xf32>
    %1087 = vector.broadcast %1085 : vector<40x1xf32> to vector<40x128xf32>
    %1088 = vector.broadcast %1086 : vector<1x128xf32> to vector<40x128xf32>
    %1089 = arith.mulf %1087, %1088 : vector<40x128xf32>
    %1090 = arith.addf %1084, %1089 : vector<40x128xf32>
    %1091 = vector.extract_strided_slice %1013 {offsets = [0, 13], sizes = [40, 1], strides = [1, 1]} : vector<40x16xf32> to vector<40x1xf32>
    %1092 = vector.extract_strided_slice %236 {offsets = [13, 0], sizes = [1, 128], strides = [1, 1]} : vector<16x128xf32> to vector<1x128xf32>
    %1093 = vector.broadcast %1091 : vector<40x1xf32> to vector<40x128xf32>
    %1094 = vector.broadcast %1092 : vector<1x128xf32> to vector<40x128xf32>
    %1095 = arith.mulf %1093, %1094 : vector<40x128xf32>
    %1096 = arith.addf %1090, %1095 : vector<40x128xf32>
    %1097 = vector.extract_strided_slice %1013 {offsets = [0, 14], sizes = [40, 1], strides = [1, 1]} : vector<40x16xf32> to vector<40x1xf32>
    %1098 = vector.extract_strided_slice %236 {offsets = [14, 0], sizes = [1, 128], strides = [1, 1]} : vector<16x128xf32> to vector<1x128xf32>
    %1099 = vector.broadcast %1097 : vector<40x1xf32> to vector<40x128xf32>
    %1100 = vector.broadcast %1098 : vector<1x128xf32> to vector<40x128xf32>
    %1101 = arith.mulf %1099, %1100 : vector<40x128xf32>
    %1102 = arith.addf %1096, %1101 : vector<40x128xf32>
    %1103 = vector.extract_strided_slice %1013 {offsets = [0, 15], sizes = [40, 1], strides = [1, 1]} : vector<40x16xf32> to vector<40x1xf32>
    %1104 = vector.extract_strided_slice %236 {offsets = [15, 0], sizes = [1, 128], strides = [1, 1]} : vector<16x128xf32> to vector<1x128xf32>
    %1105 = vector.broadcast %1103 : vector<40x1xf32> to vector<40x128xf32>
    %1106 = vector.broadcast %1104 : vector<1x128xf32> to vector<40x128xf32>
    %1107 = arith.mulf %1105, %1106 : vector<40x128xf32>
    %1108 = arith.addf %1102, %1107 : vector<40x128xf32>
    %c320_41 = arith.constant 320 : index
    %c0_42 = arith.constant 0 : index
    %1109 = vector.load %arg3[%c320_41, %c0_42] : memref<360x128xf32, #tpu.memory_space<vmem>>, vector<40x128xf32>
    tpu.vector_store %arg3[%c320_41, %c0_42], %1108 {strides = array<i32>} : memref<360x128xf32, #tpu.memory_space<vmem>>, vector<40x128xf32>,
    return
  }
  func.func @transform_0(%arg0: i32) -> (i32, i32) {
    %c0_i32 = arith.constant 0 : i32
    %c0_i32_0 = arith.constant 0 : i32
    return %c0_i32, %arg0 : i32, i32
  }
  func.func @transform_1(%arg0: i32) -> (i32, i32) {
    %c0_i32 = arith.constant 0 : i32
    %c0_i32_0 = arith.constant 0 : i32
    %c0_i32_1 = arith.constant 0 : i32
    return %c0_i32, %c0_i32_0 : i32, i32
  }
  func.func @transform_2(%arg0: i32) -> (i32, i32) {
    %c0_i32 = arith.constant 0 : i32
    %c0_i32_0 = arith.constant 0 : i32
    return %c0_i32, %arg0 : i32, i32
  }
}

</mosaic_0001>

<llo_original>
// kernel: tpu_custom_call.1
$region0: #{tpu_custom_call.1}
  #allocation0 [shape = 'u32[]', space=smem, size = 0x4, offset = 0x4, fixed_abs, tag = 'smem constant byte address 0x4 - core index']
  #allocation1 [shape = 'u32[144,128]{1,0:T(1,128)}', space=vmem, size = 0x12000, scoped, tag = 'internal scratch']
  %s0 = inlined_call_operand.vmem [shape: f32[1,128], index: 0, kind: input, shape index: {}]
  %s1 = inlined_call_operand.vmem [shape: f32[408,16], index: 1, kind: input, shape index: {}]
  %s2 = inlined_call_operand.hbm [shape: f32[360,128], index: 2, kind: output, shape index: {}]
  %s3 = sld [smem:[#allocation0]]
  $region18: #{tpu_custom_call.1} parent=0
    _
  %s5 = ssub.s32 1, %s3
  %s6 = scalar_select 0, %s5, %s3
  $region1: #{tpu_custom_call.1} parent=0
    #allocation2 [shape = 'u8[184320]{0}', space=vmem, size = 0x2d000, scoped, tag = 'output window, operand 0, single buffered']
    #allocation3 [shape = 's32[1]{0}', space=sflag, size = 0x4, scoped, tag = 'scoped memory for tpu_custom_call.1']
    %7 = vsyncpa [#allocation3], 0
    // Predicated region
    $region2: #{tpu_custom_call.1} parent=1 // pred_check
      _
    $region3: #{tpu_custom_call.1} parent=1 // pred_check_branch
      %9 = sbr.rel (0) target = $region5
    $region4: #{tpu_custom_call.1} parent=1 // pred_region
      _
    $region5: #{tpu_custom_call.1} parent=1 // pred_fallthru
      _
    // Predicated region
    $region6: #{tpu_custom_call.1} parent=1 // pred_check
      _
    $region7: #{tpu_custom_call.1} parent=1 // pred_check_branch
      %11 = sbr.rel (0) target = $region9
    $region8: #{tpu_custom_call.1} parent=1 // pred_region
      _
    $region9: #{tpu_custom_call.1} parent=1 // pred_fallthru
      _
    %v12 = vld [vmem:[%s0] sm:$0x1]
    %v13 = vld [vmem:[%s1 + $0x188] sm:$0xff]
    %v14 = vld [vmem:[%s1 + $0x190] sm:$0xff]
    %16 = vset.pattern.permute.xlu0 0
    %17 = vperm.xlu0 %16, %v13
    %v18 = vpop.permute.xlu0 %17
    %21 = vset.pattern.permute.xlu0 0
    %22 = vperm.xlu0 %21, %v14
    %v23 = vpop.permute.xlu0 %22
    %v26 = vlaneseq
    %v27 = vshrl.u32 %v26, 7
    %v28 = vsub.s32 0, %v27
    %v29 = vrot.slane %v12, %v28
    %v31 = vmul.f32 %v18, %v29
    %v32 = vmul.f32 %v23, %v29
    %33 = vset.pattern.permute.xlu0 1
    %34 = vperm.xlu0 %33, %v13
    %v35 = vpop.permute.xlu0 %34
    %37 = vset.pattern.permute.xlu0 1
    %38 = vperm.xlu0 %37, %v14
    %v39 = vpop.permute.xlu0 %38
    %v41 = vadd.f32 %v31, %v35
    %v42 = vadd.f32 %v32, %v39
    %vm43 = vcmp.gt.f32.partialorder %v41, 0.0
    %vm44 = vcmp.gt.f32.partialorder %v42, 0.0
    %v45 = vmul.f32 %v41, 1.442695
    %v46 = vpow.pop %v45
    %v47 = vmul.f32 %v42, 1.442695
    %v48 = vpow.pop %v47
    %v49 = vsub.f32 %v46, 1.0
    %v50 = vsub.f32 %v48, 1.0
    %v51 = vmul.f32 %v49, 1.6732632
    %v52 = vmul.f32 %v50, 1.6732632
    %v53 = vsel %vm43, %v41, %v51
    %v54 = vsel %vm44, %v42, %v52
    %v55 = vmul.f32 %v53, 1.050701
    %v56 = vmul.f32 %v54, 1.050701
    %v57 = vld [vmem:[%s1 + $0x168] sm:$0xff]
    %v58 = vld [vmem:[%s1 + $0x170] sm:$0xff]
    %60 = vset.pattern.permute.xlu0 0
    %61 = vperm.xlu0 %60, %v57
    %v62 = vpop.permute.xlu0 %61
    %65 = vset.pattern.permute.xlu0 0
    %66 = vperm.xlu0 %65, %v58
    %v67 = vpop.permute.xlu0 %66
    %v69 = vlaneseq
    %v70 = vshrl.u32 %v69, 7
    %v71 = vsub.s32 0, %v70
    %v72 = vrot.slane %v55, %v71
    %v73 = vmul.f32 %v62, %v72
    %v74 = vmul.f32 %v67, %v72
    %75 = vset.pattern.permute.xlu0 1
    %76 = vperm.xlu0 %75, %v57
    %v77 = vpop.permute.xlu0 %76
    %79 = vset.pattern.permute.xlu0 1
    %80 = vperm.xlu0 %79, %v58
    %v81 = vpop.permute.xlu0 %80
    %v83 = vlaneseq
    %v84 = vshrl.u32 %v83, 7
    %v85 = vsub.s32 1, %v84
    %v86 = vrot.slane %v55, %v85
    %v87 = vmul.f32 %v77, %v86
    %v88 = vmul.f32 %v81, %v86
    %v89 = vadd.f32 %v73, %v87
    %v90 = vadd.f32 %v74, %v88
    %91 = vset.pattern.permute.xlu0 2
    %92 = vperm.xlu0 %91, %v57
    %v93 = vpop.permute.xlu0 %92
    %95 = vset.pattern.permute.xlu0 2
    %96 = vperm.xlu0 %95, %v58
    %v97 = vpop.permute.xlu0 %96
    %v99 = vlaneseq
    %v100 = vshrl.u32 %v99, 7
    %v101 = vsub.s32 2, %v100
    %v102 = vrot.slane %v55, %v101
    %v103 = vmul.f32 %v93, %v102
    %v104 = vmul.f32 %v97, %v102
    %v105 = vadd.f32 %v89, %v103
    %v106 = vadd.f32 %v90, %v104
    %107 = vset.pattern.permute.xlu0 3
    %108 = vperm.xlu0 %107, %v57
    %v109 = vpop.permute.xlu0 %108
    %111 = vset.pattern.permute.xlu0 3
    %112 = vperm.xlu0 %111, %v58
    %v113 = vpop.permute.xlu0 %112
    %v115 = vlaneseq
    %v116 = vshrl.u32 %v115, 7
    %v117 = vsub.s32 3, %v116
    %v118 = vrot.slane %v55, %v117
    %v119 = vmul.f32 %v109, %v118
    %v120 = vmul.f32 %v113, %v118
    %v121 = vadd.f32 %v105, %v119
    %v122 = vadd.f32 %v106, %v120
    %123 = vset.pattern.permute.xlu0 4
    %124 = vperm.xlu0 %123, %v57
    %v125 = vpop.permute.xlu0 %124
    %127 = vset.pattern.permute.xlu0 4
    %128 = vperm.xlu0 %127, %v58
    %v129 = vpop.permute.xlu0 %128
    %v131 = vlaneseq
    %v132 = vshrl.u32 %v131, 7
    %v133 = vsub.s32 4, %v132
    %v134 = vrot.slane %v55, %v133
    %v135 = vmul.f32 %v125, %v134
    %v136 = vmul.f32 %v129, %v134
    %v137 = vadd.f32 %v121, %v135
    %v138 = vadd.f32 %v122, %v136
    %139 = vset.pattern.permute.xlu0 5
    %140 = vperm.xlu0 %139, %v57
    %v141 = vpop.permute.xlu0 %140
    %143 = vset.pattern.permute.xlu0 5
    %144 = vperm.xlu0 %143, %v58
    %v145 = vpop.permute.xlu0 %144
    %v147 = vlaneseq
    %v148 = vshrl.u32 %v147, 7
    %v149 = vsub.s32 5, %v148
    %v150 = vrot.slane %v55, %v149
    %v151 = vmul.f32 %v141, %v150
    %v152 = vmul.f32 %v145, %v150
    %v153 = vadd.f32 %v137, %v151
    %v154 = vadd.f32 %v138, %v152
    %155 = vset.pattern.permute.xlu0 6
    %156 = vperm.xlu0 %155, %v57
    %v157 = vpop.permute.xlu0 %156
    %159 = vset.pattern.permute.xlu0 6
    %160 = vperm.xlu0 %159, %v58
    %v161 = vpop.permute.xlu0 %160
    %v163 = vlaneseq
    %v164 = vshrl.u32 %v163, 7
    %v165 = vsub.s32 6, %v164
    %v166 = vrot.slane %v55, %v165
    %v167 = vmul.f32 %v157, %v166
    %v168 = vmul.f32 %v161, %v166
    %v169 = vadd.f32 %v153, %v167
    %v170 = vadd.f32 %v154, %v168
    %171 = vset.pattern.permute.xlu0 7
    %172 = vperm.xlu0 %171, %v57
    %v173 = vpop.permute.xlu0 %172
    %175 = vset.pattern.permute.xlu0 7
    %176 = vperm.xlu0 %175, %v58
    %v177 = vpop.permute.xlu0 %176
    %v179 = vlaneseq
    %v180 = vshrl.u32 %v179, 7
    %v181 = vsub.s32 7, %v180
    %v182 = vrot.slane %v55, %v181
    %v183 = vmul.f32 %v173, %v182
    %v184 = vmul.f32 %v177, %v182
    %v185 = vadd.f32 %v169, %v183
    %v186 = vadd.f32 %v170, %v184
    %187 = vset.pattern.permute.xlu0 8
    %188 = vperm.xlu0 %187, %v57
    %v189 = vpop.permute.xlu0 %188
    %191 = vset.pattern.permute.xlu0 8
    %192 = vperm.xlu0 %191, %v58
    %v193 = vpop.permute.xlu0 %192
    %v195 = vlaneseq
    %v196 = vshrl.u32 %v195, 7
    %v197 = vsub.s32 0, %v196
    %v198 = vrot.slane %v56, %v197
    %v199 = vmul.f32 %v189, %v198
    %v200 = vmul.f32 %v193, %v198
    %v201 = vadd.f32 %v185, %v199
    %v202 = vadd.f32 %v186, %v200
    %203 = vset.pattern.permute.xlu0 9
    %204 = vperm.xlu0 %203, %v57
    %v205 = vpop.permute.xlu0 %204
    %207 = vset.pattern.permute.xlu0 9
    %208 = vperm.xlu0 %207, %v58
    %v209 = vpop.permute.xlu0 %208
    %v211 = vlaneseq
    %v212 = vshrl.u32 %v211, 7
    %v213 = vsub.s32 1, %v212
    %v214 = vrot.slane %v56, %v213
    %v215 = vmul.f32 %v205, %v214
    %v216 = vmul.f32 %v209, %v214
    %v217 = vadd.f32 %v201, %v215
    %v218 = vadd.f32 %v202, %v216
    %219 = vset.pattern.permute.xlu0 10
    %220 = vperm.xlu0 %219, %v57
    %v221 = vpop.permute.xlu0 %220
    %223 = vset.pattern.permute.xlu0 10
    %224 = vperm.xlu0 %223, %v58
    %v225 = vpop.permute.xlu0 %224
    %v227 = vlaneseq
    %v228 = vshrl.u32 %v227, 7
    %v229 = vsub.s32 2, %v228
    %v230 = vrot.slane %v56, %v229
    %v231 = vmul.f32 %v221, %v230
    %v232 = vmul.f32 %v225, %v230
    %v233 = vadd.f32 %v217, %v231
    %v234 = vadd.f32 %v218, %v232
    %235 = vset.pattern.permute.xlu0 11
    %236 = vperm.xlu0 %235, %v57
    %v237 = vpop.permute.xlu0 %236
    %239 = vset.pattern.permute.xlu0 11
    %240 = vperm.xlu0 %239, %v58
    %v241 = vpop.permute.xlu0 %240
    %v243 = vlaneseq
    %v244 = vshrl.u32 %v243, 7
    %v245 = vsub.s32 3, %v244
    %v246 = vrot.slane %v56, %v245
    %v247 = vmul.f32 %v237, %v246
    %v248 = vmul.f32 %v241, %v246
    %v249 = vadd.f32 %v233, %v247
    %v250 = vadd.f32 %v234, %v248
    %251 = vset.pattern.permute.xlu0 12
    %252 = vperm.xlu0 %251, %v57
    %v253 = vpop.permute.xlu0 %252
    %255 = vset.pattern.permute.xlu0 12
    %256 = vperm.xlu0 %255, %v58
    %v257 = vpop.permute.xlu0 %256
    %v259 = vlaneseq
    %v260 = vshrl.u32 %v259, 7
    %v261 = vsub.s32 4, %v260
    %v262 = vrot.slane %v56, %v261
    %v263 = vmul.f32 %v253, %v262
    %v264 = vmul.f32 %v257, %v262
    %v265 = vadd.f32 %v249, %v263
    %v266 = vadd.f32 %v250, %v264
    %267 = vset.pattern.permute.xlu0 13
    %268 = vperm.xlu0 %267, %v57
    %v269 = vpop.permute.xlu0 %268
    %271 = vset.pattern.permute.xlu0 13
    %272 = vperm.xlu0 %271, %v58
    %v273 = vpop.permute.xlu0 %272
    %v275 = vlaneseq
    %v276 = vshrl.u32 %v275, 7
    %v277 = vsub.s32 5, %v276
    %v278 = vrot.slane %v56, %v277
    %v279 = vmul.f32 %v269, %v278
    %v280 = vmul.f32 %v273, %v278
    %v281 = vadd.f32 %v265, %v279
    %v282 = vadd.f32 %v266, %v280
    %283 = vset.pattern.permute.xlu0 14
    %284 = vperm.xlu0 %283, %v57
    %v285 = vpop.permute.xlu0 %284
    %287 = vset.pattern.permute.xlu0 14
    %288 = vperm.xlu0 %287, %v58
    %v289 = vpop.permute.xlu0 %288
    %v291 = vlaneseq
    %v292 = vshrl.u32 %v291, 7
    %v293 = vsub.s32 6, %v292
    %v294 = vrot.slane %v56, %v293
    %v295 = vmul.f32 %v285, %v294
    %v296 = vmul.f32 %v289, %v294
    %v297 = vadd.f32 %v281, %v295
    %v298 = vadd.f32 %v282, %v296
    %299 = vset.pattern.permute.xlu0 15
    %300 = vperm.xlu0 %299, %v57
    %v301 = vpop.permute.xlu0 %300
    %303 = vset.pattern.permute.xlu0 15
    %304 = vperm.xlu0 %303, %v58
    %v305 = vpop.permute.xlu0 %304
    %v307 = vlaneseq
    %v308 = vshrl.u32 %v307, 7
    %v309 = vsub.s32 7, %v308
    %v310 = vrot.slane %v56, %v309
    %v311 = vmul.f32 %v301, %v310
    %v312 = vmul.f32 %v305, %v310
    %v313 = vadd.f32 %v297, %v311
    %v314 = vadd.f32 %v298, %v312
    %315 = vset.pattern.permute.xlu0 2
    %316 = vperm.xlu0 %315, %v13
    %v317 = vpop.permute.xlu0 %316
    %319 = vset.pattern.permute.xlu0 2
    %320 = vperm.xlu0 %319, %v14
    %v321 = vpop.permute.xlu0 %320
    %v323 = vadd.f32 %v313, %v317
    %v324 = vadd.f32 %v314, %v321
    %vm325 = vcmp.gt.f32.partialorder %v323, 0.0
    %vm326 = vcmp.gt.f32.partialorder %v324, 0.0
    %v327 = vmul.f32 %v323, 1.442695
    %v328 = vpow.pop %v327
    %v329 = vmul.f32 %v324, 1.442695
    %v330 = vpow.pop %v329
    %v331 = vsub.f32 %v328, 1.0
    %v332 = vsub.f32 %v330, 1.0
    %v333 = vmul.f32 %v331, 1.6732632
    %v334 = vmul.f32 %v332, 1.6732632
    %v335 = vsel %vm325, %v323, %v333
    %v336 = vsel %vm326, %v324, %v334
    %v337 = vmul.f32 %v335, 1.050701
    %v338 = vmul.f32 %v336, 1.050701
    %v339 = vld [vmem:[%s1 + $0x178] sm:$0xff]
    %v340 = vld [vmem:[%s1 + $0x180] sm:$0xff]
    %342 = vset.pattern.permute.xlu0 0
    %343 = vperm.xlu0 %342, %v339
    %v344 = vpop.permute.xlu0 %343
    %347 = vset.pattern.permute.xlu0 0
    %348 = vperm.xlu0 %347, %v340
    %v349 = vpop.permute.xlu0 %348
    %v351 = vlaneseq
    %v352 = vshrl.u32 %v351, 7
    %v353 = vsub.s32 0, %v352
    %v354 = vrot.slane %v337, %v353
    %v355 = vmul.f32 %v344, %v354
    %v356 = vmul.f32 %v349, %v354
    %357 = vset.pattern.permute.xlu0 1
    %358 = vperm.xlu0 %357, %v339
    %v359 = vpop.permute.xlu0 %358
    %361 = vset.pattern.permute.xlu0 1
    %362 = vperm.xlu0 %361, %v340
    %v363 = vpop.permute.xlu0 %362
    %v365 = vlaneseq
    %v366 = vshrl.u32 %v365, 7
    %v367 = vsub.s32 1, %v366
    %v368 = vrot.slane %v337, %v367
    %v369 = vmul.f32 %v359, %v368
    %v370 = vmul.f32 %v363, %v368
    %v371 = vadd.f32 %v355, %v369
    %v372 = vadd.f32 %v356, %v370
    %373 = vset.pattern.permute.xlu0 2
    %374 = vperm.xlu0 %373, %v339
    %v375 = vpop.permute.xlu0 %374
    %377 = vset.pattern.permute.xlu0 2
    %378 = vperm.xlu0 %377, %v340
    %v379 = vpop.permute.xlu0 %378
    %v381 = vlaneseq
    %v382 = vshrl.u32 %v381, 7
    %v383 = vsub.s32 2, %v382
    %v384 = vrot.slane %v337, %v383
    %v385 = vmul.f32 %v375, %v384
    %v386 = vmul.f32 %v379, %v384
    %v387 = vadd.f32 %v371, %v385
    %v388 = vadd.f32 %v372, %v386
    %389 = vset.pattern.permute.xlu0 3
    %390 = vperm.xlu0 %389, %v339
    %v391 = vpop.permute.xlu0 %390
    %393 = vset.pattern.permute.xlu0 3
    %394 = vperm.xlu0 %393, %v340
    %v395 = vpop.permute.xlu0 %394
    %v397 = vlaneseq
    %v398 = vshrl.u32 %v397, 7
    %v399 = vsub.s32 3, %v398
    %v400 = vrot.slane %v337, %v399
    %v401 = vmul.f32 %v391, %v400
    %v402 = vmul.f32 %v395, %v400
    %v403 = vadd.f32 %v387, %v401
    %v404 = vadd.f32 %v388, %v402
    %405 = vset.pattern.permute.xlu0 4
    %406 = vperm.xlu0 %405, %v339
    %v407 = vpop.permute.xlu0 %406
    %409 = vset.pattern.permute.xlu0 4
    %410 = vperm.xlu0 %409, %v340
    %v411 = vpop.permute.xlu0 %410
    %v413 = vlaneseq
    %v414 = vshrl.u32 %v413, 7
    %v415 = vsub.s32 4, %v414
    %v416 = vrot.slane %v337, %v415
    %v417 = vmul.f32 %v407, %v416
    %v418 = vmul.f32 %v411, %v416
    %v419 = vadd.f32 %v403, %v417
    %v420 = vadd.f32 %v404, %v418
    %421 = vset.pattern.permute.xlu0 5
    %422 = vperm.xlu0 %421, %v339
    %v423 = vpop.permute.xlu0 %422
    %425 = vset.pattern.permute.xlu0 5
    %426 = vperm.xlu0 %425, %v340
    %v427 = vpop.permute.xlu0 %426
    %v429 = vlaneseq
    %v430 = vshrl.u32 %v429, 7
    %v431 = vsub.s32 5, %v430
    %v432 = vrot.slane %v337, %v431
    %v433 = vmul.f32 %v423, %v432
    %v434 = vmul.f32 %v427, %v432
    %v435 = vadd.f32 %v419, %v433
    %v436 = vadd.f32 %v420, %v434
    %437 = vset.pattern.permute.xlu0 6
    %438 = vperm.xlu0 %437, %v339
    %v439 = vpop.permute.xlu0 %438
    %441 = vset.pattern.permute.xlu0 6
    %442 = vperm.xlu0 %441, %v340
    %v443 = vpop.permute.xlu0 %442
    %v445 = vlaneseq
    %v446 = vshrl.u32 %v445, 7
    %v447 = vsub.s32 6, %v446
    %v448 = vrot.slane %v337, %v447
    %v449 = vmul.f32 %v439, %v448
    %v450 = vmul.f32 %v443, %v448
    %v451 = vadd.f32 %v435, %v449
    %v452 = vadd.f32 %v436, %v450
    %453 = vset.pattern.permute.xlu0 7
    %454 = vperm.xlu0 %453, %v339
    %v455 = vpop.permute.xlu0 %454
    %457 = vset.pattern.permute.xlu0 7
    %458 = vperm.xlu0 %457, %v340
    %v459 = vpop.permute.xlu0 %458
    %v461 = vlaneseq
    %v462 = vshrl.u32 %v461, 7
    %v463 = vsub.s32 7, %v462
    %v464 = vrot.slane %v337, %v463
    %v465 = vmul.f32 %v455, %v464
    %v466 = vmul.f32 %v459, %v464
    %v467 = vadd.f32 %v451, %v465
    %v468 = vadd.f32 %v452, %v466
    %469 = vset.pattern.permute.xlu0 8
    %470 = vperm.xlu0 %469, %v339
    %v471 = vpop.permute.xlu0 %470
    %473 = vset.pattern.permute.xlu0 8
    %474 = vperm.xlu0 %473, %v340
    %v475 = vpop.permute.xlu0 %474
    %v477 = vlaneseq
    %v478 = vshrl.u32 %v477, 7
    %v479 = vsub.s32 0, %v478
    %v480 = vrot.slane %v338, %v479
    %v481 = vmul.f32 %v471, %v480
    %v482 = vmul.f32 %v475, %v480
    %v483 = vadd.f32 %v467, %v481
    %v484 = vadd.f32 %v468, %v482
    %485 = vset.pattern.permute.xlu0 9
    %486 = vperm.xlu0 %485, %v339
    %v487 = vpop.permute.xlu0 %486
    %489 = vset.pattern.permute.xlu0 9
    %490 = vperm.xlu0 %489, %v340
    %v491 = vpop.permute.xlu0 %490
    %v493 = vlaneseq
    %v494 = vshrl.u32 %v493, 7
    %v495 = vsub.s32 1, %v494
    %v496 = vrot.slane %v338, %v495
    %v497 = vmul.f32 %v487, %v496
    %v498 = vmul.f32 %v491, %v496
    %v499 = vadd.f32 %v483, %v497
    %v500 = vadd.f32 %v484, %v498
    %501 = vset.pattern.permute.xlu0 10
    %502 = vperm.xlu0 %501, %v339
    %v503 = vpop.permute.xlu0 %502
    %505 = vset.pattern.permute.xlu0 10
    %506 = vperm.xlu0 %505, %v340
    %v507 = vpop.permute.xlu0 %506
    %v509 = vlaneseq
    %v510 = vshrl.u32 %v509, 7
    %v511 = vsub.s32 2, %v510
    %v512 = vrot.slane %v338, %v511
    %v513 = vmul.f32 %v503, %v512
    %v514 = vmul.f32 %v507, %v512
    %v515 = vadd.f32 %v499, %v513
    %v516 = vadd.f32 %v500, %v514
    %517 = vset.pattern.permute.xlu0 11
    %518 = vperm.xlu0 %517, %v339
    %v519 = vpop.permute.xlu0 %518
    %521 = vset.pattern.permute.xlu0 11
    %522 = vperm.xlu0 %521, %v340
    %v523 = vpop.permute.xlu0 %522
    %v525 = vlaneseq
    %v526 = vshrl.u32 %v525, 7
    %v527 = vsub.s32 3, %v526
    %v528 = vrot.slane %v338, %v527
    %v529 = vmul.f32 %v519, %v528
    %v530 = vmul.f32 %v523, %v528
    %v531 = vadd.f32 %v515, %v529
    %v532 = vadd.f32 %v516, %v530
    %533 = vset.pattern.permute.xlu0 12
    %534 = vperm.xlu0 %533, %v339
    %v535 = vpop.permute.xlu0 %534
    %537 = vset.pattern.permute.xlu0 12
    %538 = vperm.xlu0 %537, %v340
    %v539 = vpop.permute.xlu0 %538
    %v541 = vlaneseq
    %v542 = vshrl.u32 %v541, 7
    %v543 = vsub.s32 4, %v542
    %v544 = vrot.slane %v338, %v543
    %v545 = vmul.f32 %v535, %v544
    %v546 = vmul.f32 %v539, %v544
    %v547 = vadd.f32 %v531, %v545
    %v548 = vadd.f32 %v532, %v546
    %549 = vset.pattern.permute.xlu0 13
    %550 = vperm.xlu0 %549, %v339
    %v551 = vpop.permute.xlu0 %550
    %553 = vset.pattern.permute.xlu0 13
    %554 = vperm.xlu0 %553, %v340
    %v555 = vpop.permute.xlu0 %554
    %v557 = vlaneseq
    %v558 = vshrl.u32 %v557, 7
    %v559 = vsub.s32 5, %v558
    %v560 = vrot.slane %v338, %v559
    %v561 = vmul.f32 %v551, %v560
    %v562 = vmul.f32 %v555, %v560
    %v563 = vadd.f32 %v547, %v561
    %v564 = vadd.f32 %v548, %v562
    %565 = vset.pattern.permute.xlu0 14
    %566 = vperm.xlu0 %565, %v339
    %v567 = vpop.permute.xlu0 %566
    %569 = vset.pattern.permute.xlu0 14
    %570 = vperm.xlu0 %569, %v340
    %v571 = vpop.permute.xlu0 %570
    %v573 = vlaneseq
    %v574 = vshrl.u32 %v573, 7
    %v575 = vsub.s32 6, %v574
    %v576 = vrot.slane %v338, %v575
    %v577 = vmul.f32 %v567, %v576
    %v578 = vmul.f32 %v571, %v576
    %v579 = vadd.f32 %v563, %v577
    %v580 = vadd.f32 %v564, %v578
    %581 = vset.pattern.permute.xlu0 15
    %582 = vperm.xlu0 %581, %v339
    %v583 = vpop.permute.xlu0 %582
    %585 = vset.pattern.permute.xlu0 15
    %586 = vperm.xlu0 %585, %v340
    %v587 = vpop.permute.xlu0 %586
    %v589 = vlaneseq
    %v590 = vshrl.u32 %v589, 7
    %v591 = vsub.s32 7, %v590
    %v592 = vrot.slane %v338, %v591
    %v593 = vmul.f32 %v583, %v592
    %v594 = vmul.f32 %v587, %v592
    %v595 = vadd.f32 %v579, %v593
    %v596 = vadd.f32 %v580, %v594
    %597 = vset.pattern.permute.xlu0 3
    %598 = vperm.xlu0 %597, %v13
    %v599 = vpop.permute.xlu0 %598
    %601 = vset.pattern.permute.xlu0 3
    %602 = vperm.xlu0 %601, %v14
    %v603 = vpop.permute.xlu0 %602
    %v605 = vadd.f32 %v595, %v599
    %v606 = vadd.f32 %v596, %v603
    %vm607 = vcmp.gt.f32.partialorder %v605, 0.0
    %vm608 = vcmp.gt.f32.partialorder %v606, 0.0
    %v609 = vmul.f32 %v605, 1.442695
    %v610 = vpow.pop %v609
    %v611 = vmul.f32 %v606, 1.442695
    %v612 = vpow.pop %v611
    %v613 = vsub.f32 %v610, 1.0
    %v614 = vsub.f32 %v612, 1.0
    %v615 = vmul.f32 %v613, 1.6732632
    %v616 = vmul.f32 %v614, 1.6732632
    %v617 = vsel %vm607, %v605, %v615
    %v618 = vsel %vm608, %v606, %v616
    %v619 = vmul.f32 %v617, 1.050701
    %v620 = vmul.f32 %v618, 1.050701
    %v621 = vld [vmem:[%s1] sm:$0xff]
    %v622 = vld [vmem:[%s1 + $0x8] sm:$0xff]
    %v623 = vld [vmem:[%s1 + $0x10] sm:$0xff]
    %v624 = vld [vmem:[%s1 + $0x18] sm:$0xff]
    %v625 = vld [vmem:[%s1 + $0x20] sm:$0xff]
    %627 = vset.pattern.permute.xlu0 0
    %628 = vperm.xlu0 %627, %v621
    %v629 = vpop.permute.xlu0 %628
    %632 = vset.pattern.permute.xlu0 0
    %633 = vperm.xlu0 %632, %v622
    %v634 = vpop.permute.xlu0 %633
    %637 = vset.pattern.permute.xlu0 0
    %638 = vperm.xlu0 %637, %v623
    %v639 = vpop.permute.xlu0 %638
    %642 = vset.pattern.permute.xlu0 0
    %643 = vperm.xlu0 %642, %v624
    %v644 = vpop.permute.xlu0 %643
    %647 = vset.pattern.permute.xlu0 0
    %648 = vperm.xlu0 %647, %v625
    %v649 = vpop.permute.xlu0 %648
    %v651 = vlaneseq
    %v652 = vshrl.u32 %v651, 7
    %v653 = vsub.s32 0, %v652
    %v654 = vrot.slane %v619, %v653
    %v655 = vmul.f32 %v629, %v654
    %v656 = vmul.f32 %v634, %v654
    %v657 = vmul.f32 %v639, %v654
    %v658 = vmul.f32 %v644, %v654
    %v659 = vmul.f32 %v649, %v654
    %660 = vset.pattern.permute.xlu0 1
    %661 = vperm.xlu0 %660, %v621
    %v662 = vpop.permute.xlu0 %661
    %664 = vset.pattern.permute.xlu0 1
    %665 = vperm.xlu0 %664, %v622
    %v666 = vpop.permute.xlu0 %665
    %668 = vset.pattern.permute.xlu0 1
    %669 = vperm.xlu0 %668, %v623
    %v670 = vpop.permute.xlu0 %669
    %672 = vset.pattern.permute.xlu0 1
    %673 = vperm.xlu0 %672, %v624
    %v674 = vpop.permute.xlu0 %673
    %676 = vset.pattern.permute.xlu0 1
    %677 = vperm.xlu0 %676, %v625
    %v678 = vpop.permute.xlu0 %677
    %v680 = vlaneseq
    %v681 = vshrl.u32 %v680, 7
    %v682 = vsub.s32 1, %v681
    %v683 = vrot.slane %v619, %v682
    %v684 = vmul.f32 %v662, %v683
    %v685 = vmul.f32 %v666, %v683
    %v686 = vmul.f32 %v670, %v683
    %v687 = vmul.f32 %v674, %v683
    %v688 = vmul.f32 %v678, %v683
    %v689 = vadd.f32 %v655, %v684
    %v690 = vadd.f32 %v656, %v685
    %v691 = vadd.f32 %v657, %v686
    %v692 = vadd.f32 %v658, %v687
    %v693 = vadd.f32 %v659, %v688
    %694 = vset.pattern.permute.xlu0 2
    %695 = vperm.xlu0 %694, %v621
    %v696 = vpop.permute.xlu0 %695
    %698 = vset.pattern.permute.xlu0 2
    %699 = vperm.xlu0 %698, %v622
    %v700 = vpop.permute.xlu0 %699
    %702 = vset.pattern.permute.xlu0 2
    %703 = vperm.xlu0 %702, %v623
    %v704 = vpop.permute.xlu0 %703
    %706 = vset.pattern.permute.xlu0 2
    %707 = vperm.xlu0 %706, %v624
    %v708 = vpop.permute.xlu0 %707
    %710 = vset.pattern.permute.xlu0 2
    %711 = vperm.xlu0 %710, %v625
    %v712 = vpop.permute.xlu0 %711
    %v714 = vlaneseq
    %v715 = vshrl.u32 %v714, 7
    %v716 = vsub.s32 2, %v715
    %v717 = vrot.slane %v619, %v716
    %v718 = vmul.f32 %v696, %v717
    %v719 = vmul.f32 %v700, %v717
    %v720 = vmul.f32 %v704, %v717
    %v721 = vmul.f32 %v708, %v717
    %v722 = vmul.f32 %v712, %v717
    %v723 = vadd.f32 %v689, %v718
    %v724 = vadd.f32 %v690, %v719
    %v725 = vadd.f32 %v691, %v720
    %v726 = vadd.f32 %v692, %v721
    %v727 = vadd.f32 %v693, %v722
    %728 = vset.pattern.permute.xlu0 3
    %729 = vperm.xlu0 %728, %v621
    %v730 = vpop.permute.xlu0 %729
    %732 = vset.pattern.permute.xlu0 3
    %733 = vperm.xlu0 %732, %v622
    %v734 = vpop.permute.xlu0 %733
    %736 = vset.pattern.permute.xlu0 3
    %737 = vperm.xlu0 %736, %v623
    %v738 = vpop.permute.xlu0 %737
    %740 = vset.pattern.permute.xlu0 3
    %741 = vperm.xlu0 %740, %v624
    %v742 = vpop.permute.xlu0 %741
    %744 = vset.pattern.permute.xlu0 3
    %745 = vperm.xlu0 %744, %v625
    %v746 = vpop.permute.xlu0 %745
    %v748 = vlaneseq
    %v749 = vshrl.u32 %v748, 7
    %v750 = vsub.s32 3, %v749
    %v751 = vrot.slane %v619, %v750
    %v752 = vmul.f32 %v730, %v751
    %v753 = vmul.f32 %v734, %v751
    %v754 = vmul.f32 %v738, %v751
    %v755 = vmul.f32 %v742, %v751
    %v756 = vmul.f32 %v746, %v751
    %v757 = vadd.f32 %v723, %v752
    %v758 = vadd.f32 %v724, %v753
    %v759 = vadd.f32 %v725, %v754
    %v760 = vadd.f32 %v726, %v755
    %v761 = vadd.f32 %v727, %v756
    %762 = vset.pattern.permute.xlu0 4
    %763 = vperm.xlu0 %762, %v621
    %v764 = vpop.permute.xlu0 %763
    %766 = vset.pattern.permute.xlu0 4
    %767 = vperm.xlu0 %766, %v622
    %v768 = vpop.permute.xlu0 %767
    %770 = vset.pattern.permute.xlu0 4
    %771 = vperm.xlu0 %770, %v623
    %v772 = vpop.permute.xlu0 %771
    %774 = vset.pattern.permute.xlu0 4
    %775 = vperm.xlu0 %774, %v624
    %v776 = vpop.permute.xlu0 %775
    %778 = vset.pattern.permute.xlu0 4
    %779 = vperm.xlu0 %778, %v625
    %v780 = vpop.permute.xlu0 %779
    %v782 = vlaneseq
    %v783 = vshrl.u32 %v782, 7
    %v784 = vsub.s32 4, %v783
    %v785 = vrot.slane %v619, %v784
    %v786 = vmul.f32 %v764, %v785
    %v787 = vmul.f32 %v768, %v785
    %v788 = vmul.f32 %v772, %v785
    %v789 = vmul.f32 %v776, %v785
    %v790 = vmul.f32 %v780, %v785
    %v791 = vadd.f32 %v757, %v786
    %v792 = vadd.f32 %v758, %v787
    %v793 = vadd.f32 %v759, %v788
    %v794 = vadd.f32 %v760, %v789
    %v795 = vadd.f32 %v761, %v790
    %796 = vset.pattern.permute.xlu0 5
    %797 = vperm.xlu0 %796, %v621
    %v798 = vpop.permute.xlu0 %797
    %800 = vset.pattern.permute.xlu0 5
    %801 = vperm.xlu0 %800, %v622
    %v802 = vpop.permute.xlu0 %801
    %804 = vset.pattern.permute.xlu0 5
    %805 = vperm.xlu0 %804, %v623
    %v806 = vpop.permute.xlu0 %805
    %808 = vset.pattern.permute.xlu0 5
    %809 = vperm.xlu0 %808, %v624
    %v810 = vpop.permute.xlu0 %809
    %812 = vset.pattern.permute.xlu0 5
    %813 = vperm.xlu0 %812, %v625
    %v814 = vpop.permute.xlu0 %813
    %v816 = vlaneseq
    %v817 = vshrl.u32 %v816, 7
    %v818 = vsub.s32 5, %v817
    %v819 = vrot.slane %v619, %v818
    %v820 = vmul.f32 %v798, %v819
    %v821 = vmul.f32 %v802, %v819
    %v822 = vmul.f32 %v806, %v819
    %v823 = vmul.f32 %v810, %v819
    %v824 = vmul.f32 %v814, %v819
    %v825 = vadd.f32 %v791, %v820
    %v826 = vadd.f32 %v792, %v821
    %v827 = vadd.f32 %v793, %v822
    %v828 = vadd.f32 %v794, %v823
    %v829 = vadd.f32 %v795, %v824
    %830 = vset.pattern.permute.xlu0 6
    %831 = vperm.xlu0 %830, %v621
    %v832 = vpop.permute.xlu0 %831
    %834 = vset.pattern.permute.xlu0 6
    %835 = vperm.xlu0 %834, %v622
    %v836 = vpop.permute.xlu0 %835
    %838 = vset.pattern.permute.xlu0 6
    %839 = vperm.xlu0 %838, %v623
    %v840 = vpop.permute.xlu0 %839
    %842 = vset.pattern.permute.xlu0 6
    %843 = vperm.xlu0 %842, %v624
    %v844 = vpop.permute.xlu0 %843
    %846 = vset.pattern.permute.xlu0 6
    %847 = vperm.xlu0 %846, %v625
    %v848 = vpop.permute.xlu0 %847
    %v850 = vlaneseq
    %v851 = vshrl.u32 %v850, 7
    %v852 = vsub.s32 6, %v851
    %v853 = vrot.slane %v619, %v852
    %v854 = vmul.f32 %v832, %v853
    %v855 = vmul.f32 %v836, %v853
    %v856 = vmul.f32 %v840, %v853
    %v857 = vmul.f32 %v844, %v853
    %v858 = vmul.f32 %v848, %v853
    %v859 = vadd.f32 %v825, %v854
    %v860 = vadd.f32 %v826, %v855
    %v861 = vadd.f32 %v827, %v856
    %v862 = vadd.f32 %v828, %v857
    %v863 = vadd.f32 %v829, %v858
    %864 = vset.pattern.permute.xlu0 7
    %865 = vperm.xlu0 %864, %v621
    %v866 = vpop.permute.xlu0 %865
    %868 = vset.pattern.permute.xlu0 7
    %869 = vperm.xlu0 %868, %v622
    %v870 = vpop.permute.xlu0 %869
    %872 = vset.pattern.permute.xlu0 7
    %873 = vperm.xlu0 %872, %v623
    %v874 = vpop.permute.xlu0 %873
    %876 = vset.pattern.permute.xlu0 7
    %877 = vperm.xlu0 %876, %v624
    %v878 = vpop.permute.xlu0 %877
    %880 = vset.pattern.permute.xlu0 7
    %881 = vperm.xlu0 %880, %v625
    %v882 = vpop.permute.xlu0 %881
    %v884 = vlaneseq
    %v885 = vshrl.u32 %v884, 7
    %v886 = vsub.s32 7, %v885
    %v887 = vrot.slane %v619, %v886
    %v888 = vmul.f32 %v866, %v887
    %v889 = vmul.f32 %v870, %v887
    %v890 = vmul.f32 %v874, %v887
    %v891 = vmul.f32 %v878, %v887
    %v892 = vmul.f32 %v882, %v887
    %v893 = vadd.f32 %v859, %v888
    %v894 = vadd.f32 %v860, %v889
    %v895 = vadd.f32 %v861, %v890
    %v896 = vadd.f32 %v862, %v891
    %v897 = vadd.f32 %v863, %v892
    %898 = vset.pattern.permute.xlu0 8
    %899 = vperm.xlu0 %898, %v621
    %v900 = vpop.permute.xlu0 %899
    %902 = vset.pattern.permute.xlu0 8
    %903 = vperm.xlu0 %902, %v622
    %v904 = vpop.permute.xlu0 %903
    %906 = vset.pattern.permute.xlu0 8
    %907 = vperm.xlu0 %906, %v623
    %v908 = vpop.permute.xlu0 %907
    %910 = vset.pattern.permute.xlu0 8
    %911 = vperm.xlu0 %910, %v624
    %v912 = vpop.permute.xlu0 %911
    %914 = vset.pattern.permute.xlu0 8
    %915 = vperm.xlu0 %914, %v625
    %v916 = vpop.permute.xlu0 %915
    %v918 = vlaneseq
    %v919 = vshrl.u32 %v918, 7
    %v920 = vsub.s32 0, %v919
    %v921 = vrot.slane %v620, %v920
    %v922 = vmul.f32 %v900, %v921
    %v923 = vmul.f32 %v904, %v921
    %v924 = vmul.f32 %v908, %v921
    %v925 = vmul.f32 %v912, %v921
    %v926 = vmul.f32 %v916, %v921
    %v927 = vadd.f32 %v893, %v922
    %v928 = vadd.f32 %v894, %v923
    %v929 = vadd.f32 %v895, %v924
    %v930 = vadd.f32 %v896, %v925
    %v931 = vadd.f32 %v897, %v926
    %932 = vset.pattern.permute.xlu0 9
    %933 = vperm.xlu0 %932, %v621
    %v934 = vpop.permute.xlu0 %933
    %936 = vset.pattern.permute.xlu0 9
    %937 = vperm.xlu0 %936, %v622
    %v938 = vpop.permute.xlu0 %937
    %940 = vset.pattern.permute.xlu0 9
    %941 = vperm.xlu0 %940, %v623
    %v942 = vpop.permute.xlu0 %941
    %944 = vset.pattern.permute.xlu0 9
    %945 = vperm.xlu0 %944, %v624
    %v946 = vpop.permute.xlu0 %945
    %948 = vset.pattern.permute.xlu0 9
    %949 = vperm.xlu0 %948, %v625
    %v950 = vpop.permute.xlu0 %949
    %v952 = vlaneseq
    %v953 = vshrl.u32 %v952, 7
    %v954 = vsub.s32 1, %v953
    %v955 = vrot.slane %v620, %v954
    %v956 = vmul.f32 %v934, %v955
    %v957 = vmul.f32 %v938, %v955
    %v958 = vmul.f32 %v942, %v955
    %v959 = vmul.f32 %v946, %v955
    %v960 = vmul.f32 %v950, %v955
    %v961 = vadd.f32 %v927, %v956
    %v962 = vadd.f32 %v928, %v957
    %v963 = vadd.f32 %v929, %v958
    %v964 = vadd.f32 %v930, %v959
    %v965 = vadd.f32 %v931, %v960
    %966 = vset.pattern.permute.xlu0 10
    %967 = vperm.xlu0 %966, %v621
    %v968 = vpop.permute.xlu0 %967
    %970 = vset.pattern.permute.xlu0 10
    %971 = vperm.xlu0 %970, %v622
    %v972 = vpop.permute.xlu0 %971
    %974 = vset.pattern.permute.xlu0 10
    %975 = vperm.xlu0 %974, %v623
    %v976 = vpop.permute.xlu0 %975
    %978 = vset.pattern.permute.xlu0 10
    %979 = vperm.xlu0 %978, %v624
    %v980 = vpop.permute.xlu0 %979
    %982 = vset.pattern.permute.xlu0 10
    %983 = vperm.xlu0 %982, %v625
    %v984 = vpop.permute.xlu0 %983
    %v986 = vlaneseq
    %v987 = vshrl.u32 %v986, 7
    %v988 = vsub.s32 2, %v987
    %v989 = vrot.slane %v620, %v988
    %v990 = vmul.f32 %v968, %v989
    %v991 = vmul.f32 %v972, %v989
    %v992 = vmul.f32 %v976, %v989
    %v993 = vmul.f32 %v980, %v989
    %v994 = vmul.f32 %v984, %v989
    %v995 = vadd.f32 %v961, %v990
    %v996 = vadd.f32 %v962, %v991
    %v997 = vadd.f32 %v963, %v992
    %v998 = vadd.f32 %v964, %v993
    %v999 = vadd.f32 %v965, %v994
    %1000 = vset.pattern.permute.xlu0 11
    %1001 = vperm.xlu0 %1000, %v621
    %v1002 = vpop.permute.xlu0 %1001
    %1004 = vset.pattern.permute.xlu0 11
    %1005 = vperm.xlu0 %1004, %v622
    %v1006 = vpop.permute.xlu0 %1005
    %1008 = vset.pattern.permute.xlu0 11
    %1009 = vperm.xlu0 %1008, %v623
    %v1010 = vpop.permute.xlu0 %1009
    %1012 = vset.pattern.permute.xlu0 11
    %1013 = vperm.xlu0 %1012, %v624
    %v1014 = vpop.permute.xlu0 %1013
    %1016 = vset.pattern.permute.xlu0 11
    %1017 = vperm.xlu0 %1016, %v625
    %v1018 = vpop.permute.xlu0 %1017
    %v1020 = vlaneseq
    %v1021 = vshrl.u32 %v1020, 7
    %v1022 = vsub.s32 3, %v1021
    %v1023 = vrot.slane %v620, %v1022
    %v1024 = vmul.f32 %v1002, %v1023
    %v1025 = vmul.f32 %v1006, %v1023
    %v1026 = vmul.f32 %v1010, %v1023
    %v1027 = vmul.f32 %v1014, %v1023
    %v1028 = vmul.f32 %v1018, %v1023
    %v1029 = vadd.f32 %v995, %v1024
    %v1030 = vadd.f32 %v996, %v1025
    %v1031 = vadd.f32 %v997, %v1026
    %v1032 = vadd.f32 %v998, %v1027
    %v1033 = vadd.f32 %v999, %v1028
    %1034 = vset.pattern.permute.xlu0 12
    %1035 = vperm.xlu0 %1034, %v621
    %v1036 = vpop.permute.xlu0 %1035
    %1038 = vset.pattern.permute.xlu0 12
    %1039 = vperm.xlu0 %1038, %v622
    %v1040 = vpop.permute.xlu0 %1039
    %1042 = vset.pattern.permute.xlu0 12
    %1043 = vperm.xlu0 %1042, %v623
    %v1044 = vpop.permute.xlu0 %1043
    %1046 = vset.pattern.permute.xlu0 12
    %1047 = vperm.xlu0 %1046, %v624
    %v1048 = vpop.permute.xlu0 %1047
    %1050 = vset.pattern.permute.xlu0 12
    %1051 = vperm.xlu0 %1050, %v625
    %v1052 = vpop.permute.xlu0 %1051
    %v1054 = vlaneseq
    %v1055 = vshrl.u32 %v1054, 7
    %v1056 = vsub.s32 4, %v1055
    %v1057 = vrot.slane %v620, %v1056
    %v1058 = vmul.f32 %v1036, %v1057
    %v1059 = vmul.f32 %v1040, %v1057
    %v1060 = vmul.f32 %v1044, %v1057
    %v1061 = vmul.f32 %v1048, %v1057
    %v1062 = vmul.f32 %v1052, %v1057
    %v1063 = vadd.f32 %v1029, %v1058
    %v1064 = vadd.f32 %v1030, %v1059
    %v1065 = vadd.f32 %v1031, %v1060
    %v1066 = vadd.f32 %v1032, %v1061
    %v1067 = vadd.f32 %v1033, %v1062
    %1068 = vset.pattern.permute.xlu0 13
    %1069 = vperm.xlu0 %1068, %v621
    %v1070 = vpop.permute.xlu0 %1069
    %1072 = vset.pattern.permute.xlu0 13
    %1073 = vperm.xlu0 %1072, %v622
    %v1074 = vpop.permute.xlu0 %1073
    %1076 = vset.pattern.permute.xlu0 13
    %1077 = vperm.xlu0 %1076, %v623
    %v1078 = vpop.permute.xlu0 %1077
    %1080 = vset.pattern.permute.xlu0 13
    %1081 = vperm.xlu0 %1080, %v624
    %v1082 = vpop.permute.xlu0 %1081
    %1084 = vset.pattern.permute.xlu0 13
    %1085 = vperm.xlu0 %1084, %v625
    %v1086 = vpop.permute.xlu0 %1085
    %v1088 = vlaneseq
    %v1089 = vshrl.u32 %v1088, 7
    %v1090 = vsub.s32 5, %v1089
    %v1091 = vrot.slane %v620, %v1090
    %v1092 = vmul.f32 %v1070, %v1091
    %v1093 = vmul.f32 %v1074, %v1091
    %v1094 = vmul.f32 %v1078, %v1091
    %v1095 = vmul.f32 %v1082, %v1091
    %v1096 = vmul.f32 %v1086, %v1091
    %v1097 = vadd.f32 %v1063, %v1092
    %v1098 = vadd.f32 %v1064, %v1093
    %v1099 = vadd.f32 %v1065, %v1094
    %v1100 = vadd.f32 %v1066, %v1095
    %v1101 = vadd.f32 %v1067, %v1096
    %1102 = vset.pattern.permute.xlu0 14
    %1103 = vperm.xlu0 %1102, %v621
    %v1104 = vpop.permute.xlu0 %1103
    %1106 = vset.pattern.permute.xlu0 14
    %1107 = vperm.xlu0 %1106, %v622
    %v1108 = vpop.permute.xlu0 %1107
    %1110 = vset.pattern.permute.xlu0 14
    %1111 = vperm.xlu0 %1110, %v623
    %v1112 = vpop.permute.xlu0 %1111
    %1114 = vset.pattern.permute.xlu0 14
    %1115 = vperm.xlu0 %1114, %v624
    %v1116 = vpop.permute.xlu0 %1115
    %1118 = vset.pattern.permute.xlu0 14
    %1119 = vperm.xlu0 %1118, %v625
    %v1120 = vpop.permute.xlu0 %1119
    %v1122 = vlaneseq
    %v1123 = vshrl.u32 %v1122, 7
    %v1124 = vsub.s32 6, %v1123
    %v1125 = vrot.slane %v620, %v1124
    %v1126 = vmul.f32 %v1104, %v1125
    %v1127 = vmul.f32 %v1108, %v1125
    %v1128 = vmul.f32 %v1112, %v1125
    %v1129 = vmul.f32 %v1116, %v1125
    %v1130 = vmul.f32 %v1120, %v1125
    %v1131 = vadd.f32 %v1097, %v1126
    %v1132 = vadd.f32 %v1098, %v1127
    %v1133 = vadd.f32 %v1099, %v1128
    %v1134 = vadd.f32 %v1100, %v1129
    %v1135 = vadd.f32 %v1101, %v1130
    %1136 = vset.pattern.permute.xlu0 15
    %1137 = vperm.xlu0 %1136, %v621
    %v1138 = vpop.permute.xlu0 %1137
    %1140 = vset.pattern.permute.xlu0 15
    %1141 = vperm.xlu0 %1140, %v622
    %v1142 = vpop.permute.xlu0 %1141
    %1144 = vset.pattern.permute.xlu0 15
    %1145 = vperm.xlu0 %1144, %v623
    %v1146 = vpop.permute.xlu0 %1145
    %1148 = vset.pattern.permute.xlu0 15
    %1149 = vperm.xlu0 %1148, %v624
    %v1150 = vpop.permute.xlu0 %1149
    %1152 = vset.pattern.permute.xlu0 15
    %1153 = vperm.xlu0 %1152, %v625
    %v1154 = vpop.permute.xlu0 %1153
    %v1156 = vlaneseq
    %v1157 = vshrl.u32 %v1156, 7
    %v1158 = vsub.s32 7, %v1157
    %v1159 = vrot.slane %v620, %v1158
    %v1160 = vmul.f32 %v1138, %v1159
    %v1161 = vmul.f32 %v1142, %v1159
    %v1162 = vmul.f32 %v1146, %v1159
    %v1163 = vmul.f32 %v1150, %v1159
    %v1164 = vmul.f32 %v1154, %v1159
    %v1165 = vadd.f32 %v1131, %v1160
    %v1166 = vadd.f32 %v1132, %v1161
    %v1167 = vadd.f32 %v1133, %v1162
    %v1168 = vadd.f32 %v1134, %v1163
    %v1169 = vadd.f32 %v1135, %v1164
    %1170 = vst [vmem:[#allocation2] sm:$0xff] %v1165
    %1171 = vst [vmem:[#allocation2 + $0x8] sm:$0xff] %v1166
    %1172 = vst [vmem:[#allocation2 + $0x10] sm:$0xff] %v1167
    %1173 = vst [vmem:[#allocation2 + $0x18] sm:$0xff] %v1168
    %1174 = vst [vmem:[#allocation2 + $0x20] sm:$0xff] %v1169
    %v1175 = vld [vmem:[%s1 + $0x28] sm:$0xff]
    %v1176 = vld [vmem:[%s1 + $0x30] sm:$0xff]
    %v1177 = vld [vmem:[%s1 + $0x38] sm:$0xff]
    %v1178 = vld [vmem:[%s1 + $0x40] sm:$0xff]
    %v1179 = vld [vmem:[%s1 + $0x48] sm:$0xff]
    %1181 = vset.pattern.permute.xlu0 0
    %1182 = vperm.xlu0 %1181, %v1175
    %v1183 = vpop.permute.xlu0 %1182
    %1186 = vset.pattern.permute.xlu0 0
    %1187 = vperm.xlu0 %1186, %v1176
    %v1188 = vpop.permute.xlu0 %1187
    %1191 = vset.pattern.permute.xlu0 0
    %1192 = vperm.xlu0 %1191, %v1177
    %v1193 = vpop.permute.xlu0 %1192
    %1196 = vset.pattern.permute.xlu0 0
    %1197 = vperm.xlu0 %1196, %v1178
    %v1198 = vpop.permute.xlu0 %1197
    %1201 = vset.pattern.permute.xlu0 0
    %1202 = vperm.xlu0 %1201, %v1179
    %v1203 = vpop.permute.xlu0 %1202
    %v1205 = vmul.f32 %v1183, %v654
    %v1206 = vmul.f32 %v1188, %v654
    %v1207 = vmul.f32 %v1193, %v654
    %v1208 = vmul.f32 %v1198, %v654
    %v1209 = vmul.f32 %v1203, %v654
    %1210 = vset.pattern.permute.xlu0 1
    %1211 = vperm.xlu0 %1210, %v1175
    %v1212 = vpop.permute.xlu0 %1211
    %1214 = vset.pattern.permute.xlu0 1
    %1215 = vperm.xlu0 %1214, %v1176
    %v1216 = vpop.permute.xlu0 %1215
    %1218 = vset.pattern.permute.xlu0 1
    %1219 = vperm.xlu0 %1218, %v1177
    %v1220 = vpop.permute.xlu0 %1219
    %1222 = vset.pattern.permute.xlu0 1
    %1223 = vperm.xlu0 %1222, %v1178
    %v1224 = vpop.permute.xlu0 %1223
    %1226 = vset.pattern.permute.xlu0 1
    %1227 = vperm.xlu0 %1226, %v1179
    %v1228 = vpop.permute.xlu0 %1227
    %v1230 = vmul.f32 %v1212, %v683
    %v1231 = vmul.f32 %v1216, %v683
    %v1232 = vmul.f32 %v1220, %v683
    %v1233 = vmul.f32 %v1224, %v683
    %v1234 = vmul.f32 %v1228, %v683
    %v1235 = vadd.f32 %v1205, %v1230
    %v1236 = vadd.f32 %v1206, %v1231
    %v1237 = vadd.f32 %v1207, %v1232
    %v1238 = vadd.f32 %v1208, %v1233
    %v1239 = vadd.f32 %v1209, %v1234
    %1240 = vset.pattern.permute.xlu0 2
    %1241 = vperm.xlu0 %1240, %v1175
    %v1242 = vpop.permute.xlu0 %1241
    %1244 = vset.pattern.permute.xlu0 2
    %1245 = vperm.xlu0 %1244, %v1176
    %v1246 = vpop.permute.xlu0 %1245
    %1248 = vset.pattern.permute.xlu0 2
    %1249 = vperm.xlu0 %1248, %v1177
    %v1250 = vpop.permute.xlu0 %1249
    %1252 = vset.pattern.permute.xlu0 2
    %1253 = vperm.xlu0 %1252, %v1178
    %v1254 = vpop.permute.xlu0 %1253
    %1256 = vset.pattern.permute.xlu0 2
    %1257 = vperm.xlu0 %1256, %v1179
    %v1258 = vpop.permute.xlu0 %1257
    %v1260 = vmul.f32 %v1242, %v717
    %v1261 = vmul.f32 %v1246, %v717
    %v1262 = vmul.f32 %v1250, %v717
    %v1263 = vmul.f32 %v1254, %v717
    %v1264 = vmul.f32 %v1258, %v717
    %v1265 = vadd.f32 %v1235, %v1260
    %v1266 = vadd.f32 %v1236, %v1261
    %v1267 = vadd.f32 %v1237, %v1262
    %v1268 = vadd.f32 %v1238, %v1263
    %v1269 = vadd.f32 %v1239, %v1264
    %1270 = vset.pattern.permute.xlu0 3
    %1271 = vperm.xlu0 %1270, %v1175
    %v1272 = vpop.permute.xlu0 %1271
    %1274 = vset.pattern.permute.xlu0 3
    %1275 = vperm.xlu0 %1274, %v1176
    %v1276 = vpop.permute.xlu0 %1275
    %1278 = vset.pattern.permute.xlu0 3
    %1279 = vperm.xlu0 %1278, %v1177
    %v1280 = vpop.permute.xlu0 %1279
    %1282 = vset.pattern.permute.xlu0 3
    %1283 = vperm.xlu0 %1282, %v1178
    %v1284 = vpop.permute.xlu0 %1283
    %1286 = vset.pattern.permute.xlu0 3
    %1287 = vperm.xlu0 %1286, %v1179
    %v1288 = vpop.permute.xlu0 %1287
    %v1290 = vmul.f32 %v1272, %v751
    %v1291 = vmul.f32 %v1276, %v751
    %v1292 = vmul.f32 %v1280, %v751
    %v1293 = vmul.f32 %v1284, %v751
    %v1294 = vmul.f32 %v1288, %v751
    %v1295 = vadd.f32 %v1265, %v1290
    %v1296 = vadd.f32 %v1266, %v1291
    %v1297 = vadd.f32 %v1267, %v1292
    %v1298 = vadd.f32 %v1268, %v1293
    %v1299 = vadd.f32 %v1269, %v1294
    %1300 = vset.pattern.permute.xlu0 4
    %1301 = vperm.xlu0 %1300, %v1175
    %v1302 = vpop.permute.xlu0 %1301
    %1304 = vset.pattern.permute.xlu0 4
    %1305 = vperm.xlu0 %1304, %v1176
    %v1306 = vpop.permute.xlu0 %1305
    %1308 = vset.pattern.permute.xlu0 4
    %1309 = vperm.xlu0 %1308, %v1177
    %v1310 = vpop.permute.xlu0 %1309
    %1312 = vset.pattern.permute.xlu0 4
    %1313 = vperm.xlu0 %1312, %v1178
    %v1314 = vpop.permute.xlu0 %1313
    %1316 = vset.pattern.permute.xlu0 4
    %1317 = vperm.xlu0 %1316, %v1179
    %v1318 = vpop.permute.xlu0 %1317
    %v1320 = vmul.f32 %v1302, %v785
    %v1321 = vmul.f32 %v1306, %v785
    %v1322 = vmul.f32 %v1310, %v785
    %v1323 = vmul.f32 %v1314, %v785
    %v1324 = vmul.f32 %v1318, %v785
    %v1325 = vadd.f32 %v1295, %v1320
    %v1326 = vadd.f32 %v1296, %v1321
    %v1327 = vadd.f32 %v1297, %v1322
    %v1328 = vadd.f32 %v1298, %v1323
    %v1329 = vadd.f32 %v1299, %v1324
    %1330 = vset.pattern.permute.xlu0 5
    %1331 = vperm.xlu0 %1330, %v1175
    %v1332 = vpop.permute.xlu0 %1331
    %1334 = vset.pattern.permute.xlu0 5
    %1335 = vperm.xlu0 %1334, %v1176
    %v1336 = vpop.permute.xlu0 %1335
    %1338 = vset.pattern.permute.xlu0 5
    %1339 = vperm.xlu0 %1338, %v1177
    %v1340 = vpop.permute.xlu0 %1339
    %1342 = vset.pattern.permute.xlu0 5
    %1343 = vperm.xlu0 %1342, %v1178
    %v1344 = vpop.permute.xlu0 %1343
    %1346 = vset.pattern.permute.xlu0 5
    %1347 = vperm.xlu0 %1346, %v1179
    %v1348 = vpop.permute.xlu0 %1347
    %v1350 = vmul.f32 %v1332, %v819
    %v1351 = vmul.f32 %v1336, %v819
    %v1352 = vmul.f32 %v1340, %v819
    %v1353 = vmul.f32 %v1344, %v819
    %v1354 = vmul.f32 %v1348, %v819
    %v1355 = vadd.f32 %v1325, %v1350
    %v1356 = vadd.f32 %v1326, %v1351
    %v1357 = vadd.f32 %v1327, %v1352
    %v1358 = vadd.f32 %v1328, %v1353
    %v1359 = vadd.f32 %v1329, %v1354
    %1360 = vset.pattern.permute.xlu0 6
    %1361 = vperm.xlu0 %1360, %v1175
    %v1362 = vpop.permute.xlu0 %1361
    %1364 = vset.pattern.permute.xlu0 6
    %1365 = vperm.xlu0 %1364, %v1176
    %v1366 = vpop.permute.xlu0 %1365
    %1368 = vset.pattern.permute.xlu0 6
    %1369 = vperm.xlu0 %1368, %v1177
    %v1370 = vpop.permute.xlu0 %1369
    %1372 = vset.pattern.permute.xlu0 6
    %1373 = vperm.xlu0 %1372, %v1178
    %v1374 = vpop.permute.xlu0 %1373
    %1376 = vset.pattern.permute.xlu0 6
    %1377 = vperm.xlu0 %1376, %v1179
    %v1378 = vpop.permute.xlu0 %1377
    %v1380 = vmul.f32 %v1362, %v853
    %v1381 = vmul.f32 %v1366, %v853
    %v1382 = vmul.f32 %v1370, %v853
    %v1383 = vmul.f32 %v1374, %v853
    %v1384 = vmul.f32 %v1378, %v853
    %v1385 = vadd.f32 %v1355, %v1380
    %v1386 = vadd.f32 %v1356, %v1381
    %v1387 = vadd.f32 %v1357, %v1382
    %v1388 = vadd.f32 %v1358, %v1383
    %v1389 = vadd.f32 %v1359, %v1384
    %1390 = vset.pattern.permute.xlu0 7
    %1391 = vperm.xlu0 %1390, %v1175
    %v1392 = vpop.permute.xlu0 %1391
    %1394 = vset.pattern.permute.xlu0 7
    %1395 = vperm.xlu0 %1394, %v1176
    %v1396 = vpop.permute.xlu0 %1395
    %1398 = vset.pattern.permute.xlu0 7
    %1399 = vperm.xlu0 %1398, %v1177
    %v1400 = vpop.permute.xlu0 %1399
    %1402 = vset.pattern.permute.xlu0 7
    %1403 = vperm.xlu0 %1402, %v1178
    %v1404 = vpop.permute.xlu0 %1403
    %1406 = vset.pattern.permute.xlu0 7
    %1407 = vperm.xlu0 %1406, %v1179
    %v1408 = vpop.permute.xlu0 %1407
    %v1410 = vmul.f32 %v1392, %v887
    %v1411 = vmul.f32 %v1396, %v887
    %v1412 = vmul.f32 %v1400, %v887
    %v1413 = vmul.f32 %v1404, %v887
    %v1414 = vmul.f32 %v1408, %v887
    %v1415 = vadd.f32 %v1385, %v1410
    %v1416 = vadd.f32 %v1386, %v1411
    %v1417 = vadd.f32 %v1387, %v1412
    %v1418 = vadd.f32 %v1388, %v1413
    %v1419 = vadd.f32 %v1389, %v1414
    %1420 = vset.pattern.permute.xlu0 8
    %1421 = vperm.xlu0 %1420, %v1175
    %v1422 = vpop.permute.xlu0 %1421
    %1424 = vset.pattern.permute.xlu0 8
    %1425 = vperm.xlu0 %1424, %v1176
    %v1426 = vpop.permute.xlu0 %1425
    %1428 = vset.pattern.permute.xlu0 8
    %1429 = vperm.xlu0 %1428, %v1177
    %v1430 = vpop.permute.xlu0 %1429
    %1432 = vset.pattern.permute.xlu0 8
    %1433 = vperm.xlu0 %1432, %v1178
    %v1434 = vpop.permute.xlu0 %1433
    %1436 = vset.pattern.permute.xlu0 8
    %1437 = vperm.xlu0 %1436, %v1179
    %v1438 = vpop.permute.xlu0 %1437
    %v1440 = vmul.f32 %v1422, %v921
    %v1441 = vmul.f32 %v1426, %v921
    %v1442 = vmul.f32 %v1430, %v921
    %v1443 = vmul.f32 %v1434, %v921
    %v1444 = vmul.f32 %v1438, %v921
    %v1445 = vadd.f32 %v1415, %v1440
    %v1446 = vadd.f32 %v1416, %v1441
    %v1447 = vadd.f32 %v1417, %v1442
    %v1448 = vadd.f32 %v1418, %v1443
    %v1449 = vadd.f32 %v1419, %v1444
    %1450 = vset.pattern.permute.xlu0 9
    %1451 = vperm.xlu0 %1450, %v1175
    %v1452 = vpop.permute.xlu0 %1451
    %1454 = vset.pattern.permute.xlu0 9
    %1455 = vperm.xlu0 %1454, %v1176
    %v1456 = vpop.permute.xlu0 %1455
    %1458 = vset.pattern.permute.xlu0 9
    %1459 = vperm.xlu0 %1458, %v1177
    %v1460 = vpop.permute.xlu0 %1459
    %1462 = vset.pattern.permute.xlu0 9
    %1463 = vperm.xlu0 %1462, %v1178
    %v1464 = vpop.permute.xlu0 %1463
    %1466 = vset.pattern.permute.xlu0 9
    %1467 = vperm.xlu0 %1466, %v1179
    %v1468 = vpop.permute.xlu0 %1467
    %v1470 = vmul.f32 %v1452, %v955
    %v1471 = vmul.f32 %v1456, %v955
    %v1472 = vmul.f32 %v1460, %v955
    %v1473 = vmul.f32 %v1464, %v955
    %v1474 = vmul.f32 %v1468, %v955
    %v1475 = vadd.f32 %v1445, %v1470
    %v1476 = vadd.f32 %v1446, %v1471
    %v1477 = vadd.f32 %v1447, %v1472
    %v1478 = vadd.f32 %v1448, %v1473
    %v1479 = vadd.f32 %v1449, %v1474
    %1480 = vset.pattern.permute.xlu0 10
    %1481 = vperm.xlu0 %1480, %v1175
    %v1482 = vpop.permute.xlu0 %1481
    %1484 = vset.pattern.permute.xlu0 10
    %1485 = vperm.xlu0 %1484, %v1176
    %v1486 = vpop.permute.xlu0 %1485
    %1488 = vset.pattern.permute.xlu0 10
    %1489 = vperm.xlu0 %1488, %v1177
    %v1490 = vpop.permute.xlu0 %1489
    %1492 = vset.pattern.permute.xlu0 10
    %1493 = vperm.xlu0 %1492, %v1178
    %v1494 = vpop.permute.xlu0 %1493
    %1496 = vset.pattern.permute.xlu0 10
    %1497 = vperm.xlu0 %1496, %v1179
    %v1498 = vpop.permute.xlu0 %1497
    %v1500 = vmul.f32 %v1482, %v989
    %v1501 = vmul.f32 %v1486, %v989
    %v1502 = vmul.f32 %v1490, %v989
    %v1503 = vmul.f32 %v1494, %v989
    %v1504 = vmul.f32 %v1498, %v989
    %v1505 = vadd.f32 %v1475, %v1500
    %v1506 = vadd.f32 %v1476, %v1501
    %v1507 = vadd.f32 %v1477, %v1502
    %v1508 = vadd.f32 %v1478, %v1503
    %v1509 = vadd.f32 %v1479, %v1504
    %1510 = vset.pattern.permute.xlu0 11
    %1511 = vperm.xlu0 %1510, %v1175
    %v1512 = vpop.permute.xlu0 %1511
    %1514 = vset.pattern.permute.xlu0 11
    %1515 = vperm.xlu0 %1514, %v1176
    %v1516 = vpop.permute.xlu0 %1515
    %1518 = vset.pattern.permute.xlu0 11
    %1519 = vperm.xlu0 %1518, %v1177
    %v1520 = vpop.permute.xlu0 %1519
    %1522 = vset.pattern.permute.xlu0 11
    %1523 = vperm.xlu0 %1522, %v1178
    %v1524 = vpop.permute.xlu0 %1523
    %1526 = vset.pattern.permute.xlu0 11
    %1527 = vperm.xlu0 %1526, %v1179
    %v1528 = vpop.permute.xlu0 %1527
    %v1530 = vmul.f32 %v1512, %v1023
    %v1531 = vmul.f32 %v1516, %v1023
    %v1532 = vmul.f32 %v1520, %v1023
    %v1533 = vmul.f32 %v1524, %v1023
    %v1534 = vmul.f32 %v1528, %v1023
    %v1535 = vadd.f32 %v1505, %v1530
    %v1536 = vadd.f32 %v1506, %v1531
    %v1537 = vadd.f32 %v1507, %v1532
    %v1538 = vadd.f32 %v1508, %v1533
    %v1539 = vadd.f32 %v1509, %v1534
    %1540 = vset.pattern.permute.xlu0 12
    %1541 = vperm.xlu0 %1540, %v1175
    %v1542 = vpop.permute.xlu0 %1541
    %1544 = vset.pattern.permute.xlu0 12
    %1545 = vperm.xlu0 %1544, %v1176
    %v1546 = vpop.permute.xlu0 %1545
    %1548 = vset.pattern.permute.xlu0 12
    %1549 = vperm.xlu0 %1548, %v1177
    %v1550 = vpop.permute.xlu0 %1549
    %1552 = vset.pattern.permute.xlu0 12
    %1553 = vperm.xlu0 %1552, %v1178
    %v1554 = vpop.permute.xlu0 %1553
    %1556 = vset.pattern.permute.xlu0 12
    %1557 = vperm.xlu0 %1556, %v1179
    %v1558 = vpop.permute.xlu0 %1557
    %v1560 = vmul.f32 %v1542, %v1057
    %v1561 = vmul.f32 %v1546, %v1057
    %v1562 = vmul.f32 %v1550, %v1057
    %v1563 = vmul.f32 %v1554, %v1057
    %v1564 = vmul.f32 %v1558, %v1057
    %v1565 = vadd.f32 %v1535, %v1560
    %v1566 = vadd.f32 %v1536, %v1561
    %v1567 = vadd.f32 %v1537, %v1562
    %v1568 = vadd.f32 %v1538, %v1563
    %v1569 = vadd.f32 %v1539, %v1564
    %1570 = vset.pattern.permute.xlu0 13
    %1571 = vperm.xlu0 %1570, %v1175
    %v1572 = vpop.permute.xlu0 %1571
    %1574 = vset.pattern.permute.xlu0 13
    %1575 = vperm.xlu0 %1574, %v1176
    %v1576 = vpop.permute.xlu0 %1575
    %1578 = vset.pattern.permute.xlu0 13
    %1579 = vperm.xlu0 %1578, %v1177
    %v1580 = vpop.permute.xlu0 %1579
    %1582 = vset.pattern.permute.xlu0 13
    %1583 = vperm.xlu0 %1582, %v1178
    %v1584 = vpop.permute.xlu0 %1583
    %1586 = vset.pattern.permute.xlu0 13
    %1587 = vperm.xlu0 %1586, %v1179
    %v1588 = vpop.permute.xlu0 %1587
    %v1590 = vmul.f32 %v1572, %v1091
    %v1591 = vmul.f32 %v1576, %v1091
    %v1592 = vmul.f32 %v1580, %v1091
    %v1593 = vmul.f32 %v1584, %v1091
    %v1594 = vmul.f32 %v1588, %v1091
    %v1595 = vadd.f32 %v1565, %v1590
    %v1596 = vadd.f32 %v1566, %v1591
    %v1597 = vadd.f32 %v1567, %v1592
    %v1598 = vadd.f32 %v1568, %v1593
    %v1599 = vadd.f32 %v1569, %v1594
    %1600 = vset.pattern.permute.xlu0 14
    %1601 = vperm.xlu0 %1600, %v1175
    %v1602 = vpop.permute.xlu0 %1601
    %1604 = vset.pattern.permute.xlu0 14
    %1605 = vperm.xlu0 %1604, %v1176
    %v1606 = vpop.permute.xlu0 %1605
    %1608 = vset.pattern.permute.xlu0 14
    %1609 = vperm.xlu0 %1608, %v1177
    %v1610 = vpop.permute.xlu0 %1609
    %1612 = vset.pattern.permute.xlu0 14
    %1613 = vperm.xlu0 %1612, %v1178
    %v1614 = vpop.permute.xlu0 %1613
    %1616 = vset.pattern.permute.xlu0 14
    %1617 = vperm.xlu0 %1616, %v1179
    %v1618 = vpop.permute.xlu0 %1617
    %v1620 = vmul.f32 %v1602, %v1125
    %v1621 = vmul.f32 %v1606, %v1125
    %v1622 = vmul.f32 %v1610, %v1125
    %v1623 = vmul.f32 %v1614, %v1125
    %v1624 = vmul.f32 %v1618, %v1125
    %v1625 = vadd.f32 %v1595, %v1620
    %v1626 = vadd.f32 %v1596, %v1621
    %v1627 = vadd.f32 %v1597, %v1622
    %v1628 = vadd.f32 %v1598, %v1623
    %v1629 = vadd.f32 %v1599, %v1624
    %1630 = vset.pattern.permute.xlu0 15
    %1631 = vperm.xlu0 %1630, %v1175
    %v1632 = vpop.permute.xlu0 %1631
    %1634 = vset.pattern.permute.xlu0 15
    %1635 = vperm.xlu0 %1634, %v1176
    %v1636 = vpop.permute.xlu0 %1635
    %1638 = vset.pattern.permute.xlu0 15
    %1639 = vperm.xlu0 %1638, %v1177
    %v1640 = vpop.permute.xlu0 %1639
    %1642 = vset.pattern.permute.xlu0 15
    %1643 = vperm.xlu0 %1642, %v1178
    %v1644 = vpop.permute.xlu0 %1643
    %1646 = vset.pattern.permute.xlu0 15
    %1647 = vperm.xlu0 %1646, %v1179
    %v1648 = vpop.permute.xlu0 %1647
    %v1650 = vmul.f32 %v1632, %v1159
    %v1651 = vmul.f32 %v1636, %v1159
    %v1652 = vmul.f32 %v1640, %v1159
    %v1653 = vmul.f32 %v1644, %v1159
    %v1654 = vmul.f32 %v1648, %v1159
    %v1655 = vadd.f32 %v1625, %v1650
    %v1656 = vadd.f32 %v1626, %v1651
    %v1657 = vadd.f32 %v1627, %v1652
    %v1658 = vadd.f32 %v1628, %v1653
    %v1659 = vadd.f32 %v1629, %v1654
    %1660 = vst [vmem:[#allocation2 + $0x28] sm:$0xff] %v1655
    %1661 = vst [vmem:[#allocation2 + $0x30] sm:$0xff] %v1656
    %1662 = vst [vmem:[#allocation2 + $0x38] sm:$0xff] %v1657
    %1663 = vst [vmem:[#allocation2 + $0x40] sm:$0xff] %v1658
    %1664 = vst [vmem:[#allocation2 + $0x48] sm:$0xff] %v1659
    %v1665 = vld [vmem:[%s1 + $0x50] sm:$0xff]
    %v1666 = vld [vmem:[%s1 + $0x58] sm:$0xff]
    %v1667 = vld [vmem:[%s1 + $0x60] sm:$0xff]
    %v1668 = vld [vmem:[%s1 + $0x68] sm:$0xff]
    %v1669 = vld [vmem:[%s1 + $0x70] sm:$0xff]
    %1671 = vset.pattern.permute.xlu0 0
    %1672 = vperm.xlu0 %1671, %v1665
    %v1673 = vpop.permute.xlu0 %1672
    %1676 = vset.pattern.permute.xlu0 0
    %1677 = vperm.xlu0 %1676, %v1666
    %v1678 = vpop.permute.xlu0 %1677
    %1681 = vset.pattern.permute.xlu0 0
    %1682 = vperm.xlu0 %1681, %v1667
    %v1683 = vpop.permute.xlu0 %1682
    %1686 = vset.pattern.permute.xlu0 0
    %1687 = vperm.xlu0 %1686, %v1668
    %v1688 = vpop.permute.xlu0 %1687
    %1691 = vset.pattern.permute.xlu0 0
    %1692 = vperm.xlu0 %1691, %v1669
    %v1693 = vpop.permute.xlu0 %1692
    %v1695 = vmul.f32 %v1673, %v654
    %v1696 = vmul.f32 %v1678, %v654
    %v1697 = vmul.f32 %v1683, %v654
    %v1698 = vmul.f32 %v1688, %v654
    %v1699 = vmul.f32 %v1693, %v654
    %1700 = vset.pattern.permute.xlu0 1
    %1701 = vperm.xlu0 %1700, %v1665
    %v1702 = vpop.permute.xlu0 %1701
    %1704 = vset.pattern.permute.xlu0 1
    %1705 = vperm.xlu0 %1704, %v1666
    %v1706 = vpop.permute.xlu0 %1705
    %1708 = vset.pattern.permute.xlu0 1
    %1709 = vperm.xlu0 %1708, %v1667
    %v1710 = vpop.permute.xlu0 %1709
    %1712 = vset.pattern.permute.xlu0 1
    %1713 = vperm.xlu0 %1712, %v1668
    %v1714 = vpop.permute.xlu0 %1713
    %1716 = vset.pattern.permute.xlu0 1
    %1717 = vperm.xlu0 %1716, %v1669
    %v1718 = vpop.permute.xlu0 %1717
    %v1720 = vmul.f32 %v1702, %v683
    %v1721 = vmul.f32 %v1706, %v683
    %v1722 = vmul.f32 %v1710, %v683
    %v1723 = vmul.f32 %v1714, %v683
    %v1724 = vmul.f32 %v1718, %v683
    %v1725 = vadd.f32 %v1695, %v1720
    %v1726 = vadd.f32 %v1696, %v1721
    %v1727 = vadd.f32 %v1697, %v1722
    %v1728 = vadd.f32 %v1698, %v1723
    %v1729 = vadd.f32 %v1699, %v1724
    %1730 = vset.pattern.permute.xlu0 2
    %1731 = vperm.xlu0 %1730, %v1665
    %v1732 = vpop.permute.xlu0 %1731
    %1734 = vset.pattern.permute.xlu0 2
    %1735 = vperm.xlu0 %1734, %v1666
    %v1736 = vpop.permute.xlu0 %1735
    %1738 = vset.pattern.permute.xlu0 2
    %1739 = vperm.xlu0 %1738, %v1667
    %v1740 = vpop.permute.xlu0 %1739
    %1742 = vset.pattern.permute.xlu0 2
    %1743 = vperm.xlu0 %1742, %v1668
    %v1744 = vpop.permute.xlu0 %1743
    %1746 = vset.pattern.permute.xlu0 2
    %1747 = vperm.xlu0 %1746, %v1669
    %v1748 = vpop.permute.xlu0 %1747
    %v1750 = vmul.f32 %v1732, %v717
    %v1751 = vmul.f32 %v1736, %v717
    %v1752 = vmul.f32 %v1740, %v717
    %v1753 = vmul.f32 %v1744, %v717
    %v1754 = vmul.f32 %v1748, %v717
    %v1755 = vadd.f32 %v1725, %v1750
    %v1756 = vadd.f32 %v1726, %v1751
    %v1757 = vadd.f32 %v1727, %v1752
    %v1758 = vadd.f32 %v1728, %v1753
    %v1759 = vadd.f32 %v1729, %v1754
    %1760 = vset.pattern.permute.xlu0 3
    %1761 = vperm.xlu0 %1760, %v1665
    %v1762 = vpop.permute.xlu0 %1761
    %1764 = vset.pattern.permute.xlu0 3
    %1765 = vperm.xlu0 %1764, %v1666
    %v1766 = vpop.permute.xlu0 %1765
    %1768 = vset.pattern.permute.xlu0 3
    %1769 = vperm.xlu0 %1768, %v1667
    %v1770 = vpop.permute.xlu0 %1769
    %1772 = vset.pattern.permute.xlu0 3
    %1773 = vperm.xlu0 %1772, %v1668
    %v1774 = vpop.permute.xlu0 %1773
    %1776 = vset.pattern.permute.xlu0 3
    %1777 = vperm.xlu0 %1776, %v1669
    %v1778 = vpop.permute.xlu0 %1777
    %v1780 = vmul.f32 %v1762, %v751
    %v1781 = vmul.f32 %v1766, %v751
    %v1782 = vmul.f32 %v1770, %v751
    %v1783 = vmul.f32 %v1774, %v751
    %v1784 = vmul.f32 %v1778, %v751
    %v1785 = vadd.f32 %v1755, %v1780
    %v1786 = vadd.f32 %v1756, %v1781
    %v1787 = vadd.f32 %v1757, %v1782
    %v1788 = vadd.f32 %v1758, %v1783
    %v1789 = vadd.f32 %v1759, %v1784
    %1790 = vset.pattern.permute.xlu0 4
    %1791 = vperm.xlu0 %1790, %v1665
    %v1792 = vpop.permute.xlu0 %1791
    %1794 = vset.pattern.permute.xlu0 4
    %1795 = vperm.xlu0 %1794, %v1666
    %v1796 = vpop.permute.xlu0 %1795
    %1798 = vset.pattern.permute.xlu0 4
    %1799 = vperm.xlu0 %1798, %v1667
    %v1800 = vpop.permute.xlu0 %1799
    %1802 = vset.pattern.permute.xlu0 4
    %1803 = vperm.xlu0 %1802, %v1668
    %v1804 = vpop.permute.xlu0 %1803
    %1806 = vset.pattern.permute.xlu0 4
    %1807 = vperm.xlu0 %1806, %v1669
    %v1808 = vpop.permute.xlu0 %1807
    %v1810 = vmul.f32 %v1792, %v785
    %v1811 = vmul.f32 %v1796, %v785
    %v1812 = vmul.f32 %v1800, %v785
    %v1813 = vmul.f32 %v1804, %v785
    %v1814 = vmul.f32 %v1808, %v785
    %v1815 = vadd.f32 %v1785, %v1810
    %v1816 = vadd.f32 %v1786, %v1811
    %v1817 = vadd.f32 %v1787, %v1812
    %v1818 = vadd.f32 %v1788, %v1813
    %v1819 = vadd.f32 %v1789, %v1814
    %1820 = vset.pattern.permute.xlu0 5
    %1821 = vperm.xlu0 %1820, %v1665
    %v1822 = vpop.permute.xlu0 %1821
    %1824 = vset.pattern.permute.xlu0 5
    %1825 = vperm.xlu0 %1824, %v1666
    %v1826 = vpop.permute.xlu0 %1825
    %1828 = vset.pattern.permute.xlu0 5
    %1829 = vperm.xlu0 %1828, %v1667
    %v1830 = vpop.permute.xlu0 %1829
    %1832 = vset.pattern.permute.xlu0 5
    %1833 = vperm.xlu0 %1832, %v1668
    %v1834 = vpop.permute.xlu0 %1833
    %1836 = vset.pattern.permute.xlu0 5
    %1837 = vperm.xlu0 %1836, %v1669
    %v1838 = vpop.permute.xlu0 %1837
    %v1840 = vmul.f32 %v1822, %v819
    %v1841 = vmul.f32 %v1826, %v819
    %v1842 = vmul.f32 %v1830, %v819
    %v1843 = vmul.f32 %v1834, %v819
    %v1844 = vmul.f32 %v1838, %v819
    %v1845 = vadd.f32 %v1815, %v1840
    %v1846 = vadd.f32 %v1816, %v1841
    %v1847 = vadd.f32 %v1817, %v1842
    %v1848 = vadd.f32 %v1818, %v1843
    %v1849 = vadd.f32 %v1819, %v1844
    %1850 = vset.pattern.permute.xlu0 6
    %1851 = vperm.xlu0 %1850, %v1665
    %v1852 = vpop.permute.xlu0 %1851
    %1854 = vset.pattern.permute.xlu0 6
    %1855 = vperm.xlu0 %1854, %v1666
    %v1856 = vpop.permute.xlu0 %1855
    %1858 = vset.pattern.permute.xlu0 6
    %1859 = vperm.xlu0 %1858, %v1667
    %v1860 = vpop.permute.xlu0 %1859
    %1862 = vset.pattern.permute.xlu0 6
    %1863 = vperm.xlu0 %1862, %v1668
    %v1864 = vpop.permute.xlu0 %1863
    %1866 = vset.pattern.permute.xlu0 6
    %1867 = vperm.xlu0 %1866, %v1669
    %v1868 = vpop.permute.xlu0 %1867
    %v1870 = vmul.f32 %v1852, %v853
    %v1871 = vmul.f32 %v1856, %v853
    %v1872 = vmul.f32 %v1860, %v853
    %v1873 = vmul.f32 %v1864, %v853
    %v1874 = vmul.f32 %v1868, %v853
    %v1875 = vadd.f32 %v1845, %v1870
    %v1876 = vadd.f32 %v1846, %v1871
    %v1877 = vadd.f32 %v1847, %v1872
    %v1878 = vadd.f32 %v1848, %v1873
    %v1879 = vadd.f32 %v1849, %v1874
    %1880 = vset.pattern.permute.xlu0 7
    %1881 = vperm.xlu0 %1880, %v1665
    %v1882 = vpop.permute.xlu0 %1881
    %1884 = vset.pattern.permute.xlu0 7
    %1885 = vperm.xlu0 %1884, %v1666
    %v1886 = vpop.permute.xlu0 %1885
    %1888 = vset.pattern.permute.xlu0 7
    %1889 = vperm.xlu0 %1888, %v1667
    %v1890 = vpop.permute.xlu0 %1889
    %1892 = vset.pattern.permute.xlu0 7
    %1893 = vperm.xlu0 %1892, %v1668
    %v1894 = vpop.permute.xlu0 %1893
    %1896 = vset.pattern.permute.xlu0 7
    %1897 = vperm.xlu0 %1896, %v1669
    %v1898 = vpop.permute.xlu0 %1897
    %v1900 = vmul.f32 %v1882, %v887
    %v1901 = vmul.f32 %v1886, %v887
    %v1902 = vmul.f32 %v1890, %v887
    %v1903 = vmul.f32 %v1894, %v887
    %v1904 = vmul.f32 %v1898, %v887
    %v1905 = vadd.f32 %v1875, %v1900
    %v1906 = vadd.f32 %v1876, %v1901
    %v1907 = vadd.f32 %v1877, %v1902
    %v1908 = vadd.f32 %v1878, %v1903
    %v1909 = vadd.f32 %v1879, %v1904
    %1910 = vset.pattern.permute.xlu0 8
    %1911 = vperm.xlu0 %1910, %v1665
    %v1912 = vpop.permute.xlu0 %1911
    %1914 = vset.pattern.permute.xlu0 8
    %1915 = vperm.xlu0 %1914, %v1666
    %v1916 = vpop.permute.xlu0 %1915
    %1918 = vset.pattern.permute.xlu0 8
    %1919 = vperm.xlu0 %1918, %v1667
    %v1920 = vpop.permute.xlu0 %1919
    %1922 = vset.pattern.permute.xlu0 8
    %1923 = vperm.xlu0 %1922, %v1668
    %v1924 = vpop.permute.xlu0 %1923
    %1926 = vset.pattern.permute.xlu0 8
    %1927 = vperm.xlu0 %1926, %v1669
    %v1928 = vpop.permute.xlu0 %1927
    %v1930 = vmul.f32 %v1912, %v921
    %v1931 = vmul.f32 %v1916, %v921
    %v1932 = vmul.f32 %v1920, %v921
    %v1933 = vmul.f32 %v1924, %v921
    %v1934 = vmul.f32 %v1928, %v921
    %v1935 = vadd.f32 %v1905, %v1930
    %v1936 = vadd.f32 %v1906, %v1931
    %v1937 = vadd.f32 %v1907, %v1932
    %v1938 = vadd.f32 %v1908, %v1933
    %v1939 = vadd.f32 %v1909, %v1934
    %1940 = vset.pattern.permute.xlu0 9
    %1941 = vperm.xlu0 %1940, %v1665
    %v1942 = vpop.permute.xlu0 %1941
    %1944 = vset.pattern.permute.xlu0 9
    %1945 = vperm.xlu0 %1944, %v1666
    %v1946 = vpop.permute.xlu0 %1945
    %1948 = vset.pattern.permute.xlu0 9
    %1949 = vperm.xlu0 %1948, %v1667
    %v1950 = vpop.permute.xlu0 %1949
    %1952 = vset.pattern.permute.xlu0 9
    %1953 = vperm.xlu0 %1952, %v1668
    %v1954 = vpop.permute.xlu0 %1953
    %1956 = vset.pattern.permute.xlu0 9
    %1957 = vperm.xlu0 %1956, %v1669
    %v1958 = vpop.permute.xlu0 %1957
    %v1960 = vmul.f32 %v1942, %v955
    %v1961 = vmul.f32 %v1946, %v955
    %v1962 = vmul.f32 %v1950, %v955
    %v1963 = vmul.f32 %v1954, %v955
    %v1964 = vmul.f32 %v1958, %v955
    %v1965 = vadd.f32 %v1935, %v1960
    %v1966 = vadd.f32 %v1936, %v1961
    %v1967 = vadd.f32 %v1937, %v1962
    %v1968 = vadd.f32 %v1938, %v1963
    %v1969 = vadd.f32 %v1939, %v1964
    %1970 = vset.pattern.permute.xlu0 10
    %1971 = vperm.xlu0 %1970, %v1665
    %v1972 = vpop.permute.xlu0 %1971
    %1974 = vset.pattern.permute.xlu0 10
    %1975 = vperm.xlu0 %1974, %v1666
    %v1976 = vpop.permute.xlu0 %1975
    %1978 = vset.pattern.permute.xlu0 10
    %1979 = vperm.xlu0 %1978, %v1667
    %v1980 = vpop.permute.xlu0 %1979
    %1982 = vset.pattern.permute.xlu0 10
    %1983 = vperm.xlu0 %1982, %v1668
    %v1984 = vpop.permute.xlu0 %1983
    %1986 = vset.pattern.permute.xlu0 10
    %1987 = vperm.xlu0 %1986, %v1669
    %v1988 = vpop.permute.xlu0 %1987
    %v1990 = vmul.f32 %v1972, %v989
    %v1991 = vmul.f32 %v1976, %v989
    %v1992 = vmul.f32 %v1980, %v989
    %v1993 = vmul.f32 %v1984, %v989
    %v1994 = vmul.f32 %v1988, %v989
    %v1995 = vadd.f32 %v1965, %v1990
    %v1996 = vadd.f32 %v1966, %v1991
    %v1997 = vadd.f32 %v1967, %v1992
    %v1998 = vadd.f32 %v1968, %v1993
    %v1999 = vadd.f32 %v1969, %v1994
    %2000 = vset.pattern.permute.xlu0 11
    %2001 = vperm.xlu0 %2000, %v1665
    %v2002 = vpop.permute.xlu0 %2001
    %2004 = vset.pattern.permute.xlu0 11
    %2005 = vperm.xlu0 %2004, %v1666
    %v2006 = vpop.permute.xlu0 %2005
    %2008 = vset.pattern.permute.xlu0 11
    %2009 = vperm.xlu0 %2008, %v1667
    %v2010 = vpop.permute.xlu0 %2009
    %2012 = vset.pattern.permute.xlu0 11
    %2013 = vperm.xlu0 %2012, %v1668
    %v2014 = vpop.permute.xlu0 %2013
    %2016 = vset.pattern.permute.xlu0 11
    %2017 = vperm.xlu0 %2016, %v1669
    %v2018 = vpop.permute.xlu0 %2017
    %v2020 = vmul.f32 %v2002, %v1023
    %v2021 = vmul.f32 %v2006, %v1023
    %v2022 = vmul.f32 %v2010, %v1023
    %v2023 = vmul.f32 %v2014, %v1023
    %v2024 = vmul.f32 %v2018, %v1023
    %v2025 = vadd.f32 %v1995, %v2020
    %v2026 = vadd.f32 %v1996, %v2021
    %v2027 = vadd.f32 %v1997, %v2022
    %v2028 = vadd.f32 %v1998, %v2023
    %v2029 = vadd.f32 %v1999, %v2024
    %2030 = vset.pattern.permute.xlu0 12
    %2031 = vperm.xlu0 %2030, %v1665
    %v2032 = vpop.permute.xlu0 %2031
    %2034 = vset.pattern.permute.xlu0 12
    %2035 = vperm.xlu0 %2034, %v1666
    %v2036 = vpop.permute.xlu0 %2035
    %2038 = vset.pattern.permute.xlu0 12
    %2039 = vperm.xlu0 %2038, %v1667
    %v2040 = vpop.permute.xlu0 %2039
    %2042 = vset.pattern.permute.xlu0 12
    %2043 = vperm.xlu0 %2042, %v1668
    %v2044 = vpop.permute.xlu0 %2043
    %2046 = vset.pattern.permute.xlu0 12
    %2047 = vperm.xlu0 %2046, %v1669
    %v2048 = vpop.permute.xlu0 %2047
    %v2050 = vmul.f32 %v2032, %v1057
    %v2051 = vmul.f32 %v2036, %v1057
    %v2052 = vmul.f32 %v2040, %v1057
    %v2053 = vmul.f32 %v2044, %v1057
    %v2054 = vmul.f32 %v2048, %v1057
    %v2055 = vadd.f32 %v2025, %v2050
    %v2056 = vadd.f32 %v2026, %v2051
    %v2057 = vadd.f32 %v2027, %v2052
    %v2058 = vadd.f32 %v2028, %v2053
    %v2059 = vadd.f32 %v2029, %v2054
    %2060 = vset.pattern.permute.xlu0 13
    %2061 = vperm.xlu0 %2060, %v1665
    %v2062 = vpop.permute.xlu0 %2061
    %2064 = vset.pattern.permute.xlu0 13
    %2065 = vperm.xlu0 %2064, %v1666
    %v2066 = vpop.permute.xlu0 %2065
    %2068 = vset.pattern.permute.xlu0 13
    %2069 = vperm.xlu0 %2068, %v1667
    %v2070 = vpop.permute.xlu0 %2069
    %2072 = vset.pattern.permute.xlu0 13
    %2073 = vperm.xlu0 %2072, %v1668
    %v2074 = vpop.permute.xlu0 %2073
    %2076 = vset.pattern.permute.xlu0 13
    %2077 = vperm.xlu0 %2076, %v1669
    %v2078 = vpop.permute.xlu0 %2077
    %v2080 = vmul.f32 %v2062, %v1091
    %v2081 = vmul.f32 %v2066, %v1091
    %v2082 = vmul.f32 %v2070, %v1091
    %v2083 = vmul.f32 %v2074, %v1091
    %v2084 = vmul.f32 %v2078, %v1091
    %v2085 = vadd.f32 %v2055, %v2080
    %v2086 = vadd.f32 %v2056, %v2081
    %v2087 = vadd.f32 %v2057, %v2082
    %v2088 = vadd.f32 %v2058, %v2083
    %v2089 = vadd.f32 %v2059, %v2084
    %2090 = vset.pattern.permute.xlu0 14
    %2091 = vperm.xlu0 %2090, %v1665
    %v2092 = vpop.permute.xlu0 %2091
    %2094 = vset.pattern.permute.xlu0 14
    %2095 = vperm.xlu0 %2094, %v1666
    %v2096 = vpop.permute.xlu0 %2095
    %2098 = vset.pattern.permute.xlu0 14
    %2099 = vperm.xlu0 %2098, %v1667
    %v2100 = vpop.permute.xlu0 %2099
    %2102 = vset.pattern.permute.xlu0 14
    %2103 = vperm.xlu0 %2102, %v1668
    %v2104 = vpop.permute.xlu0 %2103
    %2106 = vset.pattern.permute.xlu0 14
    %2107 = vperm.xlu0 %2106, %v1669
    %v2108 = vpop.permute.xlu0 %2107
    %v2110 = vmul.f32 %v2092, %v1125
    %v2111 = vmul.f32 %v2096, %v1125
    %v2112 = vmul.f32 %v2100, %v1125
    %v2113 = vmul.f32 %v2104, %v1125
    %v2114 = vmul.f32 %v2108, %v1125
    %v2115 = vadd.f32 %v2085, %v2110
    %v2116 = vadd.f32 %v2086, %v2111
    %v2117 = vadd.f32 %v2087, %v2112
    %v2118 = vadd.f32 %v2088, %v2113
    %v2119 = vadd.f32 %v2089, %v2114
    %2120 = vset.pattern.permute.xlu0 15
    %2121 = vperm.xlu0 %2120, %v1665
    %v2122 = vpop.permute.xlu0 %2121
    %2124 = vset.pattern.permute.xlu0 15
    %2125 = vperm.xlu0 %2124, %v1666
    %v2126 = vpop.permute.xlu0 %2125
    %2128 = vset.pattern.permute.xlu0 15
    %2129 = vperm.xlu0 %2128, %v1667
    %v2130 = vpop.permute.xlu0 %2129
    %2132 = vset.pattern.permute.xlu0 15
    %2133 = vperm.xlu0 %2132, %v1668
    %v2134 = vpop.permute.xlu0 %2133
    %2136 = vset.pattern.permute.xlu0 15
    %2137 = vperm.xlu0 %2136, %v1669
    %v2138 = vpop.permute.xlu0 %2137
    %v2140 = vmul.f32 %v2122, %v1159
    %v2141 = vmul.f32 %v2126, %v1159
    %v2142 = vmul.f32 %v2130, %v1159
    %v2143 = vmul.f32 %v2134, %v1159
    %v2144 = vmul.f32 %v2138, %v1159
    %v2145 = vadd.f32 %v2115, %v2140
    %v2146 = vadd.f32 %v2116, %v2141
    %v2147 = vadd.f32 %v2117, %v2142
    %v2148 = vadd.f32 %v2118, %v2143
    %v2149 = vadd.f32 %v2119, %v2144
    %2150 = vst [vmem:[#allocation2 + $0x50] sm:$0xff] %v2145
    %2151 = vst [vmem:[#allocation2 + $0x58] sm:$0xff] %v2146
    %2152 = vst [vmem:[#allocation2 + $0x60] sm:$0xff] %v2147
    %2153 = vst [vmem:[#allocation2 + $0x68] sm:$0xff] %v2148
    %2154 = vst [vmem:[#allocation2 + $0x70] sm:$0xff] %v2149
    %v2155 = vld [vmem:[%s1 + $0x78] sm:$0xff]
    %v2156 = vld [vmem:[%s1 + $0x80] sm:$0xff]
    %v2157 = vld [vmem:[%s1 + $0x88] sm:$0xff]
    %v2158 = vld [vmem:[%s1 + $0x90] sm:$0xff]
    %v2159 = vld [vmem:[%s1 + $0x98] sm:$0xff]
    %2161 = vset.pattern.permute.xlu0 0
    %2162 = vperm.xlu0 %2161, %v2155
    %v2163 = vpop.permute.xlu0 %2162
    %2166 = vset.pattern.permute.xlu0 0
    %2167 = vperm.xlu0 %2166, %v2156
    %v2168 = vpop.permute.xlu0 %2167
    %2171 = vset.pattern.permute.xlu0 0
    %2172 = vperm.xlu0 %2171, %v2157
    %v2173 = vpop.permute.xlu0 %2172
    %2176 = vset.pattern.permute.xlu0 0
    %2177 = vperm.xlu0 %2176, %v2158
    %v2178 = vpop.permute.xlu0 %2177
    %2181 = vset.pattern.permute.xlu0 0
    %2182 = vperm.xlu0 %2181, %v2159
    %v2183 = vpop.permute.xlu0 %2182
    %v2185 = vmul.f32 %v2163, %v654
    %v2186 = vmul.f32 %v2168, %v654
    %v2187 = vmul.f32 %v2173, %v654
    %v2188 = vmul.f32 %v2178, %v654
    %v2189 = vmul.f32 %v2183, %v654
    %2190 = vset.pattern.permute.xlu0 1
    %2191 = vperm.xlu0 %2190, %v2155
    %v2192 = vpop.permute.xlu0 %2191
    %2194 = vset.pattern.permute.xlu0 1
    %2195 = vperm.xlu0 %2194, %v2156
    %v2196 = vpop.permute.xlu0 %2195
    %2198 = vset.pattern.permute.xlu0 1
    %2199 = vperm.xlu0 %2198, %v2157
    %v2200 = vpop.permute.xlu0 %2199
    %2202 = vset.pattern.permute.xlu0 1
    %2203 = vperm.xlu0 %2202, %v2158
    %v2204 = vpop.permute.xlu0 %2203
    %2206 = vset.pattern.permute.xlu0 1
    %2207 = vperm.xlu0 %2206, %v2159
    %v2208 = vpop.permute.xlu0 %2207
    %v2210 = vmul.f32 %v2192, %v683
    %v2211 = vmul.f32 %v2196, %v683
    %v2212 = vmul.f32 %v2200, %v683
    %v2213 = vmul.f32 %v2204, %v683
    %v2214 = vmul.f32 %v2208, %v683
    %v2215 = vadd.f32 %v2185, %v2210
    %v2216 = vadd.f32 %v2186, %v2211
    %v2217 = vadd.f32 %v2187, %v2212
    %v2218 = vadd.f32 %v2188, %v2213
    %v2219 = vadd.f32 %v2189, %v2214
    %2220 = vset.pattern.permute.xlu0 2
    %2221 = vperm.xlu0 %2220, %v2155
    %v2222 = vpop.permute.xlu0 %2221
    %2224 = vset.pattern.permute.xlu0 2
    %2225 = vperm.xlu0 %2224, %v2156
    %v2226 = vpop.permute.xlu0 %2225
    %2228 = vset.pattern.permute.xlu0 2
    %2229 = vperm.xlu0 %2228, %v2157
    %v2230 = vpop.permute.xlu0 %2229
    %2232 = vset.pattern.permute.xlu0 2
    %2233 = vperm.xlu0 %2232, %v2158
    %v2234 = vpop.permute.xlu0 %2233
    %2236 = vset.pattern.permute.xlu0 2
    %2237 = vperm.xlu0 %2236, %v2159
    %v2238 = vpop.permute.xlu0 %2237
    %v2240 = vmul.f32 %v2222, %v717
    %v2241 = vmul.f32 %v2226, %v717
    %v2242 = vmul.f32 %v2230, %v717
    %v2243 = vmul.f32 %v2234, %v717
    %v2244 = vmul.f32 %v2238, %v717
    %v2245 = vadd.f32 %v2215, %v2240
    %v2246 = vadd.f32 %v2216, %v2241
    %v2247 = vadd.f32 %v2217, %v2242
    %v2248 = vadd.f32 %v2218, %v2243
    %v2249 = vadd.f32 %v2219, %v2244
    %2250 = vset.pattern.permute.xlu0 3
    %2251 = vperm.xlu0 %2250, %v2155
    %v2252 = vpop.permute.xlu0 %2251
    %2254 = vset.pattern.permute.xlu0 3
    %2255 = vperm.xlu0 %2254, %v2156
    %v2256 = vpop.permute.xlu0 %2255
    %2258 = vset.pattern.permute.xlu0 3
    %2259 = vperm.xlu0 %2258, %v2157
    %v2260 = vpop.permute.xlu0 %2259
    %2262 = vset.pattern.permute.xlu0 3
    %2263 = vperm.xlu0 %2262, %v2158
    %v2264 = vpop.permute.xlu0 %2263
    %2266 = vset.pattern.permute.xlu0 3
    %2267 = vperm.xlu0 %2266, %v2159
    %v2268 = vpop.permute.xlu0 %2267
    %v2270 = vmul.f32 %v2252, %v751
    %v2271 = vmul.f32 %v2256, %v751
    %v2272 = vmul.f32 %v2260, %v751
    %v2273 = vmul.f32 %v2264, %v751
    %v2274 = vmul.f32 %v2268, %v751
    %v2275 = vadd.f32 %v2245, %v2270
    %v2276 = vadd.f32 %v2246, %v2271
    %v2277 = vadd.f32 %v2247, %v2272
    %v2278 = vadd.f32 %v2248, %v2273
    %v2279 = vadd.f32 %v2249, %v2274
    %2280 = vset.pattern.permute.xlu0 4
    %2281 = vperm.xlu0 %2280, %v2155
    %v2282 = vpop.permute.xlu0 %2281
    %2284 = vset.pattern.permute.xlu0 4
    %2285 = vperm.xlu0 %2284, %v2156
    %v2286 = vpop.permute.xlu0 %2285
    %2288 = vset.pattern.permute.xlu0 4
    %2289 = vperm.xlu0 %2288, %v2157
    %v2290 = vpop.permute.xlu0 %2289
    %2292 = vset.pattern.permute.xlu0 4
    %2293 = vperm.xlu0 %2292, %v2158
    %v2294 = vpop.permute.xlu0 %2293
    %2296 = vset.pattern.permute.xlu0 4
    %2297 = vperm.xlu0 %2296, %v2159
    %v2298 = vpop.permute.xlu0 %2297
    %v2300 = vmul.f32 %v2282, %v785
    %v2301 = vmul.f32 %v2286, %v785
    %v2302 = vmul.f32 %v2290, %v785
    %v2303 = vmul.f32 %v2294, %v785
    %v2304 = vmul.f32 %v2298, %v785
    %v2305 = vadd.f32 %v2275, %v2300
    %v2306 = vadd.f32 %v2276, %v2301
    %v2307 = vadd.f32 %v2277, %v2302
    %v2308 = vadd.f32 %v2278, %v2303
    %v2309 = vadd.f32 %v2279, %v2304
    %2310 = vset.pattern.permute.xlu0 5
    %2311 = vperm.xlu0 %2310, %v2155
    %v2312 = vpop.permute.xlu0 %2311
    %2314 = vset.pattern.permute.xlu0 5
    %2315 = vperm.xlu0 %2314, %v2156
    %v2316 = vpop.permute.xlu0 %2315
    %2318 = vset.pattern.permute.xlu0 5
    %2319 = vperm.xlu0 %2318, %v2157
    %v2320 = vpop.permute.xlu0 %2319
    %2322 = vset.pattern.permute.xlu0 5
    %2323 = vperm.xlu0 %2322, %v2158
    %v2324 = vpop.permute.xlu0 %2323
    %2326 = vset.pattern.permute.xlu0 5
    %2327 = vperm.xlu0 %2326, %v2159
    %v2328 = vpop.permute.xlu0 %2327
    %v2330 = vmul.f32 %v2312, %v819
    %v2331 = vmul.f32 %v2316, %v819
    %v2332 = vmul.f32 %v2320, %v819
    %v2333 = vmul.f32 %v2324, %v819
    %v2334 = vmul.f32 %v2328, %v819
    %v2335 = vadd.f32 %v2305, %v2330
    %v2336 = vadd.f32 %v2306, %v2331
    %v2337 = vadd.f32 %v2307, %v2332
    %v2338 = vadd.f32 %v2308, %v2333
    %v2339 = vadd.f32 %v2309, %v2334
    %2340 = vset.pattern.permute.xlu0 6
    %2341 = vperm.xlu0 %2340, %v2155
    %v2342 = vpop.permute.xlu0 %2341
    %2344 = vset.pattern.permute.xlu0 6
    %2345 = vperm.xlu0 %2344, %v2156
    %v2346 = vpop.permute.xlu0 %2345
    %2348 = vset.pattern.permute.xlu0 6
    %2349 = vperm.xlu0 %2348, %v2157
    %v2350 = vpop.permute.xlu0 %2349
    %2352 = vset.pattern.permute.xlu0 6
    %2353 = vperm.xlu0 %2352, %v2158
    %v2354 = vpop.permute.xlu0 %2353
    %2356 = vset.pattern.permute.xlu0 6
    %2357 = vperm.xlu0 %2356, %v2159
    %v2358 = vpop.permute.xlu0 %2357
    %v2360 = vmul.f32 %v2342, %v853
    %v2361 = vmul.f32 %v2346, %v853
    %v2362 = vmul.f32 %v2350, %v853
    %v2363 = vmul.f32 %v2354, %v853
    %v2364 = vmul.f32 %v2358, %v853
    %v2365 = vadd.f32 %v2335, %v2360
    %v2366 = vadd.f32 %v2336, %v2361
    %v2367 = vadd.f32 %v2337, %v2362
    %v2368 = vadd.f32 %v2338, %v2363
    %v2369 = vadd.f32 %v2339, %v2364
    %2370 = vset.pattern.permute.xlu0 7
    %2371 = vperm.xlu0 %2370, %v2155
    %v2372 = vpop.permute.xlu0 %2371
    %2374 = vset.pattern.permute.xlu0 7
    %2375 = vperm.xlu0 %2374, %v2156
    %v2376 = vpop.permute.xlu0 %2375
    %2378 = vset.pattern.permute.xlu0 7
    %2379 = vperm.xlu0 %2378, %v2157
    %v2380 = vpop.permute.xlu0 %2379
    %2382 = vset.pattern.permute.xlu0 7
    %2383 = vperm.xlu0 %2382, %v2158
    %v2384 = vpop.permute.xlu0 %2383
    %2386 = vset.pattern.permute.xlu0 7
    %2387 = vperm.xlu0 %2386, %v2159
    %v2388 = vpop.permute.xlu0 %2387
    %v2390 = vmul.f32 %v2372, %v887
    %v2391 = vmul.f32 %v2376, %v887
    %v2392 = vmul.f32 %v2380, %v887
    %v2393 = vmul.f32 %v2384, %v887
    %v2394 = vmul.f32 %v2388, %v887
    %v2395 = vadd.f32 %v2365, %v2390
    %v2396 = vadd.f32 %v2366, %v2391
    %v2397 = vadd.f32 %v2367, %v2392
    %v2398 = vadd.f32 %v2368, %v2393
    %v2399 = vadd.f32 %v2369, %v2394
    %2400 = vset.pattern.permute.xlu0 8
    %2401 = vperm.xlu0 %2400, %v2155
    %v2402 = vpop.permute.xlu0 %2401
    %2404 = vset.pattern.permute.xlu0 8
    %2405 = vperm.xlu0 %2404, %v2156
    %v2406 = vpop.permute.xlu0 %2405
    %2408 = vset.pattern.permute.xlu0 8
    %2409 = vperm.xlu0 %2408, %v2157
    %v2410 = vpop.permute.xlu0 %2409
    %2412 = vset.pattern.permute.xlu0 8
    %2413 = vperm.xlu0 %2412, %v2158
    %v2414 = vpop.permute.xlu0 %2413
    %2416 = vset.pattern.permute.xlu0 8
    %2417 = vperm.xlu0 %2416, %v2159
    %v2418 = vpop.permute.xlu0 %2417
    %v2420 = vmul.f32 %v2402, %v921
    %v2421 = vmul.f32 %v2406, %v921
    %v2422 = vmul.f32 %v2410, %v921
    %v2423 = vmul.f32 %v2414, %v921
    %v2424 = vmul.f32 %v2418, %v921
    %v2425 = vadd.f32 %v2395, %v2420
    %v2426 = vadd.f32 %v2396, %v2421
    %v2427 = vadd.f32 %v2397, %v2422
    %v2428 = vadd.f32 %v2398, %v2423
    %v2429 = vadd.f32 %v2399, %v2424
    %2430 = vset.pattern.permute.xlu0 9
    %2431 = vperm.xlu0 %2430, %v2155
    %v2432 = vpop.permute.xlu0 %2431
    %2434 = vset.pattern.permute.xlu0 9
    %2435 = vperm.xlu0 %2434, %v2156
    %v2436 = vpop.permute.xlu0 %2435
    %2438 = vset.pattern.permute.xlu0 9
    %2439 = vperm.xlu0 %2438, %v2157
    %v2440 = vpop.permute.xlu0 %2439
    %2442 = vset.pattern.permute.xlu0 9
    %2443 = vperm.xlu0 %2442, %v2158
    %v2444 = vpop.permute.xlu0 %2443
    %2446 = vset.pattern.permute.xlu0 9
    %2447 = vperm.xlu0 %2446, %v2159
    %v2448 = vpop.permute.xlu0 %2447
    %v2450 = vmul.f32 %v2432, %v955
    %v2451 = vmul.f32 %v2436, %v955
    %v2452 = vmul.f32 %v2440, %v955
    %v2453 = vmul.f32 %v2444, %v955
    %v2454 = vmul.f32 %v2448, %v955
    %v2455 = vadd.f32 %v2425, %v2450
    %v2456 = vadd.f32 %v2426, %v2451
    %v2457 = vadd.f32 %v2427, %v2452
    %v2458 = vadd.f32 %v2428, %v2453
    %v2459 = vadd.f32 %v2429, %v2454
    %2460 = vset.pattern.permute.xlu0 10
    %2461 = vperm.xlu0 %2460, %v2155
    %v2462 = vpop.permute.xlu0 %2461
    %2464 = vset.pattern.permute.xlu0 10
    %2465 = vperm.xlu0 %2464, %v2156
    %v2466 = vpop.permute.xlu0 %2465
    %2468 = vset.pattern.permute.xlu0 10
    %2469 = vperm.xlu0 %2468, %v2157
    %v2470 = vpop.permute.xlu0 %2469
    %2472 = vset.pattern.permute.xlu0 10
    %2473 = vperm.xlu0 %2472, %v2158
    %v2474 = vpop.permute.xlu0 %2473
    %2476 = vset.pattern.permute.xlu0 10
    %2477 = vperm.xlu0 %2476, %v2159
    %v2478 = vpop.permute.xlu0 %2477
    %v2480 = vmul.f32 %v2462, %v989
    %v2481 = vmul.f32 %v2466, %v989
    %v2482 = vmul.f32 %v2470, %v989
    %v2483 = vmul.f32 %v2474, %v989
    %v2484 = vmul.f32 %v2478, %v989
    %v2485 = vadd.f32 %v2455, %v2480
    %v2486 = vadd.f32 %v2456, %v2481
    %v2487 = vadd.f32 %v2457, %v2482
    %v2488 = vadd.f32 %v2458, %v2483
    %v2489 = vadd.f32 %v2459, %v2484
    %2490 = vset.pattern.permute.xlu0 11
    %2491 = vperm.xlu0 %2490, %v2155
    %v2492 = vpop.permute.xlu0 %2491
    %2494 = vset.pattern.permute.xlu0 11
    %2495 = vperm.xlu0 %2494, %v2156
    %v2496 = vpop.permute.xlu0 %2495
    %2498 = vset.pattern.permute.xlu0 11
    %2499 = vperm.xlu0 %2498, %v2157
    %v2500 = vpop.permute.xlu0 %2499
    %2502 = vset.pattern.permute.xlu0 11
    %2503 = vperm.xlu0 %2502, %v2158
    %v2504 = vpop.permute.xlu0 %2503
    %2506 = vset.pattern.permute.xlu0 11
    %2507 = vperm.xlu0 %2506, %v2159
    %v2508 = vpop.permute.xlu0 %2507
    %v2510 = vmul.f32 %v2492, %v1023
    %v2511 = vmul.f32 %v2496, %v1023
    %v2512 = vmul.f32 %v2500, %v1023
    %v2513 = vmul.f32 %v2504, %v1023
    %v2514 = vmul.f32 %v2508, %v1023
    %v2515 = vadd.f32 %v2485, %v2510
    %v2516 = vadd.f32 %v2486, %v2511
    %v2517 = vadd.f32 %v2487, %v2512
    %v2518 = vadd.f32 %v2488, %v2513
    %v2519 = vadd.f32 %v2489, %v2514
    %2520 = vset.pattern.permute.xlu0 12
    %2521 = vperm.xlu0 %2520, %v2155
    %v2522 = vpop.permute.xlu0 %2521
    %2524 = vset.pattern.permute.xlu0 12
    %2525 = vperm.xlu0 %2524, %v2156
    %v2526 = vpop.permute.xlu0 %2525
    %2528 = vset.pattern.permute.xlu0 12
    %2529 = vperm.xlu0 %2528, %v2157
    %v2530 = vpop.permute.xlu0 %2529
    %2532 = vset.pattern.permute.xlu0 12
    %2533 = vperm.xlu0 %2532, %v2158
    %v2534 = vpop.permute.xlu0 %2533
    %2536 = vset.pattern.permute.xlu0 12
    %2537 = vperm.xlu0 %2536, %v2159
    %v2538 = vpop.permute.xlu0 %2537
    %v2540 = vmul.f32 %v2522, %v1057
    %v2541 = vmul.f32 %v2526, %v1057
    %v2542 = vmul.f32 %v2530, %v1057
    %v2543 = vmul.f32 %v2534, %v1057
    %v2544 = vmul.f32 %v2538, %v1057
    %v2545 = vadd.f32 %v2515, %v2540
    %v2546 = vadd.f32 %v2516, %v2541
    %v2547 = vadd.f32 %v2517, %v2542
    %v2548 = vadd.f32 %v2518, %v2543
    %v2549 = vadd.f32 %v2519, %v2544
    %2550 = vset.pattern.permute.xlu0 13
    %2551 = vperm.xlu0 %2550, %v2155
    %v2552 = vpop.permute.xlu0 %2551
    %2554 = vset.pattern.permute.xlu0 13
    %2555 = vperm.xlu0 %2554, %v2156
    %v2556 = vpop.permute.xlu0 %2555
    %2558 = vset.pattern.permute.xlu0 13
    %2559 = vperm.xlu0 %2558, %v2157
    %v2560 = vpop.permute.xlu0 %2559
    %2562 = vset.pattern.permute.xlu0 13
    %2563 = vperm.xlu0 %2562, %v2158
    %v2564 = vpop.permute.xlu0 %2563
    %2566 = vset.pattern.permute.xlu0 13
    %2567 = vperm.xlu0 %2566, %v2159
    %v2568 = vpop.permute.xlu0 %2567
    %v2570 = vmul.f32 %v2552, %v1091
    %v2571 = vmul.f32 %v2556, %v1091
    %v2572 = vmul.f32 %v2560, %v1091
    %v2573 = vmul.f32 %v2564, %v1091
    %v2574 = vmul.f32 %v2568, %v1091
    %v2575 = vadd.f32 %v2545, %v2570
    %v2576 = vadd.f32 %v2546, %v2571
    %v2577 = vadd.f32 %v2547, %v2572
    %v2578 = vadd.f32 %v2548, %v2573
    %v2579 = vadd.f32 %v2549, %v2574
    %2580 = vset.pattern.permute.xlu0 14
    %2581 = vperm.xlu0 %2580, %v2155
    %v2582 = vpop.permute.xlu0 %2581
    %2584 = vset.pattern.permute.xlu0 14
    %2585 = vperm.xlu0 %2584, %v2156
    %v2586 = vpop.permute.xlu0 %2585
    %2588 = vset.pattern.permute.xlu0 14
    %2589 = vperm.xlu0 %2588, %v2157
    %v2590 = vpop.permute.xlu0 %2589
    %2592 = vset.pattern.permute.xlu0 14
    %2593 = vperm.xlu0 %2592, %v2158
    %v2594 = vpop.permute.xlu0 %2593
    %2596 = vset.pattern.permute.xlu0 14
    %2597 = vperm.xlu0 %2596, %v2159
    %v2598 = vpop.permute.xlu0 %2597
    %v2600 = vmul.f32 %v2582, %v1125
    %v2601 = vmul.f32 %v2586, %v1125
    %v2602 = vmul.f32 %v2590, %v1125
    %v2603 = vmul.f32 %v2594, %v1125
    %v2604 = vmul.f32 %v2598, %v1125
    %v2605 = vadd.f32 %v2575, %v2600
    %v2606 = vadd.f32 %v2576, %v2601
    %v2607 = vadd.f32 %v2577, %v2602
    %v2608 = vadd.f32 %v2578, %v2603
    %v2609 = vadd.f32 %v2579, %v2604
    %2610 = vset.pattern.permute.xlu0 15
    %2611 = vperm.xlu0 %2610, %v2155
    %v2612 = vpop.permute.xlu0 %2611
    %2614 = vset.pattern.permute.xlu0 15
    %2615 = vperm.xlu0 %2614, %v2156
    %v2616 = vpop.permute.xlu0 %2615
    %2618 = vset.pattern.permute.xlu0 15
    %2619 = vperm.xlu0 %2618, %v2157
    %v2620 = vpop.permute.xlu0 %2619
    %2622 = vset.pattern.permute.xlu0 15
    %2623 = vperm.xlu0 %2622, %v2158
    %v2624 = vpop.permute.xlu0 %2623
    %2626 = vset.pattern.permute.xlu0 15
    %2627 = vperm.xlu0 %2626, %v2159
    %v2628 = vpop.permute.xlu0 %2627
    %v2630 = vmul.f32 %v2612, %v1159
    %v2631 = vmul.f32 %v2616, %v1159
    %v2632 = vmul.f32 %v2620, %v1159
    %v2633 = vmul.f32 %v2624, %v1159
    %v2634 = vmul.f32 %v2628, %v1159
    %v2635 = vadd.f32 %v2605, %v2630
    %v2636 = vadd.f32 %v2606, %v2631
    %v2637 = vadd.f32 %v2607, %v2632
    %v2638 = vadd.f32 %v2608, %v2633
    %v2639 = vadd.f32 %v2609, %v2634
    %2640 = vst [vmem:[#allocation2 + $0x78] sm:$0xff] %v2635
    %2641 = vst [vmem:[#allocation2 + $0x80] sm:$0xff] %v2636
    %2642 = vst [vmem:[#allocation2 + $0x88] sm:$0xff] %v2637
    %2643 = vst [vmem:[#allocation2 + $0x90] sm:$0xff] %v2638
    %2644 = vst [vmem:[#allocation2 + $0x98] sm:$0xff] %v2639
    %v2645 = vld [vmem:[%s1 + $0xa0] sm:$0xff]
    %v2646 = vld [vmem:[%s1 + $0xa8] sm:$0xff]
    %v2647 = vld [vmem:[%s1 + $0xb0] sm:$0xff]
    %v2648 = vld [vmem:[%s1 + $0xb8] sm:$0xff]
    %v2649 = vld [vmem:[%s1 + $0xc0] sm:$0xff]
    %2651 = vset.pattern.permute.xlu0 0
    %2652 = vperm.xlu0 %2651, %v2645
    %v2653 = vpop.permute.xlu0 %2652
    %2656 = vset.pattern.permute.xlu0 0
    %2657 = vperm.xlu0 %2656, %v2646
    %v2658 = vpop.permute.xlu0 %2657
    %2661 = vset.pattern.permute.xlu0 0
    %2662 = vperm.xlu0 %2661, %v2647
    %v2663 = vpop.permute.xlu0 %2662
    %2666 = vset.pattern.permute.xlu0 0
    %2667 = vperm.xlu0 %2666, %v2648
    %v2668 = vpop.permute.xlu0 %2667
    %2671 = vset.pattern.permute.xlu0 0
    %2672 = vperm.xlu0 %2671, %v2649
    %v2673 = vpop.permute.xlu0 %2672
    %v2675 = vmul.f32 %v2653, %v654
    %v2676 = vmul.f32 %v2658, %v654
    %v2677 = vmul.f32 %v2663, %v654
    %v2678 = vmul.f32 %v2668, %v654
    %v2679 = vmul.f32 %v2673, %v654
    %2680 = vset.pattern.permute.xlu0 1
    %2681 = vperm.xlu0 %2680, %v2645
    %v2682 = vpop.permute.xlu0 %2681
    %2684 = vset.pattern.permute.xlu0 1
    %2685 = vperm.xlu0 %2684, %v2646
    %v2686 = vpop.permute.xlu0 %2685
    %2688 = vset.pattern.permute.xlu0 1
    %2689 = vperm.xlu0 %2688, %v2647
    %v2690 = vpop.permute.xlu0 %2689
    %2692 = vset.pattern.permute.xlu0 1
    %2693 = vperm.xlu0 %2692, %v2648
    %v2694 = vpop.permute.xlu0 %2693
    %2696 = vset.pattern.permute.xlu0 1
    %2697 = vperm.xlu0 %2696, %v2649
    %v2698 = vpop.permute.xlu0 %2697
    %v2700 = vmul.f32 %v2682, %v683
    %v2701 = vmul.f32 %v2686, %v683
    %v2702 = vmul.f32 %v2690, %v683
    %v2703 = vmul.f32 %v2694, %v683
    %v2704 = vmul.f32 %v2698, %v683
    %v2705 = vadd.f32 %v2675, %v2700
    %v2706 = vadd.f32 %v2676, %v2701
    %v2707 = vadd.f32 %v2677, %v2702
    %v2708 = vadd.f32 %v2678, %v2703
    %v2709 = vadd.f32 %v2679, %v2704
    %2710 = vset.pattern.permute.xlu0 2
    %2711 = vperm.xlu0 %2710, %v2645
    %v2712 = vpop.permute.xlu0 %2711
    %2714 = vset.pattern.permute.xlu0 2
    %2715 = vperm.xlu0 %2714, %v2646
    %v2716 = vpop.permute.xlu0 %2715
    %2718 = vset.pattern.permute.xlu0 2
    %2719 = vperm.xlu0 %2718, %v2647
    %v2720 = vpop.permute.xlu0 %2719
    %2722 = vset.pattern.permute.xlu0 2
    %2723 = vperm.xlu0 %2722, %v2648
    %v2724 = vpop.permute.xlu0 %2723
    %2726 = vset.pattern.permute.xlu0 2
    %2727 = vperm.xlu0 %2726, %v2649
    %v2728 = vpop.permute.xlu0 %2727
    %v2730 = vmul.f32 %v2712, %v717
    %v2731 = vmul.f32 %v2716, %v717
    %v2732 = vmul.f32 %v2720, %v717
    %v2733 = vmul.f32 %v2724, %v717
    %v2734 = vmul.f32 %v2728, %v717
    %v2735 = vadd.f32 %v2705, %v2730
    %v2736 = vadd.f32 %v2706, %v2731
    %v2737 = vadd.f32 %v2707, %v2732
    %v2738 = vadd.f32 %v2708, %v2733
    %v2739 = vadd.f32 %v2709, %v2734
    %2740 = vset.pattern.permute.xlu0 3
    %2741 = vperm.xlu0 %2740, %v2645
    %v2742 = vpop.permute.xlu0 %2741
    %2744 = vset.pattern.permute.xlu0 3
    %2745 = vperm.xlu0 %2744, %v2646
    %v2746 = vpop.permute.xlu0 %2745
    %2748 = vset.pattern.permute.xlu0 3
    %2749 = vperm.xlu0 %2748, %v2647
    %v2750 = vpop.permute.xlu0 %2749
    %2752 = vset.pattern.permute.xlu0 3
    %2753 = vperm.xlu0 %2752, %v2648
    %v2754 = vpop.permute.xlu0 %2753
    %2756 = vset.pattern.permute.xlu0 3
    %2757 = vperm.xlu0 %2756, %v2649
    %v2758 = vpop.permute.xlu0 %2757
    %v2760 = vmul.f32 %v2742, %v751
    %v2761 = vmul.f32 %v2746, %v751
    %v2762 = vmul.f32 %v2750, %v751
    %v2763 = vmul.f32 %v2754, %v751
    %v2764 = vmul.f32 %v2758, %v751
    %v2765 = vadd.f32 %v2735, %v2760
    %v2766 = vadd.f32 %v2736, %v2761
    %v2767 = vadd.f32 %v2737, %v2762
    %v2768 = vadd.f32 %v2738, %v2763
    %v2769 = vadd.f32 %v2739, %v2764
    %2770 = vset.pattern.permute.xlu0 4
    %2771 = vperm.xlu0 %2770, %v2645
    %v2772 = vpop.permute.xlu0 %2771
    %2774 = vset.pattern.permute.xlu0 4
    %2775 = vperm.xlu0 %2774, %v2646
    %v2776 = vpop.permute.xlu0 %2775
    %2778 = vset.pattern.permute.xlu0 4
    %2779 = vperm.xlu0 %2778, %v2647
    %v2780 = vpop.permute.xlu0 %2779
    %2782 = vset.pattern.permute.xlu0 4
    %2783 = vperm.xlu0 %2782, %v2648
    %v2784 = vpop.permute.xlu0 %2783
    %2786 = vset.pattern.permute.xlu0 4
    %2787 = vperm.xlu0 %2786, %v2649
    %v2788 = vpop.permute.xlu0 %2787
    %v2790 = vmul.f32 %v2772, %v785
    %v2791 = vmul.f32 %v2776, %v785
    %v2792 = vmul.f32 %v2780, %v785
    %v2793 = vmul.f32 %v2784, %v785
    %v2794 = vmul.f32 %v2788, %v785
    %v2795 = vadd.f32 %v2765, %v2790
    %v2796 = vadd.f32 %v2766, %v2791
    %v2797 = vadd.f32 %v2767, %v2792
    %v2798 = vadd.f32 %v2768, %v2793
    %v2799 = vadd.f32 %v2769, %v2794
    %2800 = vset.pattern.permute.xlu0 5
    %2801 = vperm.xlu0 %2800, %v2645
    %v2802 = vpop.permute.xlu0 %2801
    %2804 = vset.pattern.permute.xlu0 5
    %2805 = vperm.xlu0 %2804, %v2646
    %v2806 = vpop.permute.xlu0 %2805
    %2808 = vset.pattern.permute.xlu0 5
    %2809 = vperm.xlu0 %2808, %v2647
    %v2810 = vpop.permute.xlu0 %2809
    %2812 = vset.pattern.permute.xlu0 5
    %2813 = vperm.xlu0 %2812, %v2648
    %v2814 = vpop.permute.xlu0 %2813
    %2816 = vset.pattern.permute.xlu0 5
    %2817 = vperm.xlu0 %2816, %v2649
    %v2818 = vpop.permute.xlu0 %2817
    %v2820 = vmul.f32 %v2802, %v819
    %v2821 = vmul.f32 %v2806, %v819
    %v2822 = vmul.f32 %v2810, %v819
    %v2823 = vmul.f32 %v2814, %v819
    %v2824 = vmul.f32 %v2818, %v819
    %v2825 = vadd.f32 %v2795, %v2820
    %v2826 = vadd.f32 %v2796, %v2821
    %v2827 = vadd.f32 %v2797, %v2822
    %v2828 = vadd.f32 %v2798, %v2823
    %v2829 = vadd.f32 %v2799, %v2824
    %2830 = vset.pattern.permute.xlu0 6
    %2831 = vperm.xlu0 %2830, %v2645
    %v2832 = vpop.permute.xlu0 %2831
    %2834 = vset.pattern.permute.xlu0 6
    %2835 = vperm.xlu0 %2834, %v2646
    %v2836 = vpop.permute.xlu0 %2835
    %2838 = vset.pattern.permute.xlu0 6
    %2839 = vperm.xlu0 %2838, %v2647
    %v2840 = vpop.permute.xlu0 %2839
    %2842 = vset.pattern.permute.xlu0 6
    %2843 = vperm.xlu0 %2842, %v2648
    %v2844 = vpop.permute.xlu0 %2843
    %2846 = vset.pattern.permute.xlu0 6
    %2847 = vperm.xlu0 %2846, %v2649
    %v2848 = vpop.permute.xlu0 %2847
    %v2850 = vmul.f32 %v2832, %v853
    %v2851 = vmul.f32 %v2836, %v853
    %v2852 = vmul.f32 %v2840, %v853
    %v2853 = vmul.f32 %v2844, %v853
    %v2854 = vmul.f32 %v2848, %v853
    %v2855 = vadd.f32 %v2825, %v2850
    %v2856 = vadd.f32 %v2826, %v2851
    %v2857 = vadd.f32 %v2827, %v2852
    %v2858 = vadd.f32 %v2828, %v2853
    %v2859 = vadd.f32 %v2829, %v2854
    %2860 = vset.pattern.permute.xlu0 7
    %2861 = vperm.xlu0 %2860, %v2645
    %v2862 = vpop.permute.xlu0 %2861
    %2864 = vset.pattern.permute.xlu0 7
    %2865 = vperm.xlu0 %2864, %v2646
    %v2866 = vpop.permute.xlu0 %2865
    %2868 = vset.pattern.permute.xlu0 7
    %2869 = vperm.xlu0 %2868, %v2647
    %v2870 = vpop.permute.xlu0 %2869
    %2872 = vset.pattern.permute.xlu0 7
    %2873 = vperm.xlu0 %2872, %v2648
    %v2874 = vpop.permute.xlu0 %2873
    %2876 = vset.pattern.permute.xlu0 7
    %2877 = vperm.xlu0 %2876, %v2649
    %v2878 = vpop.permute.xlu0 %2877
    %v2880 = vmul.f32 %v2862, %v887
    %v2881 = vmul.f32 %v2866, %v887
    %v2882 = vmul.f32 %v2870, %v887
    %v2883 = vmul.f32 %v2874, %v887
    %v2884 = vmul.f32 %v2878, %v887
    %v2885 = vadd.f32 %v2855, %v2880
    %v2886 = vadd.f32 %v2856, %v2881
    %v2887 = vadd.f32 %v2857, %v2882
    %v2888 = vadd.f32 %v2858, %v2883
    %v2889 = vadd.f32 %v2859, %v2884
    %2890 = vset.pattern.permute.xlu0 8
    %2891 = vperm.xlu0 %2890, %v2645
    %v2892 = vpop.permute.xlu0 %2891
    %2894 = vset.pattern.permute.xlu0 8
    %2895 = vperm.xlu0 %2894, %v2646
    %v2896 = vpop.permute.xlu0 %2895
    %2898 = vset.pattern.permute.xlu0 8
    %2899 = vperm.xlu0 %2898, %v2647
    %v2900 = vpop.permute.xlu0 %2899
    %2902 = vset.pattern.permute.xlu0 8
    %2903 = vperm.xlu0 %2902, %v2648
    %v2904 = vpop.permute.xlu0 %2903
    %2906 = vset.pattern.permute.xlu0 8
    %2907 = vperm.xlu0 %2906, %v2649
    %v2908 = vpop.permute.xlu0 %2907
    %v2910 = vmul.f32 %v2892, %v921
    %v2911 = vmul.f32 %v2896, %v921
    %v2912 = vmul.f32 %v2900, %v921
    %v2913 = vmul.f32 %v2904, %v921
    %v2914 = vmul.f32 %v2908, %v921
    %v2915 = vadd.f32 %v2885, %v2910
    %v2916 = vadd.f32 %v2886, %v2911
    %v2917 = vadd.f32 %v2887, %v2912
    %v2918 = vadd.f32 %v2888, %v2913
    %v2919 = vadd.f32 %v2889, %v2914
    %2920 = vset.pattern.permute.xlu0 9
    %2921 = vperm.xlu0 %2920, %v2645
    %v2922 = vpop.permute.xlu0 %2921
    %2924 = vset.pattern.permute.xlu0 9
    %2925 = vperm.xlu0 %2924, %v2646
    %v2926 = vpop.permute.xlu0 %2925
    %2928 = vset.pattern.permute.xlu0 9
    %2929 = vperm.xlu0 %2928, %v2647
    %v2930 = vpop.permute.xlu0 %2929
    %2932 = vset.pattern.permute.xlu0 9
    %2933 = vperm.xlu0 %2932, %v2648
    %v2934 = vpop.permute.xlu0 %2933
    %2936 = vset.pattern.permute.xlu0 9
    %2937 = vperm.xlu0 %2936, %v2649
    %v2938 = vpop.permute.xlu0 %2937
    %v2940 = vmul.f32 %v2922, %v955
    %v2941 = vmul.f32 %v2926, %v955
    %v2942 = vmul.f32 %v2930, %v955
    %v2943 = vmul.f32 %v2934, %v955
    %v2944 = vmul.f32 %v2938, %v955
    %v2945 = vadd.f32 %v2915, %v2940
    %v2946 = vadd.f32 %v2916, %v2941
    %v2947 = vadd.f32 %v2917, %v2942
    %v2948 = vadd.f32 %v2918, %v2943
    %v2949 = vadd.f32 %v2919, %v2944
    %2950 = vset.pattern.permute.xlu0 10
    %2951 = vperm.xlu0 %2950, %v2645
    %v2952 = vpop.permute.xlu0 %2951
    %2954 = vset.pattern.permute.xlu0 10
    %2955 = vperm.xlu0 %2954, %v2646
    %v2956 = vpop.permute.xlu0 %2955
    %2958 = vset.pattern.permute.xlu0 10
    %2959 = vperm.xlu0 %2958, %v2647
    %v2960 = vpop.permute.xlu0 %2959
    %2962 = vset.pattern.permute.xlu0 10
    %2963 = vperm.xlu0 %2962, %v2648
    %v2964 = vpop.permute.xlu0 %2963
    %2966 = vset.pattern.permute.xlu0 10
    %2967 = vperm.xlu0 %2966, %v2649
    %v2968 = vpop.permute.xlu0 %2967
    %v2970 = vmul.f32 %v2952, %v989
    %v2971 = vmul.f32 %v2956, %v989
    %v2972 = vmul.f32 %v2960, %v989
    %v2973 = vmul.f32 %v2964, %v989
    %v2974 = vmul.f32 %v2968, %v989
    %v2975 = vadd.f32 %v2945, %v2970
    %v2976 = vadd.f32 %v2946, %v2971
    %v2977 = vadd.f32 %v2947, %v2972
    %v2978 = vadd.f32 %v2948, %v2973
    %v2979 = vadd.f32 %v2949, %v2974
    %2980 = vset.pattern.permute.xlu0 11
    %2981 = vperm.xlu0 %2980, %v2645
    %v2982 = vpop.permute.xlu0 %2981
    %2984 = vset.pattern.permute.xlu0 11
    %2985 = vperm.xlu0 %2984, %v2646
    %v2986 = vpop.permute.xlu0 %2985
    %2988 = vset.pattern.permute.xlu0 11
    %2989 = vperm.xlu0 %2988, %v2647
    %v2990 = vpop.permute.xlu0 %2989
    %2992 = vset.pattern.permute.xlu0 11
    %2993 = vperm.xlu0 %2992, %v2648
    %v2994 = vpop.permute.xlu0 %2993
    %2996 = vset.pattern.permute.xlu0 11
    %2997 = vperm.xlu0 %2996, %v2649
    %v2998 = vpop.permute.xlu0 %2997
    %v3000 = vmul.f32 %v2982, %v1023
    %v3001 = vmul.f32 %v2986, %v1023
    %v3002 = vmul.f32 %v2990, %v1023
    %v3003 = vmul.f32 %v2994, %v1023
    %v3004 = vmul.f32 %v2998, %v1023
    %v3005 = vadd.f32 %v2975, %v3000
    %v3006 = vadd.f32 %v2976, %v3001
    %v3007 = vadd.f32 %v2977, %v3002
    %v3008 = vadd.f32 %v2978, %v3003
    %v3009 = vadd.f32 %v2979, %v3004
    %3010 = vset.pattern.permute.xlu0 12
    %3011 = vperm.xlu0 %3010, %v2645
    %v3012 = vpop.permute.xlu0 %3011
    %3014 = vset.pattern.permute.xlu0 12
    %3015 = vperm.xlu0 %3014, %v2646
    %v3016 = vpop.permute.xlu0 %3015
    %3018 = vset.pattern.permute.xlu0 12
    %3019 = vperm.xlu0 %3018, %v2647
    %v3020 = vpop.permute.xlu0 %3019
    %3022 = vset.pattern.permute.xlu0 12
    %3023 = vperm.xlu0 %3022, %v2648
    %v3024 = vpop.permute.xlu0 %3023
    %3026 = vset.pattern.permute.xlu0 12
    %3027 = vperm.xlu0 %3026, %v2649
    %v3028 = vpop.permute.xlu0 %3027
    %v3030 = vmul.f32 %v3012, %v1057
    %v3031 = vmul.f32 %v3016, %v1057
    %v3032 = vmul.f32 %v3020, %v1057
    %v3033 = vmul.f32 %v3024, %v1057
    %v3034 = vmul.f32 %v3028, %v1057
    %v3035 = vadd.f32 %v3005, %v3030
    %v3036 = vadd.f32 %v3006, %v3031
    %v3037 = vadd.f32 %v3007, %v3032
    %v3038 = vadd.f32 %v3008, %v3033
    %v3039 = vadd.f32 %v3009, %v3034
    %3040 = vset.pattern.permute.xlu0 13
    %3041 = vperm.xlu0 %3040, %v2645
    %v3042 = vpop.permute.xlu0 %3041
    %3044 = vset.pattern.permute.xlu0 13
    %3045 = vperm.xlu0 %3044, %v2646
    %v3046 = vpop.permute.xlu0 %3045
    %3048 = vset.pattern.permute.xlu0 13
    %3049 = vperm.xlu0 %3048, %v2647
    %v3050 = vpop.permute.xlu0 %3049
    %3052 = vset.pattern.permute.xlu0 13
    %3053 = vperm.xlu0 %3052, %v2648
    %v3054 = vpop.permute.xlu0 %3053
    %3056 = vset.pattern.permute.xlu0 13
    %3057 = vperm.xlu0 %3056, %v2649
    %v3058 = vpop.permute.xlu0 %3057
    %v3060 = vmul.f32 %v3042, %v1091
    %v3061 = vmul.f32 %v3046, %v1091
    %v3062 = vmul.f32 %v3050, %v1091
    %v3063 = vmul.f32 %v3054, %v1091
    %v3064 = vmul.f32 %v3058, %v1091
    %v3065 = vadd.f32 %v3035, %v3060
    %v3066 = vadd.f32 %v3036, %v3061
    %v3067 = vadd.f32 %v3037, %v3062
    %v3068 = vadd.f32 %v3038, %v3063
    %v3069 = vadd.f32 %v3039, %v3064
    %3070 = vset.pattern.permute.xlu0 14
    %3071 = vperm.xlu0 %3070, %v2645
    %v3072 = vpop.permute.xlu0 %3071
    %3074 = vset.pattern.permute.xlu0 14
    %3075 = vperm.xlu0 %3074, %v2646
    %v3076 = vpop.permute.xlu0 %3075
    %3078 = vset.pattern.permute.xlu0 14
    %3079 = vperm.xlu0 %3078, %v2647
    %v3080 = vpop.permute.xlu0 %3079
    %3082 = vset.pattern.permute.xlu0 14
    %3083 = vperm.xlu0 %3082, %v2648
    %v3084 = vpop.permute.xlu0 %3083
    %3086 = vset.pattern.permute.xlu0 14
    %3087 = vperm.xlu0 %3086, %v2649
    %v3088 = vpop.permute.xlu0 %3087
    %v3090 = vmul.f32 %v3072, %v1125
    %v3091 = vmul.f32 %v3076, %v1125
    %v3092 = vmul.f32 %v3080, %v1125
    %v3093 = vmul.f32 %v3084, %v1125
    %v3094 = vmul.f32 %v3088, %v1125
    %v3095 = vadd.f32 %v3065, %v3090
    %v3096 = vadd.f32 %v3066, %v3091
    %v3097 = vadd.f32 %v3067, %v3092
    %v3098 = vadd.f32 %v3068, %v3093
    %v3099 = vadd.f32 %v3069, %v3094
    %3100 = vset.pattern.permute.xlu0 15
    %3101 = vperm.xlu0 %3100, %v2645
    %v3102 = vpop.permute.xlu0 %3101
    %3104 = vset.pattern.permute.xlu0 15
    %3105 = vperm.xlu0 %3104, %v2646
    %v3106 = vpop.permute.xlu0 %3105
    %3108 = vset.pattern.permute.xlu0 15
    %3109 = vperm.xlu0 %3108, %v2647
    %v3110 = vpop.permute.xlu0 %3109
    %3112 = vset.pattern.permute.xlu0 15
    %3113 = vperm.xlu0 %3112, %v2648
    %v3114 = vpop.permute.xlu0 %3113
    %3116 = vset.pattern.permute.xlu0 15
    %3117 = vperm.xlu0 %3116, %v2649
    %v3118 = vpop.permute.xlu0 %3117
    %v3120 = vmul.f32 %v3102, %v1159
    %v3121 = vmul.f32 %v3106, %v1159
    %v3122 = vmul.f32 %v3110, %v1159
    %v3123 = vmul.f32 %v3114, %v1159
    %v3124 = vmul.f32 %v3118, %v1159
    %v3125 = vadd.f32 %v3095, %v3120
    %v3126 = vadd.f32 %v3096, %v3121
    %v3127 = vadd.f32 %v3097, %v3122
    %v3128 = vadd.f32 %v3098, %v3123
    %v3129 = vadd.f32 %v3099, %v3124
    %3130 = vst [vmem:[#allocation2 + $0xa0] sm:$0xff] %v3125
    %3131 = vst [vmem:[#allocation2 + $0xa8] sm:$0xff] %v3126
    %3132 = vst [vmem:[#allocation2 + $0xb0] sm:$0xff] %v3127
    %3133 = vst [vmem:[#allocation2 + $0xb8] sm:$0xff] %v3128
    %3134 = vst [vmem:[#allocation2 + $0xc0] sm:$0xff] %v3129
    %v3135 = vld [vmem:[%s1 + $0xc8] sm:$0xff]
    %v3136 = vld [vmem:[%s1 + $0xd0] sm:$0xff]
    %v3137 = vld [vmem:[%s1 + $0xd8] sm:$0xff]
    %v3138 = vld [vmem:[%s1 + $0xe0] sm:$0xff]
    %v3139 = vld [vmem:[%s1 + $0xe8] sm:$0xff]
    %3141 = vset.pattern.permute.xlu0 0
    %3142 = vperm.xlu0 %3141, %v3135
    %v3143 = vpop.permute.xlu0 %3142
    %3146 = vset.pattern.permute.xlu0 0
    %3147 = vperm.xlu0 %3146, %v3136
    %v3148 = vpop.permute.xlu0 %3147
    %3151 = vset.pattern.permute.xlu0 0
    %3152 = vperm.xlu0 %3151, %v3137
    %v3153 = vpop.permute.xlu0 %3152
    %3156 = vset.pattern.permute.xlu0 0
    %3157 = vperm.xlu0 %3156, %v3138
    %v3158 = vpop.permute.xlu0 %3157
    %3161 = vset.pattern.permute.xlu0 0
    %3162 = vperm.xlu0 %3161, %v3139
    %v3163 = vpop.permute.xlu0 %3162
    %v3165 = vmul.f32 %v3143, %v654
    %v3166 = vmul.f32 %v3148, %v654
    %v3167 = vmul.f32 %v3153, %v654
    %v3168 = vmul.f32 %v3158, %v654
    %v3169 = vmul.f32 %v3163, %v654
    %3170 = vset.pattern.permute.xlu0 1
    %3171 = vperm.xlu0 %3170, %v3135
    %v3172 = vpop.permute.xlu0 %3171
    %3174 = vset.pattern.permute.xlu0 1
    %3175 = vperm.xlu0 %3174, %v3136
    %v3176 = vpop.permute.xlu0 %3175
    %3178 = vset.pattern.permute.xlu0 1
    %3179 = vperm.xlu0 %3178, %v3137
    %v3180 = vpop.permute.xlu0 %3179
    %3182 = vset.pattern.permute.xlu0 1
    %3183 = vperm.xlu0 %3182, %v3138
    %v3184 = vpop.permute.xlu0 %3183
    %3186 = vset.pattern.permute.xlu0 1
    %3187 = vperm.xlu0 %3186, %v3139
    %v3188 = vpop.permute.xlu0 %3187
    %v3190 = vmul.f32 %v3172, %v683
    %v3191 = vmul.f32 %v3176, %v683
    %v3192 = vmul.f32 %v3180, %v683
    %v3193 = vmul.f32 %v3184, %v683
    %v3194 = vmul.f32 %v3188, %v683
    %v3195 = vadd.f32 %v3165, %v3190
    %v3196 = vadd.f32 %v3166, %v3191
    %v3197 = vadd.f32 %v3167, %v3192
    %v3198 = vadd.f32 %v3168, %v3193
    %v3199 = vadd.f32 %v3169, %v3194
    %3200 = vset.pattern.permute.xlu0 2
    %3201 = vperm.xlu0 %3200, %v3135
    %v3202 = vpop.permute.xlu0 %3201
    %3204 = vset.pattern.permute.xlu0 2
    %3205 = vperm.xlu0 %3204, %v3136
    %v3206 = vpop.permute.xlu0 %3205
    %3208 = vset.pattern.permute.xlu0 2
    %3209 = vperm.xlu0 %3208, %v3137
    %v3210 = vpop.permute.xlu0 %3209
    %3212 = vset.pattern.permute.xlu0 2
    %3213 = vperm.xlu0 %3212, %v3138
    %v3214 = vpop.permute.xlu0 %3213
    %3216 = vset.pattern.permute.xlu0 2
    %3217 = vperm.xlu0 %3216, %v3139
    %v3218 = vpop.permute.xlu0 %3217
    %v3220 = vmul.f32 %v3202, %v717
    %v3221 = vmul.f32 %v3206, %v717
    %v3222 = vmul.f32 %v3210, %v717
    %v3223 = vmul.f32 %v3214, %v717
    %v3224 = vmul.f32 %v3218, %v717
    %v3225 = vadd.f32 %v3195, %v3220
    %v3226 = vadd.f32 %v3196, %v3221
    %v3227 = vadd.f32 %v3197, %v3222
    %v3228 = vadd.f32 %v3198, %v3223
    %v3229 = vadd.f32 %v3199, %v3224
    %3230 = vset.pattern.permute.xlu0 3
    %3231 = vperm.xlu0 %3230, %v3135
    %v3232 = vpop.permute.xlu0 %3231
    %3234 = vset.pattern.permute.xlu0 3
    %3235 = vperm.xlu0 %3234, %v3136
    %v3236 = vpop.permute.xlu0 %3235
    %3238 = vset.pattern.permute.xlu0 3
    %3239 = vperm.xlu0 %3238, %v3137
    %v3240 = vpop.permute.xlu0 %3239
    %3242 = vset.pattern.permute.xlu0 3
    %3243 = vperm.xlu0 %3242, %v3138
    %v3244 = vpop.permute.xlu0 %3243
    %3246 = vset.pattern.permute.xlu0 3
    %3247 = vperm.xlu0 %3246, %v3139
    %v3248 = vpop.permute.xlu0 %3247
    %v3250 = vmul.f32 %v3232, %v751
    %v3251 = vmul.f32 %v3236, %v751
    %v3252 = vmul.f32 %v3240, %v751
    %v3253 = vmul.f32 %v3244, %v751
    %v3254 = vmul.f32 %v3248, %v751
    %v3255 = vadd.f32 %v3225, %v3250
    %v3256 = vadd.f32 %v3226, %v3251
    %v3257 = vadd.f32 %v3227, %v3252
    %v3258 = vadd.f32 %v3228, %v3253
    %v3259 = vadd.f32 %v3229, %v3254
    %3260 = vset.pattern.permute.xlu0 4
    %3261 = vperm.xlu0 %3260, %v3135
    %v3262 = vpop.permute.xlu0 %3261
    %3264 = vset.pattern.permute.xlu0 4
    %3265 = vperm.xlu0 %3264, %v3136
    %v3266 = vpop.permute.xlu0 %3265
    %3268 = vset.pattern.permute.xlu0 4
    %3269 = vperm.xlu0 %3268, %v3137
    %v3270 = vpop.permute.xlu0 %3269
    %3272 = vset.pattern.permute.xlu0 4
    %3273 = vperm.xlu0 %3272, %v3138
    %v3274 = vpop.permute.xlu0 %3273
    %3276 = vset.pattern.permute.xlu0 4
    %3277 = vperm.xlu0 %3276, %v3139
    %v3278 = vpop.permute.xlu0 %3277
    %v3280 = vmul.f32 %v3262, %v785
    %v3281 = vmul.f32 %v3266, %v785
    %v3282 = vmul.f32 %v3270, %v785
    %v3283 = vmul.f32 %v3274, %v785
    %v3284 = vmul.f32 %v3278, %v785
    %v3285 = vadd.f32 %v3255, %v3280
    %v3286 = vadd.f32 %v3256, %v3281
    %v3287 = vadd.f32 %v3257, %v3282
    %v3288 = vadd.f32 %v3258, %v3283
    %v3289 = vadd.f32 %v3259, %v3284
    %3290 = vset.pattern.permute.xlu0 5
    %3291 = vperm.xlu0 %3290, %v3135
    %v3292 = vpop.permute.xlu0 %3291
    %3294 = vset.pattern.permute.xlu0 5
    %3295 = vperm.xlu0 %3294, %v3136
    %v3296 = vpop.permute.xlu0 %3295
    %3298 = vset.pattern.permute.xlu0 5
    %3299 = vperm.xlu0 %3298, %v3137
    %v3300 = vpop.permute.xlu0 %3299
    %3302 = vset.pattern.permute.xlu0 5
    %3303 = vperm.xlu0 %3302, %v3138
    %v3304 = vpop.permute.xlu0 %3303
    %3306 = vset.pattern.permute.xlu0 5
    %3307 = vperm.xlu0 %3306, %v3139
    %v3308 = vpop.permute.xlu0 %3307
    %v3310 = vmul.f32 %v3292, %v819
    %v3311 = vmul.f32 %v3296, %v819
    %v3312 = vmul.f32 %v3300, %v819
    %v3313 = vmul.f32 %v3304, %v819
    %v3314 = vmul.f32 %v3308, %v819
    %v3315 = vadd.f32 %v3285, %v3310
    %v3316 = vadd.f32 %v3286, %v3311
    %v3317 = vadd.f32 %v3287, %v3312
    %v3318 = vadd.f32 %v3288, %v3313
    %v3319 = vadd.f32 %v3289, %v3314
    %3320 = vset.pattern.permute.xlu0 6
    %3321 = vperm.xlu0 %3320, %v3135
    %v3322 = vpop.permute.xlu0 %3321
    %3324 = vset.pattern.permute.xlu0 6
    %3325 = vperm.xlu0 %3324, %v3136
    %v3326 = vpop.permute.xlu0 %3325
    %3328 = vset.pattern.permute.xlu0 6
    %3329 = vperm.xlu0 %3328, %v3137
    %v3330 = vpop.permute.xlu0 %3329
    %3332 = vset.pattern.permute.xlu0 6
    %3333 = vperm.xlu0 %3332, %v3138
    %v3334 = vpop.permute.xlu0 %3333
    %3336 = vset.pattern.permute.xlu0 6
    %3337 = vperm.xlu0 %3336, %v3139
    %v3338 = vpop.permute.xlu0 %3337
    %v3340 = vmul.f32 %v3322, %v853
    %v3341 = vmul.f32 %v3326, %v853
    %v3342 = vmul.f32 %v3330, %v853
    %v3343 = vmul.f32 %v3334, %v853
    %v3344 = vmul.f32 %v3338, %v853
    %v3345 = vadd.f32 %v3315, %v3340
    %v3346 = vadd.f32 %v3316, %v3341
    %v3347 = vadd.f32 %v3317, %v3342
    %v3348 = vadd.f32 %v3318, %v3343
    %v3349 = vadd.f32 %v3319, %v3344
    %3350 = vset.pattern.permute.xlu0 7
    %3351 = vperm.xlu0 %3350, %v3135
    %v3352 = vpop.permute.xlu0 %3351
    %3354 = vset.pattern.permute.xlu0 7
    %3355 = vperm.xlu0 %3354, %v3136
    %v3356 = vpop.permute.xlu0 %3355
    %3358 = vset.pattern.permute.xlu0 7
    %3359 = vperm.xlu0 %3358, %v3137
    %v3360 = vpop.permute.xlu0 %3359
    %3362 = vset.pattern.permute.xlu0 7
    %3363 = vperm.xlu0 %3362, %v3138
    %v3364 = vpop.permute.xlu0 %3363
    %3366 = vset.pattern.permute.xlu0 7
    %3367 = vperm.xlu0 %3366, %v3139
    %v3368 = vpop.permute.xlu0 %3367
    %v3370 = vmul.f32 %v3352, %v887
    %v3371 = vmul.f32 %v3356, %v887
    %v3372 = vmul.f32 %v3360, %v887
    %v3373 = vmul.f32 %v3364, %v887
    %v3374 = vmul.f32 %v3368, %v887
    %v3375 = vadd.f32 %v3345, %v3370
    %v3376 = vadd.f32 %v3346, %v3371
    %v3377 = vadd.f32 %v3347, %v3372
    %v3378 = vadd.f32 %v3348, %v3373
    %v3379 = vadd.f32 %v3349, %v3374
    %3380 = vset.pattern.permute.xlu0 8
    %3381 = vperm.xlu0 %3380, %v3135
    %v3382 = vpop.permute.xlu0 %3381
    %3384 = vset.pattern.permute.xlu0 8
    %3385 = vperm.xlu0 %3384, %v3136
    %v3386 = vpop.permute.xlu0 %3385
    %3388 = vset.pattern.permute.xlu0 8
    %3389 = vperm.xlu0 %3388, %v3137
    %v3390 = vpop.permute.xlu0 %3389
    %3392 = vset.pattern.permute.xlu0 8
    %3393 = vperm.xlu0 %3392, %v3138
    %v3394 = vpop.permute.xlu0 %3393
    %3396 = vset.pattern.permute.xlu0 8
    %3397 = vperm.xlu0 %3396, %v3139
    %v3398 = vpop.permute.xlu0 %3397
    %v3400 = vmul.f32 %v3382, %v921
    %v3401 = vmul.f32 %v3386, %v921
    %v3402 = vmul.f32 %v3390, %v921
    %v3403 = vmul.f32 %v3394, %v921
    %v3404 = vmul.f32 %v3398, %v921
    %v3405 = vadd.f32 %v3375, %v3400
    %v3406 = vadd.f32 %v3376, %v3401
    %v3407 = vadd.f32 %v3377, %v3402
    %v3408 = vadd.f32 %v3378, %v3403
    %v3409 = vadd.f32 %v3379, %v3404
    %3410 = vset.pattern.permute.xlu0 9
    %3411 = vperm.xlu0 %3410, %v3135
    %v3412 = vpop.permute.xlu0 %3411
    %3414 = vset.pattern.permute.xlu0 9
    %3415 = vperm.xlu0 %3414, %v3136
    %v3416 = vpop.permute.xlu0 %3415
    %3418 = vset.pattern.permute.xlu0 9
    %3419 = vperm.xlu0 %3418, %v3137
    %v3420 = vpop.permute.xlu0 %3419
    %3422 = vset.pattern.permute.xlu0 9
    %3423 = vperm.xlu0 %3422, %v3138
    %v3424 = vpop.permute.xlu0 %3423
    %3426 = vset.pattern.permute.xlu0 9
    %3427 = vperm.xlu0 %3426, %v3139
    %v3428 = vpop.permute.xlu0 %3427
    %v3430 = vmul.f32 %v3412, %v955
    %v3431 = vmul.f32 %v3416, %v955
    %v3432 = vmul.f32 %v3420, %v955
    %v3433 = vmul.f32 %v3424, %v955
    %v3434 = vmul.f32 %v3428, %v955
    %v3435 = vadd.f32 %v3405, %v3430
    %v3436 = vadd.f32 %v3406, %v3431
    %v3437 = vadd.f32 %v3407, %v3432
    %v3438 = vadd.f32 %v3408, %v3433
    %v3439 = vadd.f32 %v3409, %v3434
    %3440 = vset.pattern.permute.xlu0 10
    %3441 = vperm.xlu0 %3440, %v3135
    %v3442 = vpop.permute.xlu0 %3441
    %3444 = vset.pattern.permute.xlu0 10
    %3445 = vperm.xlu0 %3444, %v3136
    %v3446 = vpop.permute.xlu0 %3445
    %3448 = vset.pattern.permute.xlu0 10
    %3449 = vperm.xlu0 %3448, %v3137
    %v3450 = vpop.permute.xlu0 %3449
    %3452 = vset.pattern.permute.xlu0 10
    %3453 = vperm.xlu0 %3452, %v3138
    %v3454 = vpop.permute.xlu0 %3453
    %3456 = vset.pattern.permute.xlu0 10
    %3457 = vperm.xlu0 %3456, %v3139
    %v3458 = vpop.permute.xlu0 %3457
    %v3460 = vmul.f32 %v3442, %v989
    %v3461 = vmul.f32 %v3446, %v989
    %v3462 = vmul.f32 %v3450, %v989
    %v3463 = vmul.f32 %v3454, %v989
    %v3464 = vmul.f32 %v3458, %v989
    %v3465 = vadd.f32 %v3435, %v3460
    %v3466 = vadd.f32 %v3436, %v3461
    %v3467 = vadd.f32 %v3437, %v3462
    %v3468 = vadd.f32 %v3438, %v3463
    %v3469 = vadd.f32 %v3439, %v3464
    %3470 = vset.pattern.permute.xlu0 11
    %3471 = vperm.xlu0 %3470, %v3135
    %v3472 = vpop.permute.xlu0 %3471
    %3474 = vset.pattern.permute.xlu0 11
    %3475 = vperm.xlu0 %3474, %v3136
    %v3476 = vpop.permute.xlu0 %3475
    %3478 = vset.pattern.permute.xlu0 11
    %3479 = vperm.xlu0 %3478, %v3137
    %v3480 = vpop.permute.xlu0 %3479
    %3482 = vset.pattern.permute.xlu0 11
    %3483 = vperm.xlu0 %3482, %v3138
    %v3484 = vpop.permute.xlu0 %3483
    %3486 = vset.pattern.permute.xlu0 11
    %3487 = vperm.xlu0 %3486, %v3139
    %v3488 = vpop.permute.xlu0 %3487
    %v3490 = vmul.f32 %v3472, %v1023
    %v3491 = vmul.f32 %v3476, %v1023
    %v3492 = vmul.f32 %v3480, %v1023
    %v3493 = vmul.f32 %v3484, %v1023
    %v3494 = vmul.f32 %v3488, %v1023
    %v3495 = vadd.f32 %v3465, %v3490
    %v3496 = vadd.f32 %v3466, %v3491
    %v3497 = vadd.f32 %v3467, %v3492
    %v3498 = vadd.f32 %v3468, %v3493
    %v3499 = vadd.f32 %v3469, %v3494
    %3500 = vset.pattern.permute.xlu0 12
    %3501 = vperm.xlu0 %3500, %v3135
    %v3502 = vpop.permute.xlu0 %3501
    %3504 = vset.pattern.permute.xlu0 12
    %3505 = vperm.xlu0 %3504, %v3136
    %v3506 = vpop.permute.xlu0 %3505
    %3508 = vset.pattern.permute.xlu0 12
    %3509 = vperm.xlu0 %3508, %v3137
    %v3510 = vpop.permute.xlu0 %3509
    %3512 = vset.pattern.permute.xlu0 12
    %3513 = vperm.xlu0 %3512, %v3138
    %v3514 = vpop.permute.xlu0 %3513
    %3516 = vset.pattern.permute.xlu0 12
    %3517 = vperm.xlu0 %3516, %v3139
    %v3518 = vpop.permute.xlu0 %3517
    %v3520 = vmul.f32 %v3502, %v1057
    %v3521 = vmul.f32 %v3506, %v1057
    %v3522 = vmul.f32 %v3510, %v1057
    %v3523 = vmul.f32 %v3514, %v1057
    %v3524 = vmul.f32 %v3518, %v1057
    %v3525 = vadd.f32 %v3495, %v3520
    %v3526 = vadd.f32 %v3496, %v3521
    %v3527 = vadd.f32 %v3497, %v3522
    %v3528 = vadd.f32 %v3498, %v3523
    %v3529 = vadd.f32 %v3499, %v3524
    %3530 = vset.pattern.permute.xlu0 13
    %3531 = vperm.xlu0 %3530, %v3135
    %v3532 = vpop.permute.xlu0 %3531
    %3534 = vset.pattern.permute.xlu0 13
    %3535 = vperm.xlu0 %3534, %v3136
    %v3536 = vpop.permute.xlu0 %3535
    %3538 = vset.pattern.permute.xlu0 13
    %3539 = vperm.xlu0 %3538, %v3137
    %v3540 = vpop.permute.xlu0 %3539
    %3542 = vset.pattern.permute.xlu0 13
    %3543 = vperm.xlu0 %3542, %v3138
    %v3544 = vpop.permute.xlu0 %3543
    %3546 = vset.pattern.permute.xlu0 13
    %3547 = vperm.xlu0 %3546, %v3139
    %v3548 = vpop.permute.xlu0 %3547
    %v3550 = vmul.f32 %v3532, %v1091
    %v3551 = vmul.f32 %v3536, %v1091
    %v3552 = vmul.f32 %v3540, %v1091
    %v3553 = vmul.f32 %v3544, %v1091
    %v3554 = vmul.f32 %v3548, %v1091
    %v3555 = vadd.f32 %v3525, %v3550
    %v3556 = vadd.f32 %v3526, %v3551
    %v3557 = vadd.f32 %v3527, %v3552
    %v3558 = vadd.f32 %v3528, %v3553
    %v3559 = vadd.f32 %v3529, %v3554
    %3560 = vset.pattern.permute.xlu0 14
    %3561 = vperm.xlu0 %3560, %v3135
    %v3562 = vpop.permute.xlu0 %3561
    %3564 = vset.pattern.permute.xlu0 14
    %3565 = vperm.xlu0 %3564, %v3136
    %v3566 = vpop.permute.xlu0 %3565
    %3568 = vset.pattern.permute.xlu0 14
    %3569 = vperm.xlu0 %3568, %v3137
    %v3570 = vpop.permute.xlu0 %3569
    %3572 = vset.pattern.permute.xlu0 14
    %3573 = vperm.xlu0 %3572, %v3138
    %v3574 = vpop.permute.xlu0 %3573
    %3576 = vset.pattern.permute.xlu0 14
    %3577 = vperm.xlu0 %3576, %v3139
    %v3578 = vpop.permute.xlu0 %3577
    %v3580 = vmul.f32 %v3562, %v1125
    %v3581 = vmul.f32 %v3566, %v1125
    %v3582 = vmul.f32 %v3570, %v1125
    %v3583 = vmul.f32 %v3574, %v1125
    %v3584 = vmul.f32 %v3578, %v1125
    %v3585 = vadd.f32 %v3555, %v3580
    %v3586 = vadd.f32 %v3556, %v3581
    %v3587 = vadd.f32 %v3557, %v3582
    %v3588 = vadd.f32 %v3558, %v3583
    %v3589 = vadd.f32 %v3559, %v3584
    %3590 = vset.pattern.permute.xlu0 15
    %3591 = vperm.xlu0 %3590, %v3135
    %v3592 = vpop.permute.xlu0 %3591
    %3594 = vset.pattern.permute.xlu0 15
    %3595 = vperm.xlu0 %3594, %v3136
    %v3596 = vpop.permute.xlu0 %3595
    %3598 = vset.pattern.permute.xlu0 15
    %3599 = vperm.xlu0 %3598, %v3137
    %v3600 = vpop.permute.xlu0 %3599
    %3602 = vset.pattern.permute.xlu0 15
    %3603 = vperm.xlu0 %3602, %v3138
    %v3604 = vpop.permute.xlu0 %3603
    %3606 = vset.pattern.permute.xlu0 15
    %3607 = vperm.xlu0 %3606, %v3139
    %v3608 = vpop.permute.xlu0 %3607
    %v3610 = vmul.f32 %v3592, %v1159
    %v3611 = vmul.f32 %v3596, %v1159
    %v3612 = vmul.f32 %v3600, %v1159
    %v3613 = vmul.f32 %v3604, %v1159
    %v3614 = vmul.f32 %v3608, %v1159
    %v3615 = vadd.f32 %v3585, %v3610
    %v3616 = vadd.f32 %v3586, %v3611
    %v3617 = vadd.f32 %v3587, %v3612
    %v3618 = vadd.f32 %v3588, %v3613
    %v3619 = vadd.f32 %v3589, %v3614
    %3620 = vst [vmem:[#allocation2 + $0xc8] sm:$0xff] %v3615
    %3621 = vst [vmem:[#allocation2 + $0xd0] sm:$0xff] %v3616
    %3622 = vst [vmem:[#allocation2 + $0xd8] sm:$0xff] %v3617
    %3623 = vst [vmem:[#allocation2 + $0xe0] sm:$0xff] %v3618
    %3624 = vst [vmem:[#allocation2 + $0xe8] sm:$0xff] %v3619
    %v3625 = vld [vmem:[%s1 + $0xf0] sm:$0xff]
    %v3626 = vld [vmem:[%s1 + $0xf8] sm:$0xff]
    %v3627 = vld [vmem:[%s1 + $0x100] sm:$0xff]
    %v3628 = vld [vmem:[%s1 + $0x108] sm:$0xff]
    %v3629 = vld [vmem:[%s1 + $0x110] sm:$0xff]
    %3631 = vset.pattern.permute.xlu0 0
    %3632 = vperm.xlu0 %3631, %v3625
    %v3633 = vpop.permute.xlu0 %3632
    %3636 = vset.pattern.permute.xlu0 0
    %3637 = vperm.xlu0 %3636, %v3626
    %v3638 = vpop.permute.xlu0 %3637
    %3641 = vset.pattern.permute.xlu0 0
    %3642 = vperm.xlu0 %3641, %v3627
    %v3643 = vpop.permute.xlu0 %3642
    %3646 = vset.pattern.permute.xlu0 0
    %3647 = vperm.xlu0 %3646, %v3628
    %v3648 = vpop.permute.xlu0 %3647
    %3651 = vset.pattern.permute.xlu0 0
    %3652 = vperm.xlu0 %3651, %v3629
    %v3653 = vpop.permute.xlu0 %3652
    %v3655 = vmul.f32 %v3633, %v654
    %v3656 = vmul.f32 %v3638, %v654
    %v3657 = vmul.f32 %v3643, %v654
    %v3658 = vmul.f32 %v3648, %v654
    %v3659 = vmul.f32 %v3653, %v654
    %3660 = vset.pattern.permute.xlu0 1
    %3661 = vperm.xlu0 %3660, %v3625
    %v3662 = vpop.permute.xlu0 %3661
    %3664 = vset.pattern.permute.xlu0 1
    %3665 = vperm.xlu0 %3664, %v3626
    %v3666 = vpop.permute.xlu0 %3665
    %3668 = vset.pattern.permute.xlu0 1
    %3669 = vperm.xlu0 %3668, %v3627
    %v3670 = vpop.permute.xlu0 %3669
    %3672 = vset.pattern.permute.xlu0 1
    %3673 = vperm.xlu0 %3672, %v3628
    %v3674 = vpop.permute.xlu0 %3673
    %3676 = vset.pattern.permute.xlu0 1
    %3677 = vperm.xlu0 %3676, %v3629
    %v3678 = vpop.permute.xlu0 %3677
    %v3680 = vmul.f32 %v3662, %v683
    %v3681 = vmul.f32 %v3666, %v683
    %v3682 = vmul.f32 %v3670, %v683
    %v3683 = vmul.f32 %v3674, %v683
    %v3684 = vmul.f32 %v3678, %v683
    %v3685 = vadd.f32 %v3655, %v3680
    %v3686 = vadd.f32 %v3656, %v3681
    %v3687 = vadd.f32 %v3657, %v3682
    %v3688 = vadd.f32 %v3658, %v3683
    %v3689 = vadd.f32 %v3659, %v3684
    %3690 = vset.pattern.permute.xlu0 2
    %3691 = vperm.xlu0 %3690, %v3625
    %v3692 = vpop.permute.xlu0 %3691
    %3694 = vset.pattern.permute.xlu0 2
    %3695 = vperm.xlu0 %3694, %v3626
    %v3696 = vpop.permute.xlu0 %3695
    %3698 = vset.pattern.permute.xlu0 2
    %3699 = vperm.xlu0 %3698, %v3627
    %v3700 = vpop.permute.xlu0 %3699
    %3702 = vset.pattern.permute.xlu0 2
    %3703 = vperm.xlu0 %3702, %v3628
    %v3704 = vpop.permute.xlu0 %3703
    %3706 = vset.pattern.permute.xlu0 2
    %3707 = vperm.xlu0 %3706, %v3629
    %v3708 = vpop.permute.xlu0 %3707
    %v3710 = vmul.f32 %v3692, %v717
    %v3711 = vmul.f32 %v3696, %v717
    %v3712 = vmul.f32 %v3700, %v717
    %v3713 = vmul.f32 %v3704, %v717
    %v3714 = vmul.f32 %v3708, %v717
    %v3715 = vadd.f32 %v3685, %v3710
    %v3716 = vadd.f32 %v3686, %v3711
    %v3717 = vadd.f32 %v3687, %v3712
    %v3718 = vadd.f32 %v3688, %v3713
    %v3719 = vadd.f32 %v3689, %v3714
    %3720 = vset.pattern.permute.xlu0 3
    %3721 = vperm.xlu0 %3720, %v3625
    %v3722 = vpop.permute.xlu0 %3721
    %3724 = vset.pattern.permute.xlu0 3
    %3725 = vperm.xlu0 %3724, %v3626
    %v3726 = vpop.permute.xlu0 %3725
    %3728 = vset.pattern.permute.xlu0 3
    %3729 = vperm.xlu0 %3728, %v3627
    %v3730 = vpop.permute.xlu0 %3729
    %3732 = vset.pattern.permute.xlu0 3
    %3733 = vperm.xlu0 %3732, %v3628
    %v3734 = vpop.permute.xlu0 %3733
    %3736 = vset.pattern.permute.xlu0 3
    %3737 = vperm.xlu0 %3736, %v3629
    %v3738 = vpop.permute.xlu0 %3737
    %v3740 = vmul.f32 %v3722, %v751
    %v3741 = vmul.f32 %v3726, %v751
    %v3742 = vmul.f32 %v3730, %v751
    %v3743 = vmul.f32 %v3734, %v751
    %v3744 = vmul.f32 %v3738, %v751
    %v3745 = vadd.f32 %v3715, %v3740
    %v3746 = vadd.f32 %v3716, %v3741
    %v3747 = vadd.f32 %v3717, %v3742
    %v3748 = vadd.f32 %v3718, %v3743
    %v3749 = vadd.f32 %v3719, %v3744
    %3750 = vset.pattern.permute.xlu0 4
    %3751 = vperm.xlu0 %3750, %v3625
    %v3752 = vpop.permute.xlu0 %3751
    %3754 = vset.pattern.permute.xlu0 4
    %3755 = vperm.xlu0 %3754, %v3626
    %v3756 = vpop.permute.xlu0 %3755
    %3758 = vset.pattern.permute.xlu0 4
    %3759 = vperm.xlu0 %3758, %v3627
    %v3760 = vpop.permute.xlu0 %3759
    %3762 = vset.pattern.permute.xlu0 4
    %3763 = vperm.xlu0 %3762, %v3628
    %v3764 = vpop.permute.xlu0 %3763
    %3766 = vset.pattern.permute.xlu0 4
    %3767 = vperm.xlu0 %3766, %v3629
    %v3768 = vpop.permute.xlu0 %3767
    %v3770 = vmul.f32 %v3752, %v785
    %v3771 = vmul.f32 %v3756, %v785
    %v3772 = vmul.f32 %v3760, %v785
    %v3773 = vmul.f32 %v3764, %v785
    %v3774 = vmul.f32 %v3768, %v785
    %v3775 = vadd.f32 %v3745, %v3770
    %v3776 = vadd.f32 %v3746, %v3771
    %v3777 = vadd.f32 %v3747, %v3772
    %v3778 = vadd.f32 %v3748, %v3773
    %v3779 = vadd.f32 %v3749, %v3774
    %3780 = vset.pattern.permute.xlu0 5
    %3781 = vperm.xlu0 %3780, %v3625
    %v3782 = vpop.permute.xlu0 %3781
    %3784 = vset.pattern.permute.xlu0 5
    %3785 = vperm.xlu0 %3784, %v3626
    %v3786 = vpop.permute.xlu0 %3785
    %3788 = vset.pattern.permute.xlu0 5
    %3789 = vperm.xlu0 %3788, %v3627
    %v3790 = vpop.permute.xlu0 %3789
    %3792 = vset.pattern.permute.xlu0 5
    %3793 = vperm.xlu0 %3792, %v3628
    %v3794 = vpop.permute.xlu0 %3793
    %3796 = vset.pattern.permute.xlu0 5
    %3797 = vperm.xlu0 %3796, %v3629
    %v3798 = vpop.permute.xlu0 %3797
    %v3800 = vmul.f32 %v3782, %v819
    %v3801 = vmul.f32 %v3786, %v819
    %v3802 = vmul.f32 %v3790, %v819
    %v3803 = vmul.f32 %v3794, %v819
    %v3804 = vmul.f32 %v3798, %v819
    %v3805 = vadd.f32 %v3775, %v3800
    %v3806 = vadd.f32 %v3776, %v3801
    %v3807 = vadd.f32 %v3777, %v3802
    %v3808 = vadd.f32 %v3778, %v3803
    %v3809 = vadd.f32 %v3779, %v3804
    %3810 = vset.pattern.permute.xlu0 6
    %3811 = vperm.xlu0 %3810, %v3625
    %v3812 = vpop.permute.xlu0 %3811
    %3814 = vset.pattern.permute.xlu0 6
    %3815 = vperm.xlu0 %3814, %v3626
    %v3816 = vpop.permute.xlu0 %3815
    %3818 = vset.pattern.permute.xlu0 6
    %3819 = vperm.xlu0 %3818, %v3627
    %v3820 = vpop.permute.xlu0 %3819
    %3822 = vset.pattern.permute.xlu0 6
    %3823 = vperm.xlu0 %3822, %v3628
    %v3824 = vpop.permute.xlu0 %3823
    %3826 = vset.pattern.permute.xlu0 6
    %3827 = vperm.xlu0 %3826, %v3629
    %v3828 = vpop.permute.xlu0 %3827
    %v3830 = vmul.f32 %v3812, %v853
    %v3831 = vmul.f32 %v3816, %v853
    %v3832 = vmul.f32 %v3820, %v853
    %v3833 = vmul.f32 %v3824, %v853
    %v3834 = vmul.f32 %v3828, %v853
    %v3835 = vadd.f32 %v3805, %v3830
    %v3836 = vadd.f32 %v3806, %v3831
    %v3837 = vadd.f32 %v3807, %v3832
    %v3838 = vadd.f32 %v3808, %v3833
    %v3839 = vadd.f32 %v3809, %v3834
    %3840 = vset.pattern.permute.xlu0 7
    %3841 = vperm.xlu0 %3840, %v3625
    %v3842 = vpop.permute.xlu0 %3841
    %3844 = vset.pattern.permute.xlu0 7
    %3845 = vperm.xlu0 %3844, %v3626
    %v3846 = vpop.permute.xlu0 %3845
    %3848 = vset.pattern.permute.xlu0 7
    %3849 = vperm.xlu0 %3848, %v3627
    %v3850 = vpop.permute.xlu0 %3849
    %3852 = vset.pattern.permute.xlu0 7
    %3853 = vperm.xlu0 %3852, %v3628
    %v3854 = vpop.permute.xlu0 %3853
    %3856 = vset.pattern.permute.xlu0 7
    %3857 = vperm.xlu0 %3856, %v3629
    %v3858 = vpop.permute.xlu0 %3857
    %v3860 = vmul.f32 %v3842, %v887
    %v3861 = vmul.f32 %v3846, %v887
    %v3862 = vmul.f32 %v3850, %v887
    %v3863 = vmul.f32 %v3854, %v887
    %v3864 = vmul.f32 %v3858, %v887
    %v3865 = vadd.f32 %v3835, %v3860
    %v3866 = vadd.f32 %v3836, %v3861
    %v3867 = vadd.f32 %v3837, %v3862
    %v3868 = vadd.f32 %v3838, %v3863
    %v3869 = vadd.f32 %v3839, %v3864
    %3870 = vset.pattern.permute.xlu0 8
    %3871 = vperm.xlu0 %3870, %v3625
    %v3872 = vpop.permute.xlu0 %3871
    %3874 = vset.pattern.permute.xlu0 8
    %3875 = vperm.xlu0 %3874, %v3626
    %v3876 = vpop.permute.xlu0 %3875
    %3878 = vset.pattern.permute.xlu0 8
    %3879 = vperm.xlu0 %3878, %v3627
    %v3880 = vpop.permute.xlu0 %3879
    %3882 = vset.pattern.permute.xlu0 8
    %3883 = vperm.xlu0 %3882, %v3628
    %v3884 = vpop.permute.xlu0 %3883
    %3886 = vset.pattern.permute.xlu0 8
    %3887 = vperm.xlu0 %3886, %v3629
    %v3888 = vpop.permute.xlu0 %3887
    %v3890 = vmul.f32 %v3872, %v921
    %v3891 = vmul.f32 %v3876, %v921
    %v3892 = vmul.f32 %v3880, %v921
    %v3893 = vmul.f32 %v3884, %v921
    %v3894 = vmul.f32 %v3888, %v921
    %v3895 = vadd.f32 %v3865, %v3890
    %v3896 = vadd.f32 %v3866, %v3891
    %v3897 = vadd.f32 %v3867, %v3892
    %v3898 = vadd.f32 %v3868, %v3893
    %v3899 = vadd.f32 %v3869, %v3894
    %3900 = vset.pattern.permute.xlu0 9
    %3901 = vperm.xlu0 %3900, %v3625
    %v3902 = vpop.permute.xlu0 %3901
    %3904 = vset.pattern.permute.xlu0 9
    %3905 = vperm.xlu0 %3904, %v3626
    %v3906 = vpop.permute.xlu0 %3905
    %3908 = vset.pattern.permute.xlu0 9
    %3909 = vperm.xlu0 %3908, %v3627
    %v3910 = vpop.permute.xlu0 %3909
    %3912 = vset.pattern.permute.xlu0 9
    %3913 = vperm.xlu0 %3912, %v3628
    %v3914 = vpop.permute.xlu0 %3913
    %3916 = vset.pattern.permute.xlu0 9
    %3917 = vperm.xlu0 %3916, %v3629
    %v3918 = vpop.permute.xlu0 %3917
    %v3920 = vmul.f32 %v3902, %v955
    %v3921 = vmul.f32 %v3906, %v955
    %v3922 = vmul.f32 %v3910, %v955
    %v3923 = vmul.f32 %v3914, %v955
    %v3924 = vmul.f32 %v3918, %v955
    %v3925 = vadd.f32 %v3895, %v3920
    %v3926 = vadd.f32 %v3896, %v3921
    %v3927 = vadd.f32 %v3897, %v3922
    %v3928 = vadd.f32 %v3898, %v3923
    %v3929 = vadd.f32 %v3899, %v3924
    %3930 = vset.pattern.permute.xlu0 10
    %3931 = vperm.xlu0 %3930, %v3625
    %v3932 = vpop.permute.xlu0 %3931
    %3934 = vset.pattern.permute.xlu0 10
    %3935 = vperm.xlu0 %3934, %v3626
    %v3936 = vpop.permute.xlu0 %3935
    %3938 = vset.pattern.permute.xlu0 10
    %3939 = vperm.xlu0 %3938, %v3627
    %v3940 = vpop.permute.xlu0 %3939
    %3942 = vset.pattern.permute.xlu0 10
    %3943 = vperm.xlu0 %3942, %v3628
    %v3944 = vpop.permute.xlu0 %3943
    %3946 = vset.pattern.permute.xlu0 10
    %3947 = vperm.xlu0 %3946, %v3629
    %v3948 = vpop.permute.xlu0 %3947
    %v3950 = vmul.f32 %v3932, %v989
    %v3951 = vmul.f32 %v3936, %v989
    %v3952 = vmul.f32 %v3940, %v989
    %v3953 = vmul.f32 %v3944, %v989
    %v3954 = vmul.f32 %v3948, %v989
    %v3955 = vadd.f32 %v3925, %v3950
    %v3956 = vadd.f32 %v3926, %v3951
    %v3957 = vadd.f32 %v3927, %v3952
    %v3958 = vadd.f32 %v3928, %v3953
    %v3959 = vadd.f32 %v3929, %v3954
    %3960 = vset.pattern.permute.xlu0 11
    %3961 = vperm.xlu0 %3960, %v3625
    %v3962 = vpop.permute.xlu0 %3961
    %3964 = vset.pattern.permute.xlu0 11
    %3965 = vperm.xlu0 %3964, %v3626
    %v3966 = vpop.permute.xlu0 %3965
    %3968 = vset.pattern.permute.xlu0 11
    %3969 = vperm.xlu0 %3968, %v3627
    %v3970 = vpop.permute.xlu0 %3969
    %3972 = vset.pattern.permute.xlu0 11
    %3973 = vperm.xlu0 %3972, %v3628
    %v3974 = vpop.permute.xlu0 %3973
    %3976 = vset.pattern.permute.xlu0 11
    %3977 = vperm.xlu0 %3976, %v3629
    %v3978 = vpop.permute.xlu0 %3977
    %v3980 = vmul.f32 %v3962, %v1023
    %v3981 = vmul.f32 %v3966, %v1023
    %v3982 = vmul.f32 %v3970, %v1023
    %v3983 = vmul.f32 %v3974, %v1023
    %v3984 = vmul.f32 %v3978, %v1023
    %v3985 = vadd.f32 %v3955, %v3980
    %v3986 = vadd.f32 %v3956, %v3981
    %v3987 = vadd.f32 %v3957, %v3982
    %v3988 = vadd.f32 %v3958, %v3983
    %v3989 = vadd.f32 %v3959, %v3984
    %3990 = vset.pattern.permute.xlu0 12
    %3991 = vperm.xlu0 %3990, %v3625
    %v3992 = vpop.permute.xlu0 %3991
    %3994 = vset.pattern.permute.xlu0 12
    %3995 = vperm.xlu0 %3994, %v3626
    %v3996 = vpop.permute.xlu0 %3995
    %3998 = vset.pattern.permute.xlu0 12
    %3999 = vperm.xlu0 %3998, %v3627
    %v4000 = vpop.permute.xlu0 %3999
    %4002 = vset.pattern.permute.xlu0 12
    %4003 = vperm.xlu0 %4002, %v3628
    %v4004 = vpop.permute.xlu0 %4003
    %4006 = vset.pattern.permute.xlu0 12
    %4007 = vperm.xlu0 %4006, %v3629
    %v4008 = vpop.permute.xlu0 %4007
    %v4010 = vmul.f32 %v3992, %v1057
    %v4011 = vmul.f32 %v3996, %v1057
    %v4012 = vmul.f32 %v4000, %v1057
    %v4013 = vmul.f32 %v4004, %v1057
    %v4014 = vmul.f32 %v4008, %v1057
    %v4015 = vadd.f32 %v3985, %v4010
    %v4016 = vadd.f32 %v3986, %v4011
    %v4017 = vadd.f32 %v3987, %v4012
    %v4018 = vadd.f32 %v3988, %v4013
    %v4019 = vadd.f32 %v3989, %v4014
    %4020 = vset.pattern.permute.xlu0 13
    %4021 = vperm.xlu0 %4020, %v3625
    %v4022 = vpop.permute.xlu0 %4021
    %4024 = vset.pattern.permute.xlu0 13
    %4025 = vperm.xlu0 %4024, %v3626
    %v4026 = vpop.permute.xlu0 %4025
    %4028 = vset.pattern.permute.xlu0 13
    %4029 = vperm.xlu0 %4028, %v3627
    %v4030 = vpop.permute.xlu0 %4029
    %4032 = vset.pattern.permute.xlu0 13
    %4033 = vperm.xlu0 %4032, %v3628
    %v4034 = vpop.permute.xlu0 %4033
    %4036 = vset.pattern.permute.xlu0 13
    %4037 = vperm.xlu0 %4036, %v3629
    %v4038 = vpop.permute.xlu0 %4037
    %v4040 = vmul.f32 %v4022, %v1091
    %v4041 = vmul.f32 %v4026, %v1091
    %v4042 = vmul.f32 %v4030, %v1091
    %v4043 = vmul.f32 %v4034, %v1091
    %v4044 = vmul.f32 %v4038, %v1091
    %v4045 = vadd.f32 %v4015, %v4040
    %v4046 = vadd.f32 %v4016, %v4041
    %v4047 = vadd.f32 %v4017, %v4042
    %v4048 = vadd.f32 %v4018, %v4043
    %v4049 = vadd.f32 %v4019, %v4044
    %4050 = vset.pattern.permute.xlu0 14
    %4051 = vperm.xlu0 %4050, %v3625
    %v4052 = vpop.permute.xlu0 %4051
    %4054 = vset.pattern.permute.xlu0 14
    %4055 = vperm.xlu0 %4054, %v3626
    %v4056 = vpop.permute.xlu0 %4055
    %4058 = vset.pattern.permute.xlu0 14
    %4059 = vperm.xlu0 %4058, %v3627
    %v4060 = vpop.permute.xlu0 %4059
    %4062 = vset.pattern.permute.xlu0 14
    %4063 = vperm.xlu0 %4062, %v3628
    %v4064 = vpop.permute.xlu0 %4063
    %4066 = vset.pattern.permute.xlu0 14
    %4067 = vperm.xlu0 %4066, %v3629
    %v4068 = vpop.permute.xlu0 %4067
    %v4070 = vmul.f32 %v4052, %v1125
    %v4071 = vmul.f32 %v4056, %v1125
    %v4072 = vmul.f32 %v4060, %v1125
    %v4073 = vmul.f32 %v4064, %v1125
    %v4074 = vmul.f32 %v4068, %v1125
    %v4075 = vadd.f32 %v4045, %v4070
    %v4076 = vadd.f32 %v4046, %v4071
    %v4077 = vadd.f32 %v4047, %v4072
    %v4078 = vadd.f32 %v4048, %v4073
    %v4079 = vadd.f32 %v4049, %v4074
    %4080 = vset.pattern.permute.xlu0 15
    %4081 = vperm.xlu0 %4080, %v3625
    %v4082 = vpop.permute.xlu0 %4081
    %4084 = vset.pattern.permute.xlu0 15
    %4085 = vperm.xlu0 %4084, %v3626
    %v4086 = vpop.permute.xlu0 %4085
    %4088 = vset.pattern.permute.xlu0 15
    %4089 = vperm.xlu0 %4088, %v3627
    %v4090 = vpop.permute.xlu0 %4089
    %4092 = vset.pattern.permute.xlu0 15
    %4093 = vperm.xlu0 %4092, %v3628
    %v4094 = vpop.permute.xlu0 %4093
    %4096 = vset.pattern.permute.xlu0 15
    %4097 = vperm.xlu0 %4096, %v3629
    %v4098 = vpop.permute.xlu0 %4097
    %v4100 = vmul.f32 %v4082, %v1159
    %v4101 = vmul.f32 %v4086, %v1159
    %v4102 = vmul.f32 %v4090, %v1159
    %v4103 = vmul.f32 %v4094, %v1159
    %v4104 = vmul.f32 %v4098, %v1159
    %v4105 = vadd.f32 %v4075, %v4100
    %v4106 = vadd.f32 %v4076, %v4101
    %v4107 = vadd.f32 %v4077, %v4102
    %v4108 = vadd.f32 %v4078, %v4103
    %v4109 = vadd.f32 %v4079, %v4104
    %4110 = vst [vmem:[#allocation2 + $0xf0] sm:$0xff] %v4105
    %4111 = vst [vmem:[#allocation2 + $0xf8] sm:$0xff] %v4106
    %4112 = vst [vmem:[#allocation2 + $0x100] sm:$0xff] %v4107
    %4113 = vst [vmem:[#allocation2 + $0x108] sm:$0xff] %v4108
    %4114 = vst [vmem:[#allocation2 + $0x110] sm:$0xff] %v4109
    %v4115 = vld [vmem:[%s1 + $0x118] sm:$0xff]
    %v4116 = vld [vmem:[%s1 + $0x120] sm:$0xff]
    %v4117 = vld [vmem:[%s1 + $0x128] sm:$0xff]
    %v4118 = vld [vmem:[%s1 + $0x130] sm:$0xff]
    %v4119 = vld [vmem:[%s1 + $0x138] sm:$0xff]
    %4121 = vset.pattern.permute.xlu0 0
    %4122 = vperm.xlu0 %4121, %v4115
    %v4123 = vpop.permute.xlu0 %4122
    %4126 = vset.pattern.permute.xlu0 0
    %4127 = vperm.xlu0 %4126, %v4116
    %v4128 = vpop.permute.xlu0 %4127
    %4131 = vset.pattern.permute.xlu0 0
    %4132 = vperm.xlu0 %4131, %v4117
    %v4133 = vpop.permute.xlu0 %4132
    %4136 = vset.pattern.permute.xlu0 0
    %4137 = vperm.xlu0 %4136, %v4118
    %v4138 = vpop.permute.xlu0 %4137
    %4141 = vset.pattern.permute.xlu0 0
    %4142 = vperm.xlu0 %4141, %v4119
    %v4143 = vpop.permute.xlu0 %4142
    %v4145 = vmul.f32 %v4123, %v654
    %v4146 = vmul.f32 %v4128, %v654
    %v4147 = vmul.f32 %v4133, %v654
    %v4148 = vmul.f32 %v4138, %v654
    %v4149 = vmul.f32 %v4143, %v654
    %4150 = vset.pattern.permute.xlu0 1
    %4151 = vperm.xlu0 %4150, %v4115
    %v4152 = vpop.permute.xlu0 %4151
    %4154 = vset.pattern.permute.xlu0 1
    %4155 = vperm.xlu0 %4154, %v4116
    %v4156 = vpop.permute.xlu0 %4155
    %4158 = vset.pattern.permute.xlu0 1
    %4159 = vperm.xlu0 %4158, %v4117
    %v4160 = vpop.permute.xlu0 %4159
    %4162 = vset.pattern.permute.xlu0 1
    %4163 = vperm.xlu0 %4162, %v4118
    %v4164 = vpop.permute.xlu0 %4163
    %4166 = vset.pattern.permute.xlu0 1
    %4167 = vperm.xlu0 %4166, %v4119
    %v4168 = vpop.permute.xlu0 %4167
    %v4170 = vmul.f32 %v4152, %v683
    %v4171 = vmul.f32 %v4156, %v683
    %v4172 = vmul.f32 %v4160, %v683
    %v4173 = vmul.f32 %v4164, %v683
    %v4174 = vmul.f32 %v4168, %v683
    %v4175 = vadd.f32 %v4145, %v4170
    %v4176 = vadd.f32 %v4146, %v4171
    %v4177 = vadd.f32 %v4147, %v4172
    %v4178 = vadd.f32 %v4148, %v4173
    %v4179 = vadd.f32 %v4149, %v4174
    %4180 = vset.pattern.permute.xlu0 2
    %4181 = vperm.xlu0 %4180, %v4115
    %v4182 = vpop.permute.xlu0 %4181
    %4184 = vset.pattern.permute.xlu0 2
    %4185 = vperm.xlu0 %4184, %v4116
    %v4186 = vpop.permute.xlu0 %4185
    %4188 = vset.pattern.permute.xlu0 2
    %4189 = vperm.xlu0 %4188, %v4117
    %v4190 = vpop.permute.xlu0 %4189
    %4192 = vset.pattern.permute.xlu0 2
    %4193 = vperm.xlu0 %4192, %v4118
    %v4194 = vpop.permute.xlu0 %4193
    %4196 = vset.pattern.permute.xlu0 2
    %4197 = vperm.xlu0 %4196, %v4119
    %v4198 = vpop.permute.xlu0 %4197
    %v4200 = vmul.f32 %v4182, %v717
    %v4201 = vmul.f32 %v4186, %v717
    %v4202 = vmul.f32 %v4190, %v717
    %v4203 = vmul.f32 %v4194, %v717
    %v4204 = vmul.f32 %v4198, %v717
    %v4205 = vadd.f32 %v4175, %v4200
    %v4206 = vadd.f32 %v4176, %v4201
    %v4207 = vadd.f32 %v4177, %v4202
    %v4208 = vadd.f32 %v4178, %v4203
    %v4209 = vadd.f32 %v4179, %v4204
    %4210 = vset.pattern.permute.xlu0 3
    %4211 = vperm.xlu0 %4210, %v4115
    %v4212 = vpop.permute.xlu0 %4211
    %4214 = vset.pattern.permute.xlu0 3
    %4215 = vperm.xlu0 %4214, %v4116
    %v4216 = vpop.permute.xlu0 %4215
    %4218 = vset.pattern.permute.xlu0 3
    %4219 = vperm.xlu0 %4218, %v4117
    %v4220 = vpop.permute.xlu0 %4219
    %4222 = vset.pattern.permute.xlu0 3
    %4223 = vperm.xlu0 %4222, %v4118
    %v4224 = vpop.permute.xlu0 %4223
    %4226 = vset.pattern.permute.xlu0 3
    %4227 = vperm.xlu0 %4226, %v4119
    %v4228 = vpop.permute.xlu0 %4227
    %v4230 = vmul.f32 %v4212, %v751
    %v4231 = vmul.f32 %v4216, %v751
    %v4232 = vmul.f32 %v4220, %v751
    %v4233 = vmul.f32 %v4224, %v751
    %v4234 = vmul.f32 %v4228, %v751
    %v4235 = vadd.f32 %v4205, %v4230
    %v4236 = vadd.f32 %v4206, %v4231
    %v4237 = vadd.f32 %v4207, %v4232
    %v4238 = vadd.f32 %v4208, %v4233
    %v4239 = vadd.f32 %v4209, %v4234
    %4240 = vset.pattern.permute.xlu0 4
    %4241 = vperm.xlu0 %4240, %v4115
    %v4242 = vpop.permute.xlu0 %4241
    %4244 = vset.pattern.permute.xlu0 4
    %4245 = vperm.xlu0 %4244, %v4116
    %v4246 = vpop.permute.xlu0 %4245
    %4248 = vset.pattern.permute.xlu0 4
    %4249 = vperm.xlu0 %4248, %v4117
    %v4250 = vpop.permute.xlu0 %4249
    %4252 = vset.pattern.permute.xlu0 4
    %4253 = vperm.xlu0 %4252, %v4118
    %v4254 = vpop.permute.xlu0 %4253
    %4256 = vset.pattern.permute.xlu0 4
    %4257 = vperm.xlu0 %4256, %v4119
    %v4258 = vpop.permute.xlu0 %4257
    %v4260 = vmul.f32 %v4242, %v785
    %v4261 = vmul.f32 %v4246, %v785
    %v4262 = vmul.f32 %v4250, %v785
    %v4263 = vmul.f32 %v4254, %v785
    %v4264 = vmul.f32 %v4258, %v785
    %v4265 = vadd.f32 %v4235, %v4260
    %v4266 = vadd.f32 %v4236, %v4261
    %v4267 = vadd.f32 %v4237, %v4262
    %v4268 = vadd.f32 %v4238, %v4263
    %v4269 = vadd.f32 %v4239, %v4264
    %4270 = vset.pattern.permute.xlu0 5
    %4271 = vperm.xlu0 %4270, %v4115
    %v4272 = vpop.permute.xlu0 %4271
    %4274 = vset.pattern.permute.xlu0 5
    %4275 = vperm.xlu0 %4274, %v4116
    %v4276 = vpop.permute.xlu0 %4275
    %4278 = vset.pattern.permute.xlu0 5
    %4279 = vperm.xlu0 %4278, %v4117
    %v4280 = vpop.permute.xlu0 %4279
    %4282 = vset.pattern.permute.xlu0 5
    %4283 = vperm.xlu0 %4282, %v4118
    %v4284 = vpop.permute.xlu0 %4283
    %4286 = vset.pattern.permute.xlu0 5
    %4287 = vperm.xlu0 %4286, %v4119
    %v4288 = vpop.permute.xlu0 %4287
    %v4290 = vmul.f32 %v4272, %v819
    %v4291 = vmul.f32 %v4276, %v819
    %v4292 = vmul.f32 %v4280, %v819
    %v4293 = vmul.f32 %v4284, %v819
    %v4294 = vmul.f32 %v4288, %v819
    %v4295 = vadd.f32 %v4265, %v4290
    %v4296 = vadd.f32 %v4266, %v4291
    %v4297 = vadd.f32 %v4267, %v4292
    %v4298 = vadd.f32 %v4268, %v4293
    %v4299 = vadd.f32 %v4269, %v4294
    %4300 = vset.pattern.permute.xlu0 6
    %4301 = vperm.xlu0 %4300, %v4115
    %v4302 = vpop.permute.xlu0 %4301
    %4304 = vset.pattern.permute.xlu0 6
    %4305 = vperm.xlu0 %4304, %v4116
    %v4306 = vpop.permute.xlu0 %4305
    %4308 = vset.pattern.permute.xlu0 6
    %4309 = vperm.xlu0 %4308, %v4117
    %v4310 = vpop.permute.xlu0 %4309
    %4312 = vset.pattern.permute.xlu0 6
    %4313 = vperm.xlu0 %4312, %v4118
    %v4314 = vpop.permute.xlu0 %4313
    %4316 = vset.pattern.permute.xlu0 6
    %4317 = vperm.xlu0 %4316, %v4119
    %v4318 = vpop.permute.xlu0 %4317
    %v4320 = vmul.f32 %v4302, %v853
    %v4321 = vmul.f32 %v4306, %v853
    %v4322 = vmul.f32 %v4310, %v853
    %v4323 = vmul.f32 %v4314, %v853
    %v4324 = vmul.f32 %v4318, %v853
    %v4325 = vadd.f32 %v4295, %v4320
    %v4326 = vadd.f32 %v4296, %v4321
    %v4327 = vadd.f32 %v4297, %v4322
    %v4328 = vadd.f32 %v4298, %v4323
    %v4329 = vadd.f32 %v4299, %v4324
    %4330 = vset.pattern.permute.xlu0 7
    %4331 = vperm.xlu0 %4330, %v4115
    %v4332 = vpop.permute.xlu0 %4331
    %4334 = vset.pattern.permute.xlu0 7
    %4335 = vperm.xlu0 %4334, %v4116
    %v4336 = vpop.permute.xlu0 %4335
    %4338 = vset.pattern.permute.xlu0 7
    %4339 = vperm.xlu0 %4338, %v4117
    %v4340 = vpop.permute.xlu0 %4339
    %4342 = vset.pattern.permute.xlu0 7
    %4343 = vperm.xlu0 %4342, %v4118
    %v4344 = vpop.permute.xlu0 %4343
    %4346 = vset.pattern.permute.xlu0 7
    %4347 = vperm.xlu0 %4346, %v4119
    %v4348 = vpop.permute.xlu0 %4347
    %v4350 = vmul.f32 %v4332, %v887
    %v4351 = vmul.f32 %v4336, %v887
    %v4352 = vmul.f32 %v4340, %v887
    %v4353 = vmul.f32 %v4344, %v887
    %v4354 = vmul.f32 %v4348, %v887
    %v4355 = vadd.f32 %v4325, %v4350
    %v4356 = vadd.f32 %v4326, %v4351
    %v4357 = vadd.f32 %v4327, %v4352
    %v4358 = vadd.f32 %v4328, %v4353
    %v4359 = vadd.f32 %v4329, %v4354
    %4360 = vset.pattern.permute.xlu0 8
    %4361 = vperm.xlu0 %4360, %v4115
    %v4362 = vpop.permute.xlu0 %4361
    %4364 = vset.pattern.permute.xlu0 8
    %4365 = vperm.xlu0 %4364, %v4116
    %v4366 = vpop.permute.xlu0 %4365
    %4368 = vset.pattern.permute.xlu0 8
    %4369 = vperm.xlu0 %4368, %v4117
    %v4370 = vpop.permute.xlu0 %4369
    %4372 = vset.pattern.permute.xlu0 8
    %4373 = vperm.xlu0 %4372, %v4118
    %v4374 = vpop.permute.xlu0 %4373
    %4376 = vset.pattern.permute.xlu0 8
    %4377 = vperm.xlu0 %4376, %v4119
    %v4378 = vpop.permute.xlu0 %4377
    %v4380 = vmul.f32 %v4362, %v921
    %v4381 = vmul.f32 %v4366, %v921
    %v4382 = vmul.f32 %v4370, %v921
    %v4383 = vmul.f32 %v4374, %v921
    %v4384 = vmul.f32 %v4378, %v921
    %v4385 = vadd.f32 %v4355, %v4380
    %v4386 = vadd.f32 %v4356, %v4381
    %v4387 = vadd.f32 %v4357, %v4382
    %v4388 = vadd.f32 %v4358, %v4383
    %v4389 = vadd.f32 %v4359, %v4384
    %4390 = vset.pattern.permute.xlu0 9
    %4391 = vperm.xlu0 %4390, %v4115
    %v4392 = vpop.permute.xlu0 %4391
    %4394 = vset.pattern.permute.xlu0 9
    %4395 = vperm.xlu0 %4394, %v4116
    %v4396 = vpop.permute.xlu0 %4395
    %4398 = vset.pattern.permute.xlu0 9
    %4399 = vperm.xlu0 %4398, %v4117
    %v4400 = vpop.permute.xlu0 %4399
    %4402 = vset.pattern.permute.xlu0 9
    %4403 = vperm.xlu0 %4402, %v4118
    %v4404 = vpop.permute.xlu0 %4403
    %4406 = vset.pattern.permute.xlu0 9
    %4407 = vperm.xlu0 %4406, %v4119
    %v4408 = vpop.permute.xlu0 %4407
    %v4410 = vmul.f32 %v4392, %v955
    %v4411 = vmul.f32 %v4396, %v955
    %v4412 = vmul.f32 %v4400, %v955
    %v4413 = vmul.f32 %v4404, %v955
    %v4414 = vmul.f32 %v4408, %v955
    %v4415 = vadd.f32 %v4385, %v4410
    %v4416 = vadd.f32 %v4386, %v4411
    %v4417 = vadd.f32 %v4387, %v4412
    %v4418 = vadd.f32 %v4388, %v4413
    %v4419 = vadd.f32 %v4389, %v4414
    %4420 = vset.pattern.permute.xlu0 10
    %4421 = vperm.xlu0 %4420, %v4115
    %v4422 = vpop.permute.xlu0 %4421
    %4424 = vset.pattern.permute.xlu0 10
    %4425 = vperm.xlu0 %4424, %v4116
    %v4426 = vpop.permute.xlu0 %4425
    %4428 = vset.pattern.permute.xlu0 10
    %4429 = vperm.xlu0 %4428, %v4117
    %v4430 = vpop.permute.xlu0 %4429
    %4432 = vset.pattern.permute.xlu0 10
    %4433 = vperm.xlu0 %4432, %v4118
    %v4434 = vpop.permute.xlu0 %4433
    %4436 = vset.pattern.permute.xlu0 10
    %4437 = vperm.xlu0 %4436, %v4119
    %v4438 = vpop.permute.xlu0 %4437
    %v4440 = vmul.f32 %v4422, %v989
    %v4441 = vmul.f32 %v4426, %v989
    %v4442 = vmul.f32 %v4430, %v989
    %v4443 = vmul.f32 %v4434, %v989
    %v4444 = vmul.f32 %v4438, %v989
    %v4445 = vadd.f32 %v4415, %v4440
    %v4446 = vadd.f32 %v4416, %v4441
    %v4447 = vadd.f32 %v4417, %v4442
    %v4448 = vadd.f32 %v4418, %v4443
    %v4449 = vadd.f32 %v4419, %v4444
    %4450 = vset.pattern.permute.xlu0 11
    %4451 = vperm.xlu0 %4450, %v4115
    %v4452 = vpop.permute.xlu0 %4451
    %4454 = vset.pattern.permute.xlu0 11
    %4455 = vperm.xlu0 %4454, %v4116
    %v4456 = vpop.permute.xlu0 %4455
    %4458 = vset.pattern.permute.xlu0 11
    %4459 = vperm.xlu0 %4458, %v4117
    %v4460 = vpop.permute.xlu0 %4459
    %4462 = vset.pattern.permute.xlu0 11
    %4463 = vperm.xlu0 %4462, %v4118
    %v4464 = vpop.permute.xlu0 %4463
    %4466 = vset.pattern.permute.xlu0 11
    %4467 = vperm.xlu0 %4466, %v4119
    %v4468 = vpop.permute.xlu0 %4467
    %v4470 = vmul.f32 %v4452, %v1023
    %v4471 = vmul.f32 %v4456, %v1023
    %v4472 = vmul.f32 %v4460, %v1023
    %v4473 = vmul.f32 %v4464, %v1023
    %v4474 = vmul.f32 %v4468, %v1023
    %v4475 = vadd.f32 %v4445, %v4470
    %v4476 = vadd.f32 %v4446, %v4471
    %v4477 = vadd.f32 %v4447, %v4472
    %v4478 = vadd.f32 %v4448, %v4473
    %v4479 = vadd.f32 %v4449, %v4474
    %4480 = vset.pattern.permute.xlu0 12
    %4481 = vperm.xlu0 %4480, %v4115
    %v4482 = vpop.permute.xlu0 %4481
    %4484 = vset.pattern.permute.xlu0 12
    %4485 = vperm.xlu0 %4484, %v4116
    %v4486 = vpop.permute.xlu0 %4485
    %4488 = vset.pattern.permute.xlu0 12
    %4489 = vperm.xlu0 %4488, %v4117
    %v4490 = vpop.permute.xlu0 %4489
    %4492 = vset.pattern.permute.xlu0 12
    %4493 = vperm.xlu0 %4492, %v4118
    %v4494 = vpop.permute.xlu0 %4493
    %4496 = vset.pattern.permute.xlu0 12
    %4497 = vperm.xlu0 %4496, %v4119
    %v4498 = vpop.permute.xlu0 %4497
    %v4500 = vmul.f32 %v4482, %v1057
    %v4501 = vmul.f32 %v4486, %v1057
    %v4502 = vmul.f32 %v4490, %v1057
    %v4503 = vmul.f32 %v4494, %v1057
    %v4504 = vmul.f32 %v4498, %v1057
    %v4505 = vadd.f32 %v4475, %v4500
    %v4506 = vadd.f32 %v4476, %v4501
    %v4507 = vadd.f32 %v4477, %v4502
    %v4508 = vadd.f32 %v4478, %v4503
    %v4509 = vadd.f32 %v4479, %v4504
    %4510 = vset.pattern.permute.xlu0 13
    %4511 = vperm.xlu0 %4510, %v4115
    %v4512 = vpop.permute.xlu0 %4511
    %4514 = vset.pattern.permute.xlu0 13
    %4515 = vperm.xlu0 %4514, %v4116
    %v4516 = vpop.permute.xlu0 %4515
    %4518 = vset.pattern.permute.xlu0 13
    %4519 = vperm.xlu0 %4518, %v4117
    %v4520 = vpop.permute.xlu0 %4519
    %4522 = vset.pattern.permute.xlu0 13
    %4523 = vperm.xlu0 %4522, %v4118
    %v4524 = vpop.permute.xlu0 %4523
    %4526 = vset.pattern.permute.xlu0 13
    %4527 = vperm.xlu0 %4526, %v4119
    %v4528 = vpop.permute.xlu0 %4527
    %v4530 = vmul.f32 %v4512, %v1091
    %v4531 = vmul.f32 %v4516, %v1091
    %v4532 = vmul.f32 %v4520, %v1091
    %v4533 = vmul.f32 %v4524, %v1091
    %v4534 = vmul.f32 %v4528, %v1091
    %v4535 = vadd.f32 %v4505, %v4530
    %v4536 = vadd.f32 %v4506, %v4531
    %v4537 = vadd.f32 %v4507, %v4532
    %v4538 = vadd.f32 %v4508, %v4533
    %v4539 = vadd.f32 %v4509, %v4534
    %4540 = vset.pattern.permute.xlu0 14
    %4541 = vperm.xlu0 %4540, %v4115
    %v4542 = vpop.permute.xlu0 %4541
    %4544 = vset.pattern.permute.xlu0 14
    %4545 = vperm.xlu0 %4544, %v4116
    %v4546 = vpop.permute.xlu0 %4545
    %4548 = vset.pattern.permute.xlu0 14
    %4549 = vperm.xlu0 %4548, %v4117
    %v4550 = vpop.permute.xlu0 %4549
    %4552 = vset.pattern.permute.xlu0 14
    %4553 = vperm.xlu0 %4552, %v4118
    %v4554 = vpop.permute.xlu0 %4553
    %4556 = vset.pattern.permute.xlu0 14
    %4557 = vperm.xlu0 %4556, %v4119
    %v4558 = vpop.permute.xlu0 %4557
    %v4560 = vmul.f32 %v4542, %v1125
    %v4561 = vmul.f32 %v4546, %v1125
    %v4562 = vmul.f32 %v4550, %v1125
    %v4563 = vmul.f32 %v4554, %v1125
    %v4564 = vmul.f32 %v4558, %v1125
    %v4565 = vadd.f32 %v4535, %v4560
    %v4566 = vadd.f32 %v4536, %v4561
    %v4567 = vadd.f32 %v4537, %v4562
    %v4568 = vadd.f32 %v4538, %v4563
    %v4569 = vadd.f32 %v4539, %v4564
    %4570 = vset.pattern.permute.xlu0 15
    %4571 = vperm.xlu0 %4570, %v4115
    %v4572 = vpop.permute.xlu0 %4571
    %4574 = vset.pattern.permute.xlu0 15
    %4575 = vperm.xlu0 %4574, %v4116
    %v4576 = vpop.permute.xlu0 %4575
    %4578 = vset.pattern.permute.xlu0 15
    %4579 = vperm.xlu0 %4578, %v4117
    %v4580 = vpop.permute.xlu0 %4579
    %4582 = vset.pattern.permute.xlu0 15
    %4583 = vperm.xlu0 %4582, %v4118
    %v4584 = vpop.permute.xlu0 %4583
    %4586 = vset.pattern.permute.xlu0 15
    %4587 = vperm.xlu0 %4586, %v4119
    %v4588 = vpop.permute.xlu0 %4587
    %v4590 = vmul.f32 %v4572, %v1159
    %v4591 = vmul.f32 %v4576, %v1159
    %v4592 = vmul.f32 %v4580, %v1159
    %v4593 = vmul.f32 %v4584, %v1159
    %v4594 = vmul.f32 %v4588, %v1159
    %v4595 = vadd.f32 %v4565, %v4590
    %v4596 = vadd.f32 %v4566, %v4591
    %v4597 = vadd.f32 %v4567, %v4592
    %v4598 = vadd.f32 %v4568, %v4593
    %v4599 = vadd.f32 %v4569, %v4594
    %4600 = vst [vmem:[#allocation2 + $0x118] sm:$0xff] %v4595
    %4601 = vst [vmem:[#allocation2 + $0x120] sm:$0xff] %v4596
    %4602 = vst [vmem:[#allocation2 + $0x128] sm:$0xff] %v4597
    %4603 = vst [vmem:[#allocation2 + $0x130] sm:$0xff] %v4598
    %4604 = vst [vmem:[#allocation2 + $0x138] sm:$0xff] %v4599
    %v4605 = vld [vmem:[%s1 + $0x140] sm:$0xff]
    %v4606 = vld [vmem:[%s1 + $0x148] sm:$0xff]
    %v4607 = vld [vmem:[%s1 + $0x150] sm:$0xff]
    %v4608 = vld [vmem:[%s1 + $0x158] sm:$0xff]
    %v4609 = vld [vmem:[%s1 + $0x160] sm:$0xff]
    %4611 = vset.pattern.permute.xlu0 0
    %4612 = vperm.xlu0 %4611, %v4605
    %v4613 = vpop.permute.xlu0 %4612
    %4616 = vset.pattern.permute.xlu0 0
    %4617 = vperm.xlu0 %4616, %v4606
    %v4618 = vpop.permute.xlu0 %4617
    %4621 = vset.pattern.permute.xlu0 0
    %4622 = vperm.xlu0 %4621, %v4607
    %v4623 = vpop.permute.xlu0 %4622
    %4626 = vset.pattern.permute.xlu0 0
    %4627 = vperm.xlu0 %4626, %v4608
    %v4628 = vpop.permute.xlu0 %4627
    %4631 = vset.pattern.permute.xlu0 0
    %4632 = vperm.xlu0 %4631, %v4609
    %v4633 = vpop.permute.xlu0 %4632
    %v4635 = vmul.f32 %v4613, %v654
    %v4636 = vmul.f32 %v4618, %v654
    %v4637 = vmul.f32 %v4623, %v654
    %v4638 = vmul.f32 %v4628, %v654
    %v4639 = vmul.f32 %v4633, %v654
    %4640 = vset.pattern.permute.xlu0 1
    %4641 = vperm.xlu0 %4640, %v4605
    %v4642 = vpop.permute.xlu0 %4641
    %4644 = vset.pattern.permute.xlu0 1
    %4645 = vperm.xlu0 %4644, %v4606
    %v4646 = vpop.permute.xlu0 %4645
    %4648 = vset.pattern.permute.xlu0 1
    %4649 = vperm.xlu0 %4648, %v4607
    %v4650 = vpop.permute.xlu0 %4649
    %4652 = vset.pattern.permute.xlu0 1
    %4653 = vperm.xlu0 %4652, %v4608
    %v4654 = vpop.permute.xlu0 %4653
    %4656 = vset.pattern.permute.xlu0 1
    %4657 = vperm.xlu0 %4656, %v4609
    %v4658 = vpop.permute.xlu0 %4657
    %v4660 = vmul.f32 %v4642, %v683
    %v4661 = vmul.f32 %v4646, %v683
    %v4662 = vmul.f32 %v4650, %v683
    %v4663 = vmul.f32 %v4654, %v683
    %v4664 = vmul.f32 %v4658, %v683
    %v4665 = vadd.f32 %v4635, %v4660
    %v4666 = vadd.f32 %v4636, %v4661
    %v4667 = vadd.f32 %v4637, %v4662
    %v4668 = vadd.f32 %v4638, %v4663
    %v4669 = vadd.f32 %v4639, %v4664
    %4670 = vset.pattern.permute.xlu0 2
    %4671 = vperm.xlu0 %4670, %v4605
    %v4672 = vpop.permute.xlu0 %4671
    %4674 = vset.pattern.permute.xlu0 2
    %4675 = vperm.xlu0 %4674, %v4606
    %v4676 = vpop.permute.xlu0 %4675
    %4678 = vset.pattern.permute.xlu0 2
    %4679 = vperm.xlu0 %4678, %v4607
    %v4680 = vpop.permute.xlu0 %4679
    %4682 = vset.pattern.permute.xlu0 2
    %4683 = vperm.xlu0 %4682, %v4608
    %v4684 = vpop.permute.xlu0 %4683
    %4686 = vset.pattern.permute.xlu0 2
    %4687 = vperm.xlu0 %4686, %v4609
    %v4688 = vpop.permute.xlu0 %4687
    %v4690 = vmul.f32 %v4672, %v717
    %v4691 = vmul.f32 %v4676, %v717
    %v4692 = vmul.f32 %v4680, %v717
    %v4693 = vmul.f32 %v4684, %v717
    %v4694 = vmul.f32 %v4688, %v717
    %v4695 = vadd.f32 %v4665, %v4690
    %v4696 = vadd.f32 %v4666, %v4691
    %v4697 = vadd.f32 %v4667, %v4692
    %v4698 = vadd.f32 %v4668, %v4693
    %v4699 = vadd.f32 %v4669, %v4694
    %4700 = vset.pattern.permute.xlu0 3
    %4701 = vperm.xlu0 %4700, %v4605
    %v4702 = vpop.permute.xlu0 %4701
    %4704 = vset.pattern.permute.xlu0 3
    %4705 = vperm.xlu0 %4704, %v4606
    %v4706 = vpop.permute.xlu0 %4705
    %4708 = vset.pattern.permute.xlu0 3
    %4709 = vperm.xlu0 %4708, %v4607
    %v4710 = vpop.permute.xlu0 %4709
    %4712 = vset.pattern.permute.xlu0 3
    %4713 = vperm.xlu0 %4712, %v4608
    %v4714 = vpop.permute.xlu0 %4713
    %4716 = vset.pattern.permute.xlu0 3
    %4717 = vperm.xlu0 %4716, %v4609
    %v4718 = vpop.permute.xlu0 %4717
    %v4720 = vmul.f32 %v4702, %v751
    %v4721 = vmul.f32 %v4706, %v751
    %v4722 = vmul.f32 %v4710, %v751
    %v4723 = vmul.f32 %v4714, %v751
    %v4724 = vmul.f32 %v4718, %v751
    %v4725 = vadd.f32 %v4695, %v4720
    %v4726 = vadd.f32 %v4696, %v4721
    %v4727 = vadd.f32 %v4697, %v4722
    %v4728 = vadd.f32 %v4698, %v4723
    %v4729 = vadd.f32 %v4699, %v4724
    %4730 = vset.pattern.permute.xlu0 4
    %4731 = vperm.xlu0 %4730, %v4605
    %v4732 = vpop.permute.xlu0 %4731
    %4734 = vset.pattern.permute.xlu0 4
    %4735 = vperm.xlu0 %4734, %v4606
    %v4736 = vpop.permute.xlu0 %4735
    %4738 = vset.pattern.permute.xlu0 4
    %4739 = vperm.xlu0 %4738, %v4607
    %v4740 = vpop.permute.xlu0 %4739
    %4742 = vset.pattern.permute.xlu0 4
    %4743 = vperm.xlu0 %4742, %v4608
    %v4744 = vpop.permute.xlu0 %4743
    %4746 = vset.pattern.permute.xlu0 4
    %4747 = vperm.xlu0 %4746, %v4609
    %v4748 = vpop.permute.xlu0 %4747
    %v4750 = vmul.f32 %v4732, %v785
    %v4751 = vmul.f32 %v4736, %v785
    %v4752 = vmul.f32 %v4740, %v785
    %v4753 = vmul.f32 %v4744, %v785
    %v4754 = vmul.f32 %v4748, %v785
    %v4755 = vadd.f32 %v4725, %v4750
    %v4756 = vadd.f32 %v4726, %v4751
    %v4757 = vadd.f32 %v4727, %v4752
    %v4758 = vadd.f32 %v4728, %v4753
    %v4759 = vadd.f32 %v4729, %v4754
    %4760 = vset.pattern.permute.xlu0 5
    %4761 = vperm.xlu0 %4760, %v4605
    %v4762 = vpop.permute.xlu0 %4761
    %4764 = vset.pattern.permute.xlu0 5
    %4765 = vperm.xlu0 %4764, %v4606
    %v4766 = vpop.permute.xlu0 %4765
    %4768 = vset.pattern.permute.xlu0 5
    %4769 = vperm.xlu0 %4768, %v4607
    %v4770 = vpop.permute.xlu0 %4769
    %4772 = vset.pattern.permute.xlu0 5
    %4773 = vperm.xlu0 %4772, %v4608
    %v4774 = vpop.permute.xlu0 %4773
    %4776 = vset.pattern.permute.xlu0 5
    %4777 = vperm.xlu0 %4776, %v4609
    %v4778 = vpop.permute.xlu0 %4777
    %v4780 = vmul.f32 %v4762, %v819
    %v4781 = vmul.f32 %v4766, %v819
    %v4782 = vmul.f32 %v4770, %v819
    %v4783 = vmul.f32 %v4774, %v819
    %v4784 = vmul.f32 %v4778, %v819
    %v4785 = vadd.f32 %v4755, %v4780
    %v4786 = vadd.f32 %v4756, %v4781
    %v4787 = vadd.f32 %v4757, %v4782
    %v4788 = vadd.f32 %v4758, %v4783
    %v4789 = vadd.f32 %v4759, %v4784
    %4790 = vset.pattern.permute.xlu0 6
    %4791 = vperm.xlu0 %4790, %v4605
    %v4792 = vpop.permute.xlu0 %4791
    %4794 = vset.pattern.permute.xlu0 6
    %4795 = vperm.xlu0 %4794, %v4606
    %v4796 = vpop.permute.xlu0 %4795
    %4798 = vset.pattern.permute.xlu0 6
    %4799 = vperm.xlu0 %4798, %v4607
    %v4800 = vpop.permute.xlu0 %4799
    %4802 = vset.pattern.permute.xlu0 6
    %4803 = vperm.xlu0 %4802, %v4608
    %v4804 = vpop.permute.xlu0 %4803
    %4806 = vset.pattern.permute.xlu0 6
    %4807 = vperm.xlu0 %4806, %v4609
    %v4808 = vpop.permute.xlu0 %4807
    %v4810 = vmul.f32 %v4792, %v853
    %v4811 = vmul.f32 %v4796, %v853
    %v4812 = vmul.f32 %v4800, %v853
    %v4813 = vmul.f32 %v4804, %v853
    %v4814 = vmul.f32 %v4808, %v853
    %v4815 = vadd.f32 %v4785, %v4810
    %v4816 = vadd.f32 %v4786, %v4811
    %v4817 = vadd.f32 %v4787, %v4812
    %v4818 = vadd.f32 %v4788, %v4813
    %v4819 = vadd.f32 %v4789, %v4814
    %4820 = vset.pattern.permute.xlu0 7
    %4821 = vperm.xlu0 %4820, %v4605
    %v4822 = vpop.permute.xlu0 %4821
    %4824 = vset.pattern.permute.xlu0 7
    %4825 = vperm.xlu0 %4824, %v4606
    %v4826 = vpop.permute.xlu0 %4825
    %4828 = vset.pattern.permute.xlu0 7
    %4829 = vperm.xlu0 %4828, %v4607
    %v4830 = vpop.permute.xlu0 %4829
    %4832 = vset.pattern.permute.xlu0 7
    %4833 = vperm.xlu0 %4832, %v4608
    %v4834 = vpop.permute.xlu0 %4833
    %4836 = vset.pattern.permute.xlu0 7
    %4837 = vperm.xlu0 %4836, %v4609
    %v4838 = vpop.permute.xlu0 %4837
    %v4840 = vmul.f32 %v4822, %v887
    %v4841 = vmul.f32 %v4826, %v887
    %v4842 = vmul.f32 %v4830, %v887
    %v4843 = vmul.f32 %v4834, %v887
    %v4844 = vmul.f32 %v4838, %v887
    %v4845 = vadd.f32 %v4815, %v4840
    %v4846 = vadd.f32 %v4816, %v4841
    %v4847 = vadd.f32 %v4817, %v4842
    %v4848 = vadd.f32 %v4818, %v4843
    %v4849 = vadd.f32 %v4819, %v4844
    %4850 = vset.pattern.permute.xlu0 8
    %4851 = vperm.xlu0 %4850, %v4605
    %v4852 = vpop.permute.xlu0 %4851
    %4854 = vset.pattern.permute.xlu0 8
    %4855 = vperm.xlu0 %4854, %v4606
    %v4856 = vpop.permute.xlu0 %4855
    %4858 = vset.pattern.permute.xlu0 8
    %4859 = vperm.xlu0 %4858, %v4607
    %v4860 = vpop.permute.xlu0 %4859
    %4862 = vset.pattern.permute.xlu0 8
    %4863 = vperm.xlu0 %4862, %v4608
    %v4864 = vpop.permute.xlu0 %4863
    %4866 = vset.pattern.permute.xlu0 8
    %4867 = vperm.xlu0 %4866, %v4609
    %v4868 = vpop.permute.xlu0 %4867
    %v4870 = vmul.f32 %v4852, %v921
    %v4871 = vmul.f32 %v4856, %v921
    %v4872 = vmul.f32 %v4860, %v921
    %v4873 = vmul.f32 %v4864, %v921
    %v4874 = vmul.f32 %v4868, %v921
    %v4875 = vadd.f32 %v4845, %v4870
    %v4876 = vadd.f32 %v4846, %v4871
    %v4877 = vadd.f32 %v4847, %v4872
    %v4878 = vadd.f32 %v4848, %v4873
    %v4879 = vadd.f32 %v4849, %v4874
    %4880 = vset.pattern.permute.xlu0 9
    %4881 = vperm.xlu0 %4880, %v4605
    %v4882 = vpop.permute.xlu0 %4881
    %4884 = vset.pattern.permute.xlu0 9
    %4885 = vperm.xlu0 %4884, %v4606
    %v4886 = vpop.permute.xlu0 %4885
    %4888 = vset.pattern.permute.xlu0 9
    %4889 = vperm.xlu0 %4888, %v4607
    %v4890 = vpop.permute.xlu0 %4889
    %4892 = vset.pattern.permute.xlu0 9
    %4893 = vperm.xlu0 %4892, %v4608
    %v4894 = vpop.permute.xlu0 %4893
    %4896 = vset.pattern.permute.xlu0 9
    %4897 = vperm.xlu0 %4896, %v4609
    %v4898 = vpop.permute.xlu0 %4897
    %v4900 = vmul.f32 %v4882, %v955
    %v4901 = vmul.f32 %v4886, %v955
    %v4902 = vmul.f32 %v4890, %v955
    %v4903 = vmul.f32 %v4894, %v955
    %v4904 = vmul.f32 %v4898, %v955
    %v4905 = vadd.f32 %v4875, %v4900
    %v4906 = vadd.f32 %v4876, %v4901
    %v4907 = vadd.f32 %v4877, %v4902
    %v4908 = vadd.f32 %v4878, %v4903
    %v4909 = vadd.f32 %v4879, %v4904
    %4910 = vset.pattern.permute.xlu0 10
    %4911 = vperm.xlu0 %4910, %v4605
    %v4912 = vpop.permute.xlu0 %4911
    %4914 = vset.pattern.permute.xlu0 10
    %4915 = vperm.xlu0 %4914, %v4606
    %v4916 = vpop.permute.xlu0 %4915
    %4918 = vset.pattern.permute.xlu0 10
    %4919 = vperm.xlu0 %4918, %v4607
    %v4920 = vpop.permute.xlu0 %4919
    %4922 = vset.pattern.permute.xlu0 10
    %4923 = vperm.xlu0 %4922, %v4608
    %v4924 = vpop.permute.xlu0 %4923
    %4926 = vset.pattern.permute.xlu0 10
    %4927 = vperm.xlu0 %4926, %v4609
    %v4928 = vpop.permute.xlu0 %4927
    %v4930 = vmul.f32 %v4912, %v989
    %v4931 = vmul.f32 %v4916, %v989
    %v4932 = vmul.f32 %v4920, %v989
    %v4933 = vmul.f32 %v4924, %v989
    %v4934 = vmul.f32 %v4928, %v989
    %v4935 = vadd.f32 %v4905, %v4930
    %v4936 = vadd.f32 %v4906, %v4931
    %v4937 = vadd.f32 %v4907, %v4932
    %v4938 = vadd.f32 %v4908, %v4933
    %v4939 = vadd.f32 %v4909, %v4934
    %4940 = vset.pattern.permute.xlu0 11
    %4941 = vperm.xlu0 %4940, %v4605
    %v4942 = vpop.permute.xlu0 %4941
    %4944 = vset.pattern.permute.xlu0 11
    %4945 = vperm.xlu0 %4944, %v4606
    %v4946 = vpop.permute.xlu0 %4945
    %4948 = vset.pattern.permute.xlu0 11
    %4949 = vperm.xlu0 %4948, %v4607
    %v4950 = vpop.permute.xlu0 %4949
    %4952 = vset.pattern.permute.xlu0 11
    %4953 = vperm.xlu0 %4952, %v4608
    %v4954 = vpop.permute.xlu0 %4953
    %4956 = vset.pattern.permute.xlu0 11
    %4957 = vperm.xlu0 %4956, %v4609
    %v4958 = vpop.permute.xlu0 %4957
    %v4960 = vmul.f32 %v4942, %v1023
    %v4961 = vmul.f32 %v4946, %v1023
    %v4962 = vmul.f32 %v4950, %v1023
    %v4963 = vmul.f32 %v4954, %v1023
    %v4964 = vmul.f32 %v4958, %v1023
    %v4965 = vadd.f32 %v4935, %v4960
    %v4966 = vadd.f32 %v4936, %v4961
    %v4967 = vadd.f32 %v4937, %v4962
    %v4968 = vadd.f32 %v4938, %v4963
    %v4969 = vadd.f32 %v4939, %v4964
    %4970 = vset.pattern.permute.xlu0 12
    %4971 = vperm.xlu0 %4970, %v4605
    %v4972 = vpop.permute.xlu0 %4971
    %4974 = vset.pattern.permute.xlu0 12
    %4975 = vperm.xlu0 %4974, %v4606
    %v4976 = vpop.permute.xlu0 %4975
    %4978 = vset.pattern.permute.xlu0 12
    %4979 = vperm.xlu0 %4978, %v4607
    %v4980 = vpop.permute.xlu0 %4979
    %4982 = vset.pattern.permute.xlu0 12
    %4983 = vperm.xlu0 %4982, %v4608
    %v4984 = vpop.permute.xlu0 %4983
    %4986 = vset.pattern.permute.xlu0 12
    %4987 = vperm.xlu0 %4986, %v4609
    %v4988 = vpop.permute.xlu0 %4987
    %v4990 = vmul.f32 %v4972, %v1057
    %v4991 = vmul.f32 %v4976, %v1057
    %v4992 = vmul.f32 %v4980, %v1057
    %v4993 = vmul.f32 %v4984, %v1057
    %v4994 = vmul.f32 %v4988, %v1057
    %v4995 = vadd.f32 %v4965, %v4990
    %v4996 = vadd.f32 %v4966, %v4991
    %v4997 = vadd.f32 %v4967, %v4992
    %v4998 = vadd.f32 %v4968, %v4993
    %v4999 = vadd.f32 %v4969, %v4994
    %5000 = vset.pattern.permute.xlu0 13
    %5001 = vperm.xlu0 %5000, %v4605
    %v5002 = vpop.permute.xlu0 %5001
    %5004 = vset.pattern.permute.xlu0 13
    %5005 = vperm.xlu0 %5004, %v4606
    %v5006 = vpop.permute.xlu0 %5005
    %5008 = vset.pattern.permute.xlu0 13
    %5009 = vperm.xlu0 %5008, %v4607
    %v5010 = vpop.permute.xlu0 %5009
    %5012 = vset.pattern.permute.xlu0 13
    %5013 = vperm.xlu0 %5012, %v4608
    %v5014 = vpop.permute.xlu0 %5013
    %5016 = vset.pattern.permute.xlu0 13
    %5017 = vperm.xlu0 %5016, %v4609
    %v5018 = vpop.permute.xlu0 %5017
    %v5020 = vmul.f32 %v5002, %v1091
    %v5021 = vmul.f32 %v5006, %v1091
    %v5022 = vmul.f32 %v5010, %v1091
    %v5023 = vmul.f32 %v5014, %v1091
    %v5024 = vmul.f32 %v5018, %v1091
    %v5025 = vadd.f32 %v4995, %v5020
    %v5026 = vadd.f32 %v4996, %v5021
    %v5027 = vadd.f32 %v4997, %v5022
    %v5028 = vadd.f32 %v4998, %v5023
    %v5029 = vadd.f32 %v4999, %v5024
    %5030 = vset.pattern.permute.xlu0 14
    %5031 = vperm.xlu0 %5030, %v4605
    %v5032 = vpop.permute.xlu0 %5031
    %5034 = vset.pattern.permute.xlu0 14
    %5035 = vperm.xlu0 %5034, %v4606
    %v5036 = vpop.permute.xlu0 %5035
    %5038 = vset.pattern.permute.xlu0 14
    %5039 = vperm.xlu0 %5038, %v4607
    %v5040 = vpop.permute.xlu0 %5039
    %5042 = vset.pattern.permute.xlu0 14
    %5043 = vperm.xlu0 %5042, %v4608
    %v5044 = vpop.permute.xlu0 %5043
    %5046 = vset.pattern.permute.xlu0 14
    %5047 = vperm.xlu0 %5046, %v4609
    %v5048 = vpop.permute.xlu0 %5047
    %v5050 = vmul.f32 %v5032, %v1125
    %v5051 = vmul.f32 %v5036, %v1125
    %v5052 = vmul.f32 %v5040, %v1125
    %v5053 = vmul.f32 %v5044, %v1125
    %v5054 = vmul.f32 %v5048, %v1125
    %v5055 = vadd.f32 %v5025, %v5050
    %v5056 = vadd.f32 %v5026, %v5051
    %v5057 = vadd.f32 %v5027, %v5052
    %v5058 = vadd.f32 %v5028, %v5053
    %v5059 = vadd.f32 %v5029, %v5054
    %5060 = vset.pattern.permute.xlu0 15
    %5061 = vperm.xlu0 %5060, %v4605
    %v5062 = vpop.permute.xlu0 %5061
    %5064 = vset.pattern.permute.xlu0 15
    %5065 = vperm.xlu0 %5064, %v4606
    %v5066 = vpop.permute.xlu0 %5065
    %5068 = vset.pattern.permute.xlu0 15
    %5069 = vperm.xlu0 %5068, %v4607
    %v5070 = vpop.permute.xlu0 %5069
    %5072 = vset.pattern.permute.xlu0 15
    %5073 = vperm.xlu0 %5072, %v4608
    %v5074 = vpop.permute.xlu0 %5073
    %5076 = vset.pattern.permute.xlu0 15
    %5077 = vperm.xlu0 %5076, %v4609
    %v5078 = vpop.permute.xlu0 %5077
    %v5080 = vmul.f32 %v5062, %v1159
    %v5081 = vmul.f32 %v5066, %v1159
    %v5082 = vmul.f32 %v5070, %v1159
    %v5083 = vmul.f32 %v5074, %v1159
    %v5084 = vmul.f32 %v5078, %v1159
    %v5085 = vadd.f32 %v5055, %v5080
    %v5086 = vadd.f32 %v5056, %v5081
    %v5087 = vadd.f32 %v5057, %v5082
    %v5088 = vadd.f32 %v5058, %v5083
    %v5089 = vadd.f32 %v5059, %v5084
    %5090 = vst [vmem:[#allocation2 + $0x140] sm:$0xff] %v5085
    %5091 = vst [vmem:[#allocation2 + $0x148] sm:$0xff] %v5086
    %5092 = vst [vmem:[#allocation2 + $0x150] sm:$0xff] %v5087
    %5093 = vst [vmem:[#allocation2 + $0x158] sm:$0xff] %v5088
    %5094 = vst [vmem:[#allocation2 + $0x160] sm:$0xff] %v5089
    // Predicated region
    $region10: #{tpu_custom_call.1} parent=1 // pred_check
      _
    $region11: #{tpu_custom_call.1} parent=1 // pred_check_branch
      %5096 = sbr.rel (0) target = $region13
    $region12: #{tpu_custom_call.1} parent=1 // pred_region
      %s5098 = ssub.s32 5760, 5760
      %5099 = vsyncadd [#allocation3], %s5098
      %s5100 = sshll.u32 [#allocation2], 4
      %s5101 = int_to_ptr.vmem [resolvable:$true] %s5100
      %5106 = dma.vmem_to_hbm [thread:$0]  %s5101, 5760, %s2, [#allocation3], 128, 128, 8
    $region13: #{tpu_custom_call.1} parent=1 // pred_fallthru
      _
    // Predicated region
    $region14: #{tpu_custom_call.1} parent=1 // pred_check
      _
    $region15: #{tpu_custom_call.1} parent=1 // pred_check_branch
      %5108 = sbr.rel (0) target = $region17
    $region16: #{tpu_custom_call.1} parent=1 // pred_region
      %5109 = dma.done [#allocation3], 5760
    $region17: #{tpu_custom_call.1} parent=1 // pred_fallthru
      _
    %5110 = vsyncpa [#allocation3], 1

</llo_original>
